<compile_context>
chip_gen: v6e
topology: v6e:2x2x1
jax: 0.10.0
libtpu: 0.0.40
codegen_flags: <defaults>
</compile_context>

<pallas_src>
from types import SimpleNamespace

import jax
import jax.numpy as jnp
from jax.experimental import pallas as pl
from jax.experimental.pallas import tpu as pltpu


def make_lstm_kernel(T, L, B, H, C):
    TB = T * B

    def kernel(x_ref, *refs):
        # refs layout:
        #   [w_ihT_0, w_hhT_0, b_0, ..., w_ihT_{L-1}, w_hhT_{L-1}, b_{L-1},
        #    w_out, b_out, out_ref, h_all_scratch]
        layer_refs = refs[: 3 * L]
        w_out_ref = refs[3 * L]
        b_out_ref = refs[3 * L + 1]
        out_ref = refs[3 * L + 2]
        h_all_ref = refs[3 * L + 3]

        # ---- hoisted constants -------------------------------------------
        # sigmoid(z) = 0.5 + 0.5 * tanh(z/2); the /2 is folded into the
        # i/f/o weight columns on the host, so here we only need the affine.
        lane = jax.lax.broadcasted_iota(jnp.int32, (1, 4 * H), 1)
        is_g = (lane >= 2 * H) & (lane < 3 * H)
        post_a = jnp.broadcast_to(
            jnp.where(is_g, 1.0, 0.5).astype(jnp.float32), (B, 4 * H))
        post_b = jnp.broadcast_to(
            jnp.where(is_g, 0.0, 0.5).astype(jnp.float32), (B, 4 * H))

        # Biases are tiny (one vreg each) -> hoist; fused (b_ih + b_hh), scaled.
        biases = [layer_refs[3 * l + 2][...] for l in range(L)]
        biases_b = [jnp.broadcast_to(biases[l], (B, 4 * H)) for l in range(L)]

        # ---- layer-0 input projection for ALL timesteps: one MXU pass ----
        xproj = (
            jnp.dot(x_ref[...], layer_refs[0][...],
                    preferred_element_type=jnp.float32)
            + biases[0]
        )  # [T*B, 4H]

        # Hidden / cell state as vreg-resident values (zero initial state).
        h = [jnp.zeros((B, H), jnp.float32) for _ in range(L)]
        c = [jnp.zeros((B, H), jnp.float32) for _ in range(L)]

        for t in range(T):  # static unroll; T is small
            x_in = None
            for l in range(L):
                if l == 0:
                    gates = xproj[t * B:(t + 1) * B, :] + jnp.dot(
                        h[0], layer_refs[1][...],
                        preferred_element_type=jnp.float32)
                else:
                    gates = (
                        jnp.dot(x_in, layer_refs[3 * l][...],
                                preferred_element_type=jnp.float32)
                        + jnp.dot(h[l], layer_refs[3 * l + 1][...],
                                  preferred_element_type=jnp.float32)
                        + biases_b[l]
                    )

                # Single full-width tanh pass + hoisted lane affine:
                #   i/f/o lanes -> sigmoid via 0.5 + 0.5*tanh(z/2)
                #   g lanes     -> tanh(z)
                y = jnp.tanh(gates)
                act = y * post_a + post_b
                i_g = act[:, 0 * H:1 * H]
                f_g = act[:, 1 * H:2 * H]
                g_g = act[:, 2 * H:3 * H]
                o_g = act[:, 3 * H:4 * H]

                c_new = f_g * c[l] + i_g * g_g
                h_new = o_g * jnp.tanh(c_new)
                h[l] = h_new
                c[l] = c_new
                x_in = h_new
                # TODO(synk): inter-layer dropout (train-mode only) not modeled; p=0 here.

                # Stash hidden state for the deferred output projection.
                h_all_ref[pl.ds(t * B, B), pl.ds(l * H, H)] = h_new

        # ---- deferred output projection: one matmul + one store ----------
        out_ref[...] = (
            jnp.dot(h_all_ref[...], w_out_ref[...],
                    preferred_element_type=jnp.float32)
            + b_out_ref[...]
        )
        # TODO(synk): torch NaN-check / stop_flag early-exit has no kernel
        # equivalent; stop_flag is returned as a constant False by the wrapper.

    return kernel


def lstm_forecast_pallas(x2d, kernel_layers, w_out_k, b_out_k, T, B):
    """x2d: [T*B, F] (time-major rows); returns output_steps [B, T, C]."""
    TB, F = x2d.shape
    L = len(kernel_layers)
    H = kernel_layers[0][1].shape[0]
    C = b_out_k.shape[1]

    in_specs = [pl.BlockSpec((TB, F), lambda i: (0, 0))]
    flat_args = [x2d]
    for l in range(L):
        w_ihT, w_hhT, b = kernel_layers[l]
        in_specs += [
            pl.BlockSpec(w_ihT.shape, lambda i: (0, 0)),
            pl.BlockSpec(w_hhT.shape, lambda i: (0, 0)),
            pl.BlockSpec(b.shape, lambda i: (0, 0)),
        ]
        flat_args += [w_ihT, w_hhT, b]
    in_specs += [
        pl.BlockSpec(w_out_k.shape, lambda i: (0, 0)),
        pl.BlockSpec(b_out_k.shape, lambda i: (0, 0)),
    ]
    flat_args += [w_out_k, b_out_k]

    # Advisory cost estimate so XLA schedules this tiny custom call sanely.
    flops = 2 * TB * F * 4 * H                      # hoisted layer-0 projection
    flops += T * 2 * B * H * 4 * H                  # layer-0 hidden dot per step
    flops += T * (L - 1) * 2 * B * (2 * H) * 4 * H  # layers >=1 per step
    flops += 2 * TB * (L * H) * C                   # deferred output projection
    transcendentals = T * L * B * (4 * H + H)
    bytes_accessed = int(sum(int(a.size) * 4 for a in flat_args) + TB * C * 4)
    cost = pl.CostEstimate(flops=int(flops),
                           transcendentals=int(transcendentals),
                           bytes_accessed=bytes_accessed)

    out_2d = pl.pallas_call(
        make_lstm_kernel(T, L, B, H, C),
        out_shape=jax.ShapeDtypeStruct((TB, C), jnp.float32),
        grid_spec=pltpu.PrefetchScalarGridSpec(
            num_scalar_prefetch=0,
            grid=(1,),
            in_specs=in_specs,
            out_specs=pl.BlockSpec((TB, C), lambda i: (0, 0)),
            scratch_shapes=[pltpu.VMEM((TB, L * H), jnp.float32)],
        ),
        compiler_params=pltpu.CompilerParams(
            dimension_semantics=("arbitrary",)
        ),
        cost_estimate=cost,
    )(*flat_args)

    # 384-byte wrapper transpose: time-major [T*B, C] -> [B, T, C].
    return jnp.transpose(out_2d.reshape(T, B, C), (1, 0, 2))


# ---------------------------------------------------------------------------
# Parameter construction (deterministic, mimicking nn.LSTM / nn.Linear init)
# ---------------------------------------------------------------------------
def init_params(key, params):
    F = params.enc_in + params.lag - 1
    H = params.lstm_hidden_size
    L = params.lstm_layers
    C = params.c_out + params.lag

    bound_lstm = 1.0 / jnp.sqrt(H)
    # Gate-column scale folding the sigmoid(z)=0.5+0.5*tanh(z/2) pre-scale:
    # 0.5 on i/f/o columns, 1.0 on g columns (torch gate order i, f, g, o).
    lane = jnp.arange(4 * H)
    gate_scale = jnp.where((lane >= 2 * H) & (lane < 3 * H), 1.0, 0.5).astype(
        jnp.float32)

    torch_layers = []    # torch-convention weights (for the pure-JAX reference)
    kernel_layers = []   # kernel-convention: (w_ih.T*s, w_hh.T*s, (b_ih+b_hh)*s)
    for l in range(L):
        in_l = F if l == 0 else H
        key, k1, k2, k3, k4 = jax.random.split(key, 5)
        w_ih = jax.random.uniform(k1, (4 * H, in_l), jnp.float32, -bound_lstm, bound_lstm)
        w_hh = jax.random.uniform(k2, (4 * H, H), jnp.float32, -bound_lstm, bound_lstm)
        b_ih = jax.random.uniform(k3, (4 * H,), jnp.float32, -bound_lstm, bound_lstm)
        b_hh = jax.random.uniform(k4, (4 * H,), jnp.float32, -bound_lstm, bound_lstm)
        # Model.init_lstm: forget-gate bias slice [H:2H] filled with 1.0 (both biases)
        b_ih = b_ih.at[H:2 * H].set(1.0)
        b_hh = b_hh.at[H:2 * H].set(1.0)
        torch_layers.append((w_ih, w_hh, b_ih, b_hh))

        w_ihT_s = w_ih.T * gate_scale[None, :]             # [in_l, 4H]
        w_hhT_s = w_hh.T * gate_scale[None, :]             # [H, 4H]
        b_s = ((b_ih + b_hh) * gate_scale)[None, :]        # [1, 4H]
        kernel_layers.append((w_ihT_s, w_hhT_s, b_s))

    # out_projection: Linear(L*H -> C); torch input features are ordered
    # (h, layer) because of hidden.permute(1, 2, 0).view(B, -1).  The kernel's
    # hidden scratch is ordered (layer, h), so permute the weight columns so
    # the kernel does a plain matmul with no in-kernel shuffle.
    bound_lin = 1.0 / jnp.sqrt(L * H)
    key, k1, k2 = jax.random.split(key, 3)
    w_out = jax.random.uniform(k1, (C, L * H), jnp.float32, -bound_lin, bound_lin)
    b_out = jax.random.uniform(k2, (C,), jnp.float32, -bound_lin, bound_lin)
    # kernel row index l*H + h  <-  torch column index h*L + l
    w_out_k = jnp.transpose(w_out.reshape(C, H, L), (2, 1, 0)).reshape(L * H, C)
    b_out_k = b_out[None, :]

    return torch_layers, (w_out, b_out), kernel_layers, w_out_k, b_out_k


# ---------------------------------------------------------------------------
# Pure-JAX reference (mirrors the PyTorch probability_forecast training path)
# ---------------------------------------------------------------------------
def reference_forecast(x_tbf, torch_layers, w_out, b_out, L, H):
    T, B, _ = x_tbf.shape
    h = jnp.zeros((L, B, H), jnp.float32)
    c = jnp.zeros((L, B, H), jnp.float32)
    outs = []
    for t in range(T):
        inp = x_tbf[t]
        new_h, new_c = [], []
        for l in range(L):
            w_ih, w_hh, b_ih, b_hh = torch_layers[l]
            gates = inp @ w_ih.T + h[l] @ w_hh.T + b_ih + b_hh
            i_g = jax.nn.sigmoid(gates[:, :H])
            f_g = jax.nn.sigmoid(gates[:, H:2 * H])
            g_g = jnp.tanh(gates[:, 2 * H:3 * H])
            o_g = jax.nn.sigmoid(gates[:, 3 * H:4 * H])
            cc = f_g * c[l] + i_g * g_g
            hh = o_g * jnp.tanh(cc)
            new_h.append(hh)
            new_c.append(cc)
            inp = hh
        h = jnp.stack(new_h)
        c = jnp.stack(new_c)
        hidden_permute = jnp.transpose(h, (1, 2, 0)).reshape(B, H * L)
        outs.append(hidden_permute @ w_out.T + b_out)
    return jnp.stack(outs, axis=1)  # [B, T, C]


def model_forward(x_enc, y_enc, params, kernel_layers, w_out_k, b_out_k):
    """Mirrors Model.forward: returns ((output_steps, labels_batch), stop_flag)."""
    batch = jnp.concatenate((x_enc, y_enc[:, -params.pred_len:, :]), axis=1)
    train_batch = batch[:, :, :-1]                 # [B, train_window, F]
    labels_batch = batch                           # [B, train_window, enc_in+lag]
    B, T, F = train_batch.shape
    # time-major rows (row = t*B + b), compact 2-D slab for the kernel
    x2d = jnp.transpose(train_batch, (1, 0, 2)).reshape(T * B, F)
    output_steps = lstm_forecast_pallas(x2d, kernel_layers, w_out_k, b_out_k, T, B)
    # TODO(synk): torch NaN-check / stop_flag early-exit not modeled; constant False.
    return (output_steps, labels_batch), False


if __name__ == "__main__":
    params = SimpleNamespace(
        task_name="short_term_forecast",
        enc_in=4,
        lag=3,
        lstm_hidden_size=32,
        lstm_layers=2,
        dropout=0.0,
        c_out=1,
        seq_len=8,
        pred_len=4,
    )
    B = 2
    D = params.enc_in + params.lag            # raw feature width of x_enc / y_enc
    L, H = params.lstm_layers, params.lstm_hidden_size
    C = params.c_out + params.lag
    T = params.seq_len + params.pred_len      # train_window

    key = jax.random.PRNGKey(0)
    key, kx, ky = jax.random.split(key, 3)
    x_enc = jax.random.normal(kx, (B, params.seq_len, D), jnp.float32)
    y_enc = jax.random.normal(ky, (B, params.seq_len, D), jnp.float32)
    # unused by this model's forward, present for signature parity:
    x_mark_enc = x_dec = x_mark_dec = None

    (torch_layers, (w_out, b_out),
     kernel_layers, w_out_k, b_out_k) = init_params(key, params)

    (output_steps, labels_batch), stop_flag = model_forward(
        x_enc, y_enc, params, kernel_layers, w_out_k, b_out_k
    )
    output_steps = jax.block_until_ready(output_steps)

    assert output_steps.shape == (B, T, C), output_steps.shape
    assert labels_batch.shape == (B, T, D), labels_batch.shape

    # Correctness check against a pure-JAX reference of the torch semantics.
    x_tbf = jnp.transpose(
        jnp.concatenate((x_enc, y_enc[:, -params.pred_len:, :]), axis=1)[:, :, :-1],
        (1, 0, 2),
    )
    ref = reference_forecast(x_tbf, torch_layers, w_out, b_out, L, H)
    err = float(jnp.max(jnp.abs(output_steps - ref)))
    assert err < 1e-3, f"max abs error {err}"

    print("KERNEL_OK")
</pallas_src>

<mosaic_0001>
module attributes {stable_mosaic.version = 11 : i64} {
  func.func @kernel(%arg0: i32, %arg1: memref<24x6xf32, #tpu.memory_space<vmem>>, %arg2: memref<6x128xf32, #tpu.memory_space<vmem>>, %arg3: memref<32x128xf32, #tpu.memory_space<vmem>>, %arg4: memref<1x128xf32, #tpu.memory_space<vmem>>, %arg5: memref<32x128xf32, #tpu.memory_space<vmem>>, %arg6: memref<32x128xf32, #tpu.memory_space<vmem>>, %arg7: memref<1x128xf32, #tpu.memory_space<vmem>>, %arg8: memref<64x4xf32, #tpu.memory_space<vmem>>, %arg9: memref<1x4xf32, #tpu.memory_space<vmem>>, %arg10: memref<24x4xf32, #tpu.memory_space<vmem>>, %arg11: memref<24x64xf32, #tpu.memory_space<vmem>>) attributes {dimension_semantics = [#tpu.dimension_semantics<arbitrary>], iteration_bounds = array<i64: 1>, scalar_prefetch = 0 : i64, scratch_operands = 1 : i64, tpu.core_type = #tpu.core_type<tc>, window_params = [{pipeline_mode = #tpu.pipeline_mode<synchronous>, transform_indices = @transform_0, window_bounds = array<i64: 24, 6>}, {pipeline_mode = #tpu.pipeline_mode<synchronous>, transform_indices = @transform_1, window_bounds = array<i64: 6, 128>}, {pipeline_mode = #tpu.pipeline_mode<synchronous>, transform_indices = @transform_2, window_bounds = array<i64: 32, 128>}, {pipeline_mode = #tpu.pipeline_mode<synchronous>, transform_indices = @transform_3, window_bounds = array<i64: 1, 128>}, {pipeline_mode = #tpu.pipeline_mode<synchronous>, transform_indices = @transform_4, window_bounds = array<i64: 32, 128>}, {pipeline_mode = #tpu.pipeline_mode<synchronous>, transform_indices = @transform_5, window_bounds = array<i64: 32, 128>}, {pipeline_mode = #tpu.pipeline_mode<synchronous>, transform_indices = @transform_6, window_bounds = array<i64: 1, 128>}, {pipeline_mode = #tpu.pipeline_mode<synchronous>, transform_indices = @transform_7, window_bounds = array<i64: 64, 4>}, {pipeline_mode = #tpu.pipeline_mode<synchronous>, transform_indices = @transform_8, window_bounds = array<i64: 1, 4>}, {pipeline_mode = #tpu.pipeline_mode<synchronous>, transform_indices = @transform_9, window_bounds = array<i64: 24, 4>}]} {
    %0 = tpu.iota {dimensions = array<i32: 1>} : vector<1x128xi32>
    %c64_i32 = arith.constant 64 : i32
    %1 = vector.broadcast %c64_i32 : i32 to vector<1x128xi32>
    %2 = arith.cmpi sge, %0, %1 : vector<1x128xi32>
    %c96_i32 = arith.constant 96 : i32
    %3 = vector.broadcast %c96_i32 : i32 to vector<1x128xi32>
    %4 = arith.cmpi slt, %0, %3 : vector<1x128xi32>
    %5 = arith.andi %2, %4 : vector<1x128xi1>
    %cst = arith.constant 1.000000e+00 : f32
    %cst_0 = arith.constant 5.000000e-01 : f32
    %6 = vector.broadcast %cst : f32 to vector<1x128xf32>
    %7 = vector.broadcast %cst_0 : f32 to vector<1x128xf32>
    %8 = arith.select %5, %6, %7 : vector<1x128xi1>, vector<1x128xf32>
    %9 = vector.shape_cast %8 : vector<1x128xf32> to vector<1x128xf32>
    %10 = vector.broadcast %9 : vector<1x128xf32> to vector<2x128xf32>
    %cst_1 = arith.constant 0.000000e+00 : f32
    %cst_2 = arith.constant 5.000000e-01 : f32
    %11 = vector.broadcast %cst_1 : f32 to vector<1x128xf32>
    %12 = vector.broadcast %cst_2 : f32 to vector<1x128xf32>
    %13 = arith.select %5, %11, %12 : vector<1x128xi1>, vector<1x128xf32>
    %14 = vector.shape_cast %13 : vector<1x128xf32> to vector<1x128xf32>
    %15 = vector.broadcast %14 : vector<1x128xf32> to vector<2x128xf32>
    %c0 = arith.constant 0 : index
    %c0_3 = arith.constant 0 : index
    %16 = vector.load %arg4[%c0, %c0_3] : memref<1x128xf32, #tpu.memory_space<vmem>>, vector<1x128xf32>
    %c0_4 = arith.constant 0 : index
    %c0_5 = arith.constant 0 : index
    %17 = vector.load %arg7[%c0_4, %c0_5] : memref<1x128xf32, #tpu.memory_space<vmem>>, vector<1x128xf32>
    %18 = vector.shape_cast %17 : vector<1x128xf32> to vector<1x128xf32>
    %19 = vector.broadcast %18 : vector<1x128xf32> to vector<2x128xf32>
    %c0_6 = arith.constant 0 : index
    %c0_7 = arith.constant 0 : index
    %20 = vector.load %arg1[%c0_6, %c0_7] : memref<24x6xf32, #tpu.memory_space<vmem>>, vector<24x6xf32>
    %c0_8 = arith.constant 0 : index
    %c0_9 = arith.constant 0 : index
    %21 = vector.load %arg2[%c0_8, %c0_9] : memref<6x128xf32, #tpu.memory_space<vmem>>, vector<6x128xf32>
    %cst_10 = arith.constant dense<0.000000e+00> : vector<24x128xf32>
    %22 = tpu.matmul %20, %21, %cst_10 {dimension_numbers = #tpu.dot_dimension_numbers<[1], [0], [0], [1], [0, 0, 1, 1], [], []>} : vector<24x6xf32>, vector<6x128xf32>, vector<24x128xf32> -> vector<24x128xf32>
    %23 = vector.broadcast %16 : vector<1x128xf32> to vector<24x128xf32>
    %24 = arith.addf %22, %23 : vector<24x128xf32>
    %cst_11 = arith.constant 0.000000e+00 : f32
    %25 = vector.broadcast %cst_11 : f32 to vector<2x32xf32>
    %cst_12 = arith.constant 0.000000e+00 : f32
    %26 = vector.broadcast %cst_12 : f32 to vector<2x32xf32>
    %cst_13 = arith.constant 0.000000e+00 : f32
    %27 = vector.broadcast %cst_13 : f32 to vector<2x32xf32>
    %cst_14 = arith.constant 0.000000e+00 : f32
    %28 = vector.broadcast %cst_14 : f32 to vector<2x32xf32>
    %29 = vector.extract_strided_slice %24 {offsets = [0, 0], sizes = [2, 128], strides = [1, 1]} : vector<24x128xf32> to vector<2x128xf32>
    %c0_15 = arith.constant 0 : index
    %c0_16 = arith.constant 0 : index
    %30 = vector.load %arg3[%c0_15, %c0_16] : memref<32x128xf32, #tpu.memory_space<vmem>>, vector<32x128xf32>
    %cst_17 = arith.constant dense<0.000000e+00> : vector<2x128xf32>
    %31 = tpu.matmul %25, %30, %cst_17 {dimension_numbers = #tpu.dot_dimension_numbers<[1], [0], [0], [1], [0, 0, 1, 1], [], []>} : vector<2x32xf32>, vector<32x128xf32>, vector<2x128xf32> -> vector<2x128xf32>
    %32 = arith.addf %29, %31 : vector<2x128xf32>
    %33 = math.tanh %32 : vector<2x128xf32>
    %34 = arith.mulf %33, %10 : vector<2x128xf32>
    %35 = arith.addf %34, %15 : vector<2x128xf32>
    %36 = vector.extract_strided_slice %35 {offsets = [0, 0], sizes = [2, 32], strides = [1, 1]} : vector<2x128xf32> to vector<2x32xf32>
    %37 = vector.extract_strided_slice %35 {offsets = [0, 32], sizes = [2, 32], strides = [1, 1]} : vector<2x128xf32> to vector<2x32xf32>
    %38 = vector.extract_strided_slice %35 {offsets = [0, 64], sizes = [2, 32], strides = [1, 1]} : vector<2x128xf32> to vector<2x32xf32>
    %39 = vector.extract_strided_slice %35 {offsets = [0, 96], sizes = [2, 32], strides = [1, 1]} : vector<2x128xf32> to vector<2x32xf32>
    %40 = arith.mulf %37, %27 : vector<2x32xf32>
    %41 = arith.mulf %36, %38 : vector<2x32xf32>
    %42 = arith.addf %40, %41 : vector<2x32xf32>
    %43 = math.tanh %42 : vector<2x32xf32>
    %44 = arith.mulf %39, %43 : vector<2x32xf32>
    %c0_18 = arith.constant 0 : index
    %c0_19 = arith.constant 0 : index
    %45 = vector.load %arg11[%c0_18, %c0_19] : memref<24x64xf32, #tpu.memory_space<vmem>>, vector<2x32xf32>
    tpu.vector_store %arg11[%c0_18, %c0_19], %44 {strides = array<i32>} : memref<24x64xf32, #tpu.memory_space<vmem>>, vector<2x32xf32>,
    %c0_20 = arith.constant 0 : index
    %c0_21 = arith.constant 0 : index
    %46 = vector.load %arg5[%c0_20, %c0_21] : memref<32x128xf32, #tpu.memory_space<vmem>>, vector<32x128xf32>
    %cst_22 = arith.constant dense<0.000000e+00> : vector<2x128xf32>
    %47 = tpu.matmul %44, %46, %cst_22 {dimension_numbers = #tpu.dot_dimension_numbers<[1], [0], [0], [1], [0, 0, 1, 1], [], []>} : vector<2x32xf32>, vector<32x128xf32>, vector<2x128xf32> -> vector<2x128xf32>
    %c0_23 = arith.constant 0 : index
    %c0_24 = arith.constant 0 : index
    %48 = vector.load %arg6[%c0_23, %c0_24] : memref<32x128xf32, #tpu.memory_space<vmem>>, vector<32x128xf32>
    %cst_25 = arith.constant dense<0.000000e+00> : vector<2x128xf32>
    %49 = tpu.matmul %26, %48, %cst_25 {dimension_numbers = #tpu.dot_dimension_numbers<[1], [0], [0], [1], [0, 0, 1, 1], [], []>} : vector<2x32xf32>, vector<32x128xf32>, vector<2x128xf32> -> vector<2x128xf32>
    %50 = arith.addf %47, %49 : vector<2x128xf32>
    %51 = arith.addf %50, %19 : vector<2x128xf32>
    %52 = math.tanh %51 : vector<2x128xf32>
    %53 = arith.mulf %52, %10 : vector<2x128xf32>
    %54 = arith.addf %53, %15 : vector<2x128xf32>
    %55 = vector.extract_strided_slice %54 {offsets = [0, 0], sizes = [2, 32], strides = [1, 1]} : vector<2x128xf32> to vector<2x32xf32>
    %56 = vector.extract_strided_slice %54 {offsets = [0, 32], sizes = [2, 32], strides = [1, 1]} : vector<2x128xf32> to vector<2x32xf32>
    %57 = vector.extract_strided_slice %54 {offsets = [0, 64], sizes = [2, 32], strides = [1, 1]} : vector<2x128xf32> to vector<2x32xf32>
    %58 = vector.extract_strided_slice %54 {offsets = [0, 96], sizes = [2, 32], strides = [1, 1]} : vector<2x128xf32> to vector<2x32xf32>
    %59 = arith.mulf %56, %28 : vector<2x32xf32>
    %60 = arith.mulf %55, %57 : vector<2x32xf32>
    %61 = arith.addf %59, %60 : vector<2x32xf32>
    %62 = math.tanh %61 : vector<2x32xf32>
    %63 = arith.mulf %58, %62 : vector<2x32xf32>
    %c0_26 = arith.constant 0 : index
    %c32 = arith.constant 32 : index
    %64 = vector.load %arg11[%c0_26, %c32] : memref<24x64xf32, #tpu.memory_space<vmem>>, vector<2x32xf32>
    tpu.vector_store %arg11[%c0_26, %c32], %63 {strides = array<i32>} : memref<24x64xf32, #tpu.memory_space<vmem>>, vector<2x32xf32>,
    %65 = vector.extract_strided_slice %24 {offsets = [2, 0], sizes = [2, 128], strides = [1, 1]} : vector<24x128xf32> to vector<2x128xf32>
    %c0_27 = arith.constant 0 : index
    %c0_28 = arith.constant 0 : index
    %66 = vector.load %arg3[%c0_27, %c0_28] : memref<32x128xf32, #tpu.memory_space<vmem>>, vector<32x128xf32>
    %cst_29 = arith.constant dense<0.000000e+00> : vector<2x128xf32>
    %67 = tpu.matmul %44, %66, %cst_29 {dimension_numbers = #tpu.dot_dimension_numbers<[1], [0], [0], [1], [0, 0, 1, 1], [], []>} : vector<2x32xf32>, vector<32x128xf32>, vector<2x128xf32> -> vector<2x128xf32>
    %68 = arith.addf %65, %67 : vector<2x128xf32>
    %69 = math.tanh %68 : vector<2x128xf32>
    %70 = arith.mulf %69, %10 : vector<2x128xf32>
    %71 = arith.addf %70, %15 : vector<2x128xf32>
    %72 = vector.extract_strided_slice %71 {offsets = [0, 0], sizes = [2, 32], strides = [1, 1]} : vector<2x128xf32> to vector<2x32xf32>
    %73 = vector.extract_strided_slice %71 {offsets = [0, 32], sizes = [2, 32], strides = [1, 1]} : vector<2x128xf32> to vector<2x32xf32>
    %74 = vector.extract_strided_slice %71 {offsets = [0, 64], sizes = [2, 32], strides = [1, 1]} : vector<2x128xf32> to vector<2x32xf32>
    %75 = vector.extract_strided_slice %71 {offsets = [0, 96], sizes = [2, 32], strides = [1, 1]} : vector<2x128xf32> to vector<2x32xf32>
    %76 = arith.mulf %73, %42 : vector<2x32xf32>
    %77 = arith.mulf %72, %74 : vector<2x32xf32>
    %78 = arith.addf %76, %77 : vector<2x32xf32>
    %79 = math.tanh %78 : vector<2x32xf32>
    %80 = arith.mulf %75, %79 : vector<2x32xf32>
    %c2 = arith.constant 2 : index
    %c0_30 = arith.constant 0 : index
    %81 = vector.load %arg11[%c2, %c0_30] : memref<24x64xf32, #tpu.memory_space<vmem>>, vector<2x32xf32>
    tpu.vector_store %arg11[%c2, %c0_30], %80 {strides = array<i32>} : memref<24x64xf32, #tpu.memory_space<vmem>>, vector<2x32xf32>,
    %c0_31 = arith.constant 0 : index
    %c0_32 = arith.constant 0 : index
    %82 = vector.load %arg5[%c0_31, %c0_32] : memref<32x128xf32, #tpu.memory_space<vmem>>, vector<32x128xf32>
    %cst_33 = arith.constant dense<0.000000e+00> : vector<2x128xf32>
    %83 = tpu.matmul %80, %82, %cst_33 {dimension_numbers = #tpu.dot_dimension_numbers<[1], [0], [0], [1], [0, 0, 1, 1], [], []>} : vector<2x32xf32>, vector<32x128xf32>, vector<2x128xf32> -> vector<2x128xf32>
    %c0_34 = arith.constant 0 : index
    %c0_35 = arith.constant 0 : index
    %84 = vector.load %arg6[%c0_34, %c0_35] : memref<32x128xf32, #tpu.memory_space<vmem>>, vector<32x128xf32>
    %cst_36 = arith.constant dense<0.000000e+00> : vector<2x128xf32>
    %85 = tpu.matmul %63, %84, %cst_36 {dimension_numbers = #tpu.dot_dimension_numbers<[1], [0], [0], [1], [0, 0, 1, 1], [], []>} : vector<2x32xf32>, vector<32x128xf32>, vector<2x128xf32> -> vector<2x128xf32>
    %86 = arith.addf %83, %85 : vector<2x128xf32>
    %87 = arith.addf %86, %19 : vector<2x128xf32>
    %88 = math.tanh %87 : vector<2x128xf32>
    %89 = arith.mulf %88, %10 : vector<2x128xf32>
    %90 = arith.addf %89, %15 : vector<2x128xf32>
    %91 = vector.extract_strided_slice %90 {offsets = [0, 0], sizes = [2, 32], strides = [1, 1]} : vector<2x128xf32> to vector<2x32xf32>
    %92 = vector.extract_strided_slice %90 {offsets = [0, 32], sizes = [2, 32], strides = [1, 1]} : vector<2x128xf32> to vector<2x32xf32>
    %93 = vector.extract_strided_slice %90 {offsets = [0, 64], sizes = [2, 32], strides = [1, 1]} : vector<2x128xf32> to vector<2x32xf32>
    %94 = vector.extract_strided_slice %90 {offsets = [0, 96], sizes = [2, 32], strides = [1, 1]} : vector<2x128xf32> to vector<2x32xf32>
    %95 = arith.mulf %92, %61 : vector<2x32xf32>
    %96 = arith.mulf %91, %93 : vector<2x32xf32>
    %97 = arith.addf %95, %96 : vector<2x32xf32>
    %98 = math.tanh %97 : vector<2x32xf32>
    %99 = arith.mulf %94, %98 : vector<2x32xf32>
    %c2_37 = arith.constant 2 : index
    %c32_38 = arith.constant 32 : index
    %100 = vector.load %arg11[%c2_37, %c32_38] : memref<24x64xf32, #tpu.memory_space<vmem>>, vector<2x32xf32>
    tpu.vector_store %arg11[%c2_37, %c32_38], %99 {strides = array<i32>} : memref<24x64xf32, #tpu.memory_space<vmem>>, vector<2x32xf32>,
    %101 = vector.extract_strided_slice %24 {offsets = [4, 0], sizes = [2, 128], strides = [1, 1]} : vector<24x128xf32> to vector<2x128xf32>
    %c0_39 = arith.constant 0 : index
    %c0_40 = arith.constant 0 : index
    %102 = vector.load %arg3[%c0_39, %c0_40] : memref<32x128xf32, #tpu.memory_space<vmem>>, vector<32x128xf32>
    %cst_41 = arith.constant dense<0.000000e+00> : vector<2x128xf32>
    %103 = tpu.matmul %80, %102, %cst_41 {dimension_numbers = #tpu.dot_dimension_numbers<[1], [0], [0], [1], [0, 0, 1, 1], [], []>} : vector<2x32xf32>, vector<32x128xf32>, vector<2x128xf32> -> vector<2x128xf32>
    %104 = arith.addf %101, %103 : vector<2x128xf32>
    %105 = math.tanh %104 : vector<2x128xf32>
    %106 = arith.mulf %105, %10 : vector<2x128xf32>
    %107 = arith.addf %106, %15 : vector<2x128xf32>
    %108 = vector.extract_strided_slice %107 {offsets = [0, 0], sizes = [2, 32], strides = [1, 1]} : vector<2x128xf32> to vector<2x32xf32>
    %109 = vector.extract_strided_slice %107 {offsets = [0, 32], sizes = [2, 32], strides = [1, 1]} : vector<2x128xf32> to vector<2x32xf32>
    %110 = vector.extract_strided_slice %107 {offsets = [0, 64], sizes = [2, 32], strides = [1, 1]} : vector<2x128xf32> to vector<2x32xf32>
    %111 = vector.extract_strided_slice %107 {offsets = [0, 96], sizes = [2, 32], strides = [1, 1]} : vector<2x128xf32> to vector<2x32xf32>
    %112 = arith.mulf %109, %78 : vector<2x32xf32>
    %113 = arith.mulf %108, %110 : vector<2x32xf32>
    %114 = arith.addf %112, %113 : vector<2x32xf32>
    %115 = math.tanh %114 : vector<2x32xf32>
    %116 = arith.mulf %111, %115 : vector<2x32xf32>
    %c4 = arith.constant 4 : index
    %c0_42 = arith.constant 0 : index
    %117 = vector.load %arg11[%c4, %c0_42] : memref<24x64xf32, #tpu.memory_space<vmem>>, vector<2x32xf32>
    tpu.vector_store %arg11[%c4, %c0_42], %116 {strides = array<i32>} : memref<24x64xf32, #tpu.memory_space<vmem>>, vector<2x32xf32>,
    %c0_43 = arith.constant 0 : index
    %c0_44 = arith.constant 0 : index
    %118 = vector.load %arg5[%c0_43, %c0_44] : memref<32x128xf32, #tpu.memory_space<vmem>>, vector<32x128xf32>
    %cst_45 = arith.constant dense<0.000000e+00> : vector<2x128xf32>
    %119 = tpu.matmul %116, %118, %cst_45 {dimension_numbers = #tpu.dot_dimension_numbers<[1], [0], [0], [1], [0, 0, 1, 1], [], []>} : vector<2x32xf32>, vector<32x128xf32>, vector<2x128xf32> -> vector<2x128xf32>
    %c0_46 = arith.constant 0 : index
    %c0_47 = arith.constant 0 : index
    %120 = vector.load %arg6[%c0_46, %c0_47] : memref<32x128xf32, #tpu.memory_space<vmem>>, vector<32x128xf32>
    %cst_48 = arith.constant dense<0.000000e+00> : vector<2x128xf32>
    %121 = tpu.matmul %99, %120, %cst_48 {dimension_numbers = #tpu.dot_dimension_numbers<[1], [0], [0], [1], [0, 0, 1, 1], [], []>} : vector<2x32xf32>, vector<32x128xf32>, vector<2x128xf32> -> vector<2x128xf32>
    %122 = arith.addf %119, %121 : vector<2x128xf32>
    %123 = arith.addf %122, %19 : vector<2x128xf32>
    %124 = math.tanh %123 : vector<2x128xf32>
    %125 = arith.mulf %124, %10 : vector<2x128xf32>
    %126 = arith.addf %125, %15 : vector<2x128xf32>
    %127 = vector.extract_strided_slice %126 {offsets = [0, 0], sizes = [2, 32], strides = [1, 1]} : vector<2x128xf32> to vector<2x32xf32>
    %128 = vector.extract_strided_slice %126 {offsets = [0, 32], sizes = [2, 32], strides = [1, 1]} : vector<2x128xf32> to vector<2x32xf32>
    %129 = vector.extract_strided_slice %126 {offsets = [0, 64], sizes = [2, 32], strides = [1, 1]} : vector<2x128xf32> to vector<2x32xf32>
    %130 = vector.extract_strided_slice %126 {offsets = [0, 96], sizes = [2, 32], strides = [1, 1]} : vector<2x128xf32> to vector<2x32xf32>
    %131 = arith.mulf %128, %97 : vector<2x32xf32>
    %132 = arith.mulf %127, %129 : vector<2x32xf32>
    %133 = arith.addf %131, %132 : vector<2x32xf32>
    %134 = math.tanh %133 : vector<2x32xf32>
    %135 = arith.mulf %130, %134 : vector<2x32xf32>
    %c4_49 = arith.constant 4 : index
    %c32_50 = arith.constant 32 : index
    %136 = vector.load %arg11[%c4_49, %c32_50] : memref<24x64xf32, #tpu.memory_space<vmem>>, vector<2x32xf32>
    tpu.vector_store %arg11[%c4_49, %c32_50], %135 {strides = array<i32>} : memref<24x64xf32, #tpu.memory_space<vmem>>, vector<2x32xf32>,
    %137 = vector.extract_strided_slice %24 {offsets = [6, 0], sizes = [2, 128], strides = [1, 1]} : vector<24x128xf32> to vector<2x128xf32>
    %c0_51 = arith.constant 0 : index
    %c0_52 = arith.constant 0 : index
    %138 = vector.load %arg3[%c0_51, %c0_52] : memref<32x128xf32, #tpu.memory_space<vmem>>, vector<32x128xf32>
    %cst_53 = arith.constant dense<0.000000e+00> : vector<2x128xf32>
    %139 = tpu.matmul %116, %138, %cst_53 {dimension_numbers = #tpu.dot_dimension_numbers<[1], [0], [0], [1], [0, 0, 1, 1], [], []>} : vector<2x32xf32>, vector<32x128xf32>, vector<2x128xf32> -> vector<2x128xf32>
    %140 = arith.addf %137, %139 : vector<2x128xf32>
    %141 = math.tanh %140 : vector<2x128xf32>
    %142 = arith.mulf %141, %10 : vector<2x128xf32>
    %143 = arith.addf %142, %15 : vector<2x128xf32>
    %144 = vector.extract_strided_slice %143 {offsets = [0, 0], sizes = [2, 32], strides = [1, 1]} : vector<2x128xf32> to vector<2x32xf32>
    %145 = vector.extract_strided_slice %143 {offsets = [0, 32], sizes = [2, 32], strides = [1, 1]} : vector<2x128xf32> to vector<2x32xf32>
    %146 = vector.extract_strided_slice %143 {offsets = [0, 64], sizes = [2, 32], strides = [1, 1]} : vector<2x128xf32> to vector<2x32xf32>
    %147 = vector.extract_strided_slice %143 {offsets = [0, 96], sizes = [2, 32], strides = [1, 1]} : vector<2x128xf32> to vector<2x32xf32>
    %148 = arith.mulf %145, %114 : vector<2x32xf32>
    %149 = arith.mulf %144, %146 : vector<2x32xf32>
    %150 = arith.addf %148, %149 : vector<2x32xf32>
    %151 = math.tanh %150 : vector<2x32xf32>
    %152 = arith.mulf %147, %151 : vector<2x32xf32>
    %c6 = arith.constant 6 : index
    %c0_54 = arith.constant 0 : index
    %153 = vector.load %arg11[%c6, %c0_54] : memref<24x64xf32, #tpu.memory_space<vmem>>, vector<2x32xf32>
    tpu.vector_store %arg11[%c6, %c0_54], %152 {strides = array<i32>} : memref<24x64xf32, #tpu.memory_space<vmem>>, vector<2x32xf32>,
    %c0_55 = arith.constant 0 : index
    %c0_56 = arith.constant 0 : index
    %154 = vector.load %arg5[%c0_55, %c0_56] : memref<32x128xf32, #tpu.memory_space<vmem>>, vector<32x128xf32>
    %cst_57 = arith.constant dense<0.000000e+00> : vector<2x128xf32>
    %155 = tpu.matmul %152, %154, %cst_57 {dimension_numbers = #tpu.dot_dimension_numbers<[1], [0], [0], [1], [0, 0, 1, 1], [], []>} : vector<2x32xf32>, vector<32x128xf32>, vector<2x128xf32> -> vector<2x128xf32>
    %c0_58 = arith.constant 0 : index
    %c0_59 = arith.constant 0 : index
    %156 = vector.load %arg6[%c0_58, %c0_59] : memref<32x128xf32, #tpu.memory_space<vmem>>, vector<32x128xf32>
    %cst_60 = arith.constant dense<0.000000e+00> : vector<2x128xf32>
    %157 = tpu.matmul %135, %156, %cst_60 {dimension_numbers = #tpu.dot_dimension_numbers<[1], [0], [0], [1], [0, 0, 1, 1], [], []>} : vector<2x32xf32>, vector<32x128xf32>, vector<2x128xf32> -> vector<2x128xf32>
    %158 = arith.addf %155, %157 : vector<2x128xf32>
    %159 = arith.addf %158, %19 : vector<2x128xf32>
    %160 = math.tanh %159 : vector<2x128xf32>
    %161 = arith.mulf %160, %10 : vector<2x128xf32>
    %162 = arith.addf %161, %15 : vector<2x128xf32>
    %163 = vector.extract_strided_slice %162 {offsets = [0, 0], sizes = [2, 32], strides = [1, 1]} : vector<2x128xf32> to vector<2x32xf32>
    %164 = vector.extract_strided_slice %162 {offsets = [0, 32], sizes = [2, 32], strides = [1, 1]} : vector<2x128xf32> to vector<2x32xf32>
    %165 = vector.extract_strided_slice %162 {offsets = [0, 64], sizes = [2, 32], strides = [1, 1]} : vector<2x128xf32> to vector<2x32xf32>
    %166 = vector.extract_strided_slice %162 {offsets = [0, 96], sizes = [2, 32], strides = [1, 1]} : vector<2x128xf32> to vector<2x32xf32>
    %167 = arith.mulf %164, %133 : vector<2x32xf32>
    %168 = arith.mulf %163, %165 : vector<2x32xf32>
    %169 = arith.addf %167, %168 : vector<2x32xf32>
    %170 = math.tanh %169 : vector<2x32xf32>
    %171 = arith.mulf %166, %170 : vector<2x32xf32>
    %c6_61 = arith.constant 6 : index
    %c32_62 = arith.constant 32 : index
    %172 = vector.load %arg11[%c6_61, %c32_62] : memref<24x64xf32, #tpu.memory_space<vmem>>, vector<2x32xf32>
    tpu.vector_store %arg11[%c6_61, %c32_62], %171 {strides = array<i32>} : memref<24x64xf32, #tpu.memory_space<vmem>>, vector<2x32xf32>,
    %173 = vector.extract_strided_slice %24 {offsets = [8, 0], sizes = [2, 128], strides = [1, 1]} : vector<24x128xf32> to vector<2x128xf32>
    %c0_63 = arith.constant 0 : index
    %c0_64 = arith.constant 0 : index
    %174 = vector.load %arg3[%c0_63, %c0_64] : memref<32x128xf32, #tpu.memory_space<vmem>>, vector<32x128xf32>
    %cst_65 = arith.constant dense<0.000000e+00> : vector<2x128xf32>
    %175 = tpu.matmul %152, %174, %cst_65 {dimension_numbers = #tpu.dot_dimension_numbers<[1], [0], [0], [1], [0, 0, 1, 1], [], []>} : vector<2x32xf32>, vector<32x128xf32>, vector<2x128xf32> -> vector<2x128xf32>
    %176 = arith.addf %173, %175 : vector<2x128xf32>
    %177 = math.tanh %176 : vector<2x128xf32>
    %178 = arith.mulf %177, %10 : vector<2x128xf32>
    %179 = arith.addf %178, %15 : vector<2x128xf32>
    %180 = vector.extract_strided_slice %179 {offsets = [0, 0], sizes = [2, 32], strides = [1, 1]} : vector<2x128xf32> to vector<2x32xf32>
    %181 = vector.extract_strided_slice %179 {offsets = [0, 32], sizes = [2, 32], strides = [1, 1]} : vector<2x128xf32> to vector<2x32xf32>
    %182 = vector.extract_strided_slice %179 {offsets = [0, 64], sizes = [2, 32], strides = [1, 1]} : vector<2x128xf32> to vector<2x32xf32>
    %183 = vector.extract_strided_slice %179 {offsets = [0, 96], sizes = [2, 32], strides = [1, 1]} : vector<2x128xf32> to vector<2x32xf32>
    %184 = arith.mulf %181, %150 : vector<2x32xf32>
    %185 = arith.mulf %180, %182 : vector<2x32xf32>
    %186 = arith.addf %184, %185 : vector<2x32xf32>
    %187 = math.tanh %186 : vector<2x32xf32>
    %188 = arith.mulf %183, %187 : vector<2x32xf32>
    %c8 = arith.constant 8 : index
    %c0_66 = arith.constant 0 : index
    %189 = vector.load %arg11[%c8, %c0_66] : memref<24x64xf32, #tpu.memory_space<vmem>>, vector<2x32xf32>
    tpu.vector_store %arg11[%c8, %c0_66], %188 {strides = array<i32>} : memref<24x64xf32, #tpu.memory_space<vmem>>, vector<2x32xf32>,
    %c0_67 = arith.constant 0 : index
    %c0_68 = arith.constant 0 : index
    %190 = vector.load %arg5[%c0_67, %c0_68] : memref<32x128xf32, #tpu.memory_space<vmem>>, vector<32x128xf32>
    %cst_69 = arith.constant dense<0.000000e+00> : vector<2x128xf32>
    %191 = tpu.matmul %188, %190, %cst_69 {dimension_numbers = #tpu.dot_dimension_numbers<[1], [0], [0], [1], [0, 0, 1, 1], [], []>} : vector<2x32xf32>, vector<32x128xf32>, vector<2x128xf32> -> vector<2x128xf32>
    %c0_70 = arith.constant 0 : index
    %c0_71 = arith.constant 0 : index
    %192 = vector.load %arg6[%c0_70, %c0_71] : memref<32x128xf32, #tpu.memory_space<vmem>>, vector<32x128xf32>
    %cst_72 = arith.constant dense<0.000000e+00> : vector<2x128xf32>
    %193 = tpu.matmul %171, %192, %cst_72 {dimension_numbers = #tpu.dot_dimension_numbers<[1], [0], [0], [1], [0, 0, 1, 1], [], []>} : vector<2x32xf32>, vector<32x128xf32>, vector<2x128xf32> -> vector<2x128xf32>
    %194 = arith.addf %191, %193 : vector<2x128xf32>
    %195 = arith.addf %194, %19 : vector<2x128xf32>
    %196 = math.tanh %195 : vector<2x128xf32>
    %197 = arith.mulf %196, %10 : vector<2x128xf32>
    %198 = arith.addf %197, %15 : vector<2x128xf32>
    %199 = vector.extract_strided_slice %198 {offsets = [0, 0], sizes = [2, 32], strides = [1, 1]} : vector<2x128xf32> to vector<2x32xf32>
    %200 = vector.extract_strided_slice %198 {offsets = [0, 32], sizes = [2, 32], strides = [1, 1]} : vector<2x128xf32> to vector<2x32xf32>
    %201 = vector.extract_strided_slice %198 {offsets = [0, 64], sizes = [2, 32], strides = [1, 1]} : vector<2x128xf32> to vector<2x32xf32>
    %202 = vector.extract_strided_slice %198 {offsets = [0, 96], sizes = [2, 32], strides = [1, 1]} : vector<2x128xf32> to vector<2x32xf32>
    %203 = arith.mulf %200, %169 : vector<2x32xf32>
    %204 = arith.mulf %199, %201 : vector<2x32xf32>
    %205 = arith.addf %203, %204 : vector<2x32xf32>
    %206 = math.tanh %205 : vector<2x32xf32>
    %207 = arith.mulf %202, %206 : vector<2x32xf32>
    %c8_73 = arith.constant 8 : index
    %c32_74 = arith.constant 32 : index
    %208 = vector.load %arg11[%c8_73, %c32_74] : memref<24x64xf32, #tpu.memory_space<vmem>>, vector<2x32xf32>
    tpu.vector_store %arg11[%c8_73, %c32_74], %207 {strides = array<i32>} : memref<24x64xf32, #tpu.memory_space<vmem>>, vector<2x32xf32>,
    %209 = vector.extract_strided_slice %24 {offsets = [10, 0], sizes = [2, 128], strides = [1, 1]} : vector<24x128xf32> to vector<2x128xf32>
    %c0_75 = arith.constant 0 : index
    %c0_76 = arith.constant 0 : index
    %210 = vector.load %arg3[%c0_75, %c0_76] : memref<32x128xf32, #tpu.memory_space<vmem>>, vector<32x128xf32>
    %cst_77 = arith.constant dense<0.000000e+00> : vector<2x128xf32>
    %211 = tpu.matmul %188, %210, %cst_77 {dimension_numbers = #tpu.dot_dimension_numbers<[1], [0], [0], [1], [0, 0, 1, 1], [], []>} : vector<2x32xf32>, vector<32x128xf32>, vector<2x128xf32> -> vector<2x128xf32>
    %212 = arith.addf %209, %211 : vector<2x128xf32>
    %213 = math.tanh %212 : vector<2x128xf32>
    %214 = arith.mulf %213, %10 : vector<2x128xf32>
    %215 = arith.addf %214, %15 : vector<2x128xf32>
    %216 = vector.extract_strided_slice %215 {offsets = [0, 0], sizes = [2, 32], strides = [1, 1]} : vector<2x128xf32> to vector<2x32xf32>
    %217 = vector.extract_strided_slice %215 {offsets = [0, 32], sizes = [2, 32], strides = [1, 1]} : vector<2x128xf32> to vector<2x32xf32>
    %218 = vector.extract_strided_slice %215 {offsets = [0, 64], sizes = [2, 32], strides = [1, 1]} : vector<2x128xf32> to vector<2x32xf32>
    %219 = vector.extract_strided_slice %215 {offsets = [0, 96], sizes = [2, 32], strides = [1, 1]} : vector<2x128xf32> to vector<2x32xf32>
    %220 = arith.mulf %217, %186 : vector<2x32xf32>
    %221 = arith.mulf %216, %218 : vector<2x32xf32>
    %222 = arith.addf %220, %221 : vector<2x32xf32>
    %223 = math.tanh %222 : vector<2x32xf32>
    %224 = arith.mulf %219, %223 : vector<2x32xf32>
    %c10 = arith.constant 10 : index
    %c0_78 = arith.constant 0 : index
    %225 = vector.load %arg11[%c10, %c0_78] : memref<24x64xf32, #tpu.memory_space<vmem>>, vector<2x32xf32>
    tpu.vector_store %arg11[%c10, %c0_78], %224 {strides = array<i32>} : memref<24x64xf32, #tpu.memory_space<vmem>>, vector<2x32xf32>,
    %c0_79 = arith.constant 0 : index
    %c0_80 = arith.constant 0 : index
    %226 = vector.load %arg5[%c0_79, %c0_80] : memref<32x128xf32, #tpu.memory_space<vmem>>, vector<32x128xf32>
    %cst_81 = arith.constant dense<0.000000e+00> : vector<2x128xf32>
    %227 = tpu.matmul %224, %226, %cst_81 {dimension_numbers = #tpu.dot_dimension_numbers<[1], [0], [0], [1], [0, 0, 1, 1], [], []>} : vector<2x32xf32>, vector<32x128xf32>, vector<2x128xf32> -> vector<2x128xf32>
    %c0_82 = arith.constant 0 : index
    %c0_83 = arith.constant 0 : index
    %228 = vector.load %arg6[%c0_82, %c0_83] : memref<32x128xf32, #tpu.memory_space<vmem>>, vector<32x128xf32>
    %cst_84 = arith.constant dense<0.000000e+00> : vector<2x128xf32>
    %229 = tpu.matmul %207, %228, %cst_84 {dimension_numbers = #tpu.dot_dimension_numbers<[1], [0], [0], [1], [0, 0, 1, 1], [], []>} : vector<2x32xf32>, vector<32x128xf32>, vector<2x128xf32> -> vector<2x128xf32>
    %230 = arith.addf %227, %229 : vector<2x128xf32>
    %231 = arith.addf %230, %19 : vector<2x128xf32>
    %232 = math.tanh %231 : vector<2x128xf32>
    %233 = arith.mulf %232, %10 : vector<2x128xf32>
    %234 = arith.addf %233, %15 : vector<2x128xf32>
    %235 = vector.extract_strided_slice %234 {offsets = [0, 0], sizes = [2, 32], strides = [1, 1]} : vector<2x128xf32> to vector<2x32xf32>
    %236 = vector.extract_strided_slice %234 {offsets = [0, 32], sizes = [2, 32], strides = [1, 1]} : vector<2x128xf32> to vector<2x32xf32>
    %237 = vector.extract_strided_slice %234 {offsets = [0, 64], sizes = [2, 32], strides = [1, 1]} : vector<2x128xf32> to vector<2x32xf32>
    %238 = vector.extract_strided_slice %234 {offsets = [0, 96], sizes = [2, 32], strides = [1, 1]} : vector<2x128xf32> to vector<2x32xf32>
    %239 = arith.mulf %236, %205 : vector<2x32xf32>
    %240 = arith.mulf %235, %237 : vector<2x32xf32>
    %241 = arith.addf %239, %240 : vector<2x32xf32>
    %242 = math.tanh %241 : vector<2x32xf32>
    %243 = arith.mulf %238, %242 : vector<2x32xf32>
    %c10_85 = arith.constant 10 : index
    %c32_86 = arith.constant 32 : index
    %244 = vector.load %arg11[%c10_85, %c32_86] : memref<24x64xf32, #tpu.memory_space<vmem>>, vector<2x32xf32>
    tpu.vector_store %arg11[%c10_85, %c32_86], %243 {strides = array<i32>} : memref<24x64xf32, #tpu.memory_space<vmem>>, vector<2x32xf32>,
    %245 = vector.extract_strided_slice %24 {offsets = [12, 0], sizes = [2, 128], strides = [1, 1]} : vector<24x128xf32> to vector<2x128xf32>
    %c0_87 = arith.constant 0 : index
    %c0_88 = arith.constant 0 : index
    %246 = vector.load %arg3[%c0_87, %c0_88] : memref<32x128xf32, #tpu.memory_space<vmem>>, vector<32x128xf32>
    %cst_89 = arith.constant dense<0.000000e+00> : vector<2x128xf32>
    %247 = tpu.matmul %224, %246, %cst_89 {dimension_numbers = #tpu.dot_dimension_numbers<[1], [0], [0], [1], [0, 0, 1, 1], [], []>} : vector<2x32xf32>, vector<32x128xf32>, vector<2x128xf32> -> vector<2x128xf32>
    %248 = arith.addf %245, %247 : vector<2x128xf32>
    %249 = math.tanh %248 : vector<2x128xf32>
    %250 = arith.mulf %249, %10 : vector<2x128xf32>
    %251 = arith.addf %250, %15 : vector<2x128xf32>
    %252 = vector.extract_strided_slice %251 {offsets = [0, 0], sizes = [2, 32], strides = [1, 1]} : vector<2x128xf32> to vector<2x32xf32>
    %253 = vector.extract_strided_slice %251 {offsets = [0, 32], sizes = [2, 32], strides = [1, 1]} : vector<2x128xf32> to vector<2x32xf32>
    %254 = vector.extract_strided_slice %251 {offsets = [0, 64], sizes = [2, 32], strides = [1, 1]} : vector<2x128xf32> to vector<2x32xf32>
    %255 = vector.extract_strided_slice %251 {offsets = [0, 96], sizes = [2, 32], strides = [1, 1]} : vector<2x128xf32> to vector<2x32xf32>
    %256 = arith.mulf %253, %222 : vector<2x32xf32>
    %257 = arith.mulf %252, %254 : vector<2x32xf32>
    %258 = arith.addf %256, %257 : vector<2x32xf32>
    %259 = math.tanh %258 : vector<2x32xf32>
    %260 = arith.mulf %255, %259 : vector<2x32xf32>
    %c12 = arith.constant 12 : index
    %c0_90 = arith.constant 0 : index
    %261 = vector.load %arg11[%c12, %c0_90] : memref<24x64xf32, #tpu.memory_space<vmem>>, vector<2x32xf32>
    tpu.vector_store %arg11[%c12, %c0_90], %260 {strides = array<i32>} : memref<24x64xf32, #tpu.memory_space<vmem>>, vector<2x32xf32>,
    %c0_91 = arith.constant 0 : index
    %c0_92 = arith.constant 0 : index
    %262 = vector.load %arg5[%c0_91, %c0_92] : memref<32x128xf32, #tpu.memory_space<vmem>>, vector<32x128xf32>
    %cst_93 = arith.constant dense<0.000000e+00> : vector<2x128xf32>
    %263 = tpu.matmul %260, %262, %cst_93 {dimension_numbers = #tpu.dot_dimension_numbers<[1], [0], [0], [1], [0, 0, 1, 1], [], []>} : vector<2x32xf32>, vector<32x128xf32>, vector<2x128xf32> -> vector<2x128xf32>
    %c0_94 = arith.constant 0 : index
    %c0_95 = arith.constant 0 : index
    %264 = vector.load %arg6[%c0_94, %c0_95] : memref<32x128xf32, #tpu.memory_space<vmem>>, vector<32x128xf32>
    %cst_96 = arith.constant dense<0.000000e+00> : vector<2x128xf32>
    %265 = tpu.matmul %243, %264, %cst_96 {dimension_numbers = #tpu.dot_dimension_numbers<[1], [0], [0], [1], [0, 0, 1, 1], [], []>} : vector<2x32xf32>, vector<32x128xf32>, vector<2x128xf32> -> vector<2x128xf32>
    %266 = arith.addf %263, %265 : vector<2x128xf32>
    %267 = arith.addf %266, %19 : vector<2x128xf32>
    %268 = math.tanh %267 : vector<2x128xf32>
    %269 = arith.mulf %268, %10 : vector<2x128xf32>
    %270 = arith.addf %269, %15 : vector<2x128xf32>
    %271 = vector.extract_strided_slice %270 {offsets = [0, 0], sizes = [2, 32], strides = [1, 1]} : vector<2x128xf32> to vector<2x32xf32>
    %272 = vector.extract_strided_slice %270 {offsets = [0, 32], sizes = [2, 32], strides = [1, 1]} : vector<2x128xf32> to vector<2x32xf32>
    %273 = vector.extract_strided_slice %270 {offsets = [0, 64], sizes = [2, 32], strides = [1, 1]} : vector<2x128xf32> to vector<2x32xf32>
    %274 = vector.extract_strided_slice %270 {offsets = [0, 96], sizes = [2, 32], strides = [1, 1]} : vector<2x128xf32> to vector<2x32xf32>
    %275 = arith.mulf %272, %241 : vector<2x32xf32>
    %276 = arith.mulf %271, %273 : vector<2x32xf32>
    %277 = arith.addf %275, %276 : vector<2x32xf32>
    %278 = math.tanh %277 : vector<2x32xf32>
    %279 = arith.mulf %274, %278 : vector<2x32xf32>
    %c12_97 = arith.constant 12 : index
    %c32_98 = arith.constant 32 : index
    %280 = vector.load %arg11[%c12_97, %c32_98] : memref<24x64xf32, #tpu.memory_space<vmem>>, vector<2x32xf32>
    tpu.vector_store %arg11[%c12_97, %c32_98], %279 {strides = array<i32>} : memref<24x64xf32, #tpu.memory_space<vmem>>, vector<2x32xf32>,
    %281 = vector.extract_strided_slice %24 {offsets = [14, 0], sizes = [2, 128], strides = [1, 1]} : vector<24x128xf32> to vector<2x128xf32>
    %c0_99 = arith.constant 0 : index
    %c0_100 = arith.constant 0 : index
    %282 = vector.load %arg3[%c0_99, %c0_100] : memref<32x128xf32, #tpu.memory_space<vmem>>, vector<32x128xf32>
    %cst_101 = arith.constant dense<0.000000e+00> : vector<2x128xf32>
    %283 = tpu.matmul %260, %282, %cst_101 {dimension_numbers = #tpu.dot_dimension_numbers<[1], [0], [0], [1], [0, 0, 1, 1], [], []>} : vector<2x32xf32>, vector<32x128xf32>, vector<2x128xf32> -> vector<2x128xf32>
    %284 = arith.addf %281, %283 : vector<2x128xf32>
    %285 = math.tanh %284 : vector<2x128xf32>
    %286 = arith.mulf %285, %10 : vector<2x128xf32>
    %287 = arith.addf %286, %15 : vector<2x128xf32>
    %288 = vector.extract_strided_slice %287 {offsets = [0, 0], sizes = [2, 32], strides = [1, 1]} : vector<2x128xf32> to vector<2x32xf32>
    %289 = vector.extract_strided_slice %287 {offsets = [0, 32], sizes = [2, 32], strides = [1, 1]} : vector<2x128xf32> to vector<2x32xf32>
    %290 = vector.extract_strided_slice %287 {offsets = [0, 64], sizes = [2, 32], strides = [1, 1]} : vector<2x128xf32> to vector<2x32xf32>
    %291 = vector.extract_strided_slice %287 {offsets = [0, 96], sizes = [2, 32], strides = [1, 1]} : vector<2x128xf32> to vector<2x32xf32>
    %292 = arith.mulf %289, %258 : vector<2x32xf32>
    %293 = arith.mulf %288, %290 : vector<2x32xf32>
    %294 = arith.addf %292, %293 : vector<2x32xf32>
    %295 = math.tanh %294 : vector<2x32xf32>
    %296 = arith.mulf %291, %295 : vector<2x32xf32>
    %c14 = arith.constant 14 : index
    %c0_102 = arith.constant 0 : index
    %297 = vector.load %arg11[%c14, %c0_102] : memref<24x64xf32, #tpu.memory_space<vmem>>, vector<2x32xf32>
    tpu.vector_store %arg11[%c14, %c0_102], %296 {strides = array<i32>} : memref<24x64xf32, #tpu.memory_space<vmem>>, vector<2x32xf32>,
    %c0_103 = arith.constant 0 : index
    %c0_104 = arith.constant 0 : index
    %298 = vector.load %arg5[%c0_103, %c0_104] : memref<32x128xf32, #tpu.memory_space<vmem>>, vector<32x128xf32>
    %cst_105 = arith.constant dense<0.000000e+00> : vector<2x128xf32>
    %299 = tpu.matmul %296, %298, %cst_105 {dimension_numbers = #tpu.dot_dimension_numbers<[1], [0], [0], [1], [0, 0, 1, 1], [], []>} : vector<2x32xf32>, vector<32x128xf32>, vector<2x128xf32> -> vector<2x128xf32>
    %c0_106 = arith.constant 0 : index
    %c0_107 = arith.constant 0 : index
    %300 = vector.load %arg6[%c0_106, %c0_107] : memref<32x128xf32, #tpu.memory_space<vmem>>, vector<32x128xf32>
    %cst_108 = arith.constant dense<0.000000e+00> : vector<2x128xf32>
    %301 = tpu.matmul %279, %300, %cst_108 {dimension_numbers = #tpu.dot_dimension_numbers<[1], [0], [0], [1], [0, 0, 1, 1], [], []>} : vector<2x32xf32>, vector<32x128xf32>, vector<2x128xf32> -> vector<2x128xf32>
    %302 = arith.addf %299, %301 : vector<2x128xf32>
    %303 = arith.addf %302, %19 : vector<2x128xf32>
    %304 = math.tanh %303 : vector<2x128xf32>
    %305 = arith.mulf %304, %10 : vector<2x128xf32>
    %306 = arith.addf %305, %15 : vector<2x128xf32>
    %307 = vector.extract_strided_slice %306 {offsets = [0, 0], sizes = [2, 32], strides = [1, 1]} : vector<2x128xf32> to vector<2x32xf32>
    %308 = vector.extract_strided_slice %306 {offsets = [0, 32], sizes = [2, 32], strides = [1, 1]} : vector<2x128xf32> to vector<2x32xf32>
    %309 = vector.extract_strided_slice %306 {offsets = [0, 64], sizes = [2, 32], strides = [1, 1]} : vector<2x128xf32> to vector<2x32xf32>
    %310 = vector.extract_strided_slice %306 {offsets = [0, 96], sizes = [2, 32], strides = [1, 1]} : vector<2x128xf32> to vector<2x32xf32>
    %311 = arith.mulf %308, %277 : vector<2x32xf32>
    %312 = arith.mulf %307, %309 : vector<2x32xf32>
    %313 = arith.addf %311, %312 : vector<2x32xf32>
    %314 = math.tanh %313 : vector<2x32xf32>
    %315 = arith.mulf %310, %314 : vector<2x32xf32>
    %c14_109 = arith.constant 14 : index
    %c32_110 = arith.constant 32 : index
    %316 = vector.load %arg11[%c14_109, %c32_110] : memref<24x64xf32, #tpu.memory_space<vmem>>, vector<2x32xf32>
    tpu.vector_store %arg11[%c14_109, %c32_110], %315 {strides = array<i32>} : memref<24x64xf32, #tpu.memory_space<vmem>>, vector<2x32xf32>,
    %317 = vector.extract_strided_slice %24 {offsets = [16, 0], sizes = [2, 128], strides = [1, 1]} : vector<24x128xf32> to vector<2x128xf32>
    %c0_111 = arith.constant 0 : index
    %c0_112 = arith.constant 0 : index
    %318 = vector.load %arg3[%c0_111, %c0_112] : memref<32x128xf32, #tpu.memory_space<vmem>>, vector<32x128xf32>
    %cst_113 = arith.constant dense<0.000000e+00> : vector<2x128xf32>
    %319 = tpu.matmul %296, %318, %cst_113 {dimension_numbers = #tpu.dot_dimension_numbers<[1], [0], [0], [1], [0, 0, 1, 1], [], []>} : vector<2x32xf32>, vector<32x128xf32>, vector<2x128xf32> -> vector<2x128xf32>
    %320 = arith.addf %317, %319 : vector<2x128xf32>
    %321 = math.tanh %320 : vector<2x128xf32>
    %322 = arith.mulf %321, %10 : vector<2x128xf32>
    %323 = arith.addf %322, %15 : vector<2x128xf32>
    %324 = vector.extract_strided_slice %323 {offsets = [0, 0], sizes = [2, 32], strides = [1, 1]} : vector<2x128xf32> to vector<2x32xf32>
    %325 = vector.extract_strided_slice %323 {offsets = [0, 32], sizes = [2, 32], strides = [1, 1]} : vector<2x128xf32> to vector<2x32xf32>
    %326 = vector.extract_strided_slice %323 {offsets = [0, 64], sizes = [2, 32], strides = [1, 1]} : vector<2x128xf32> to vector<2x32xf32>
    %327 = vector.extract_strided_slice %323 {offsets = [0, 96], sizes = [2, 32], strides = [1, 1]} : vector<2x128xf32> to vector<2x32xf32>
    %328 = arith.mulf %325, %294 : vector<2x32xf32>
    %329 = arith.mulf %324, %326 : vector<2x32xf32>
    %330 = arith.addf %328, %329 : vector<2x32xf32>
    %331 = math.tanh %330 : vector<2x32xf32>
    %332 = arith.mulf %327, %331 : vector<2x32xf32>
    %c16 = arith.constant 16 : index
    %c0_114 = arith.constant 0 : index
    %333 = vector.load %arg11[%c16, %c0_114] : memref<24x64xf32, #tpu.memory_space<vmem>>, vector<2x32xf32>
    tpu.vector_store %arg11[%c16, %c0_114], %332 {strides = array<i32>} : memref<24x64xf32, #tpu.memory_space<vmem>>, vector<2x32xf32>,
    %c0_115 = arith.constant 0 : index
    %c0_116 = arith.constant 0 : index
    %334 = vector.load %arg5[%c0_115, %c0_116] : memref<32x128xf32, #tpu.memory_space<vmem>>, vector<32x128xf32>
    %cst_117 = arith.constant dense<0.000000e+00> : vector<2x128xf32>
    %335 = tpu.matmul %332, %334, %cst_117 {dimension_numbers = #tpu.dot_dimension_numbers<[1], [0], [0], [1], [0, 0, 1, 1], [], []>} : vector<2x32xf32>, vector<32x128xf32>, vector<2x128xf32> -> vector<2x128xf32>
    %c0_118 = arith.constant 0 : index
    %c0_119 = arith.constant 0 : index
    %336 = vector.load %arg6[%c0_118, %c0_119] : memref<32x128xf32, #tpu.memory_space<vmem>>, vector<32x128xf32>
    %cst_120 = arith.constant dense<0.000000e+00> : vector<2x128xf32>
    %337 = tpu.matmul %315, %336, %cst_120 {dimension_numbers = #tpu.dot_dimension_numbers<[1], [0], [0], [1], [0, 0, 1, 1], [], []>} : vector<2x32xf32>, vector<32x128xf32>, vector<2x128xf32> -> vector<2x128xf32>
    %338 = arith.addf %335, %337 : vector<2x128xf32>
    %339 = arith.addf %338, %19 : vector<2x128xf32>
    %340 = math.tanh %339 : vector<2x128xf32>
    %341 = arith.mulf %340, %10 : vector<2x128xf32>
    %342 = arith.addf %341, %15 : vector<2x128xf32>
    %343 = vector.extract_strided_slice %342 {offsets = [0, 0], sizes = [2, 32], strides = [1, 1]} : vector<2x128xf32> to vector<2x32xf32>
    %344 = vector.extract_strided_slice %342 {offsets = [0, 32], sizes = [2, 32], strides = [1, 1]} : vector<2x128xf32> to vector<2x32xf32>
    %345 = vector.extract_strided_slice %342 {offsets = [0, 64], sizes = [2, 32], strides = [1, 1]} : vector<2x128xf32> to vector<2x32xf32>
    %346 = vector.extract_strided_slice %342 {offsets = [0, 96], sizes = [2, 32], strides = [1, 1]} : vector<2x128xf32> to vector<2x32xf32>
    %347 = arith.mulf %344, %313 : vector<2x32xf32>
    %348 = arith.mulf %343, %345 : vector<2x32xf32>
    %349 = arith.addf %347, %348 : vector<2x32xf32>
    %350 = math.tanh %349 : vector<2x32xf32>
    %351 = arith.mulf %346, %350 : vector<2x32xf32>
    %c16_121 = arith.constant 16 : index
    %c32_122 = arith.constant 32 : index
    %352 = vector.load %arg11[%c16_121, %c32_122] : memref<24x64xf32, #tpu.memory_space<vmem>>, vector<2x32xf32>
    tpu.vector_store %arg11[%c16_121, %c32_122], %351 {strides = array<i32>} : memref<24x64xf32, #tpu.memory_space<vmem>>, vector<2x32xf32>,
    %353 = vector.extract_strided_slice %24 {offsets = [18, 0], sizes = [2, 128], strides = [1, 1]} : vector<24x128xf32> to vector<2x128xf32>
    %c0_123 = arith.constant 0 : index
    %c0_124 = arith.constant 0 : index
    %354 = vector.load %arg3[%c0_123, %c0_124] : memref<32x128xf32, #tpu.memory_space<vmem>>, vector<32x128xf32>
    %cst_125 = arith.constant dense<0.000000e+00> : vector<2x128xf32>
    %355 = tpu.matmul %332, %354, %cst_125 {dimension_numbers = #tpu.dot_dimension_numbers<[1], [0], [0], [1], [0, 0, 1, 1], [], []>} : vector<2x32xf32>, vector<32x128xf32>, vector<2x128xf32> -> vector<2x128xf32>
    %356 = arith.addf %353, %355 : vector<2x128xf32>
    %357 = math.tanh %356 : vector<2x128xf32>
    %358 = arith.mulf %357, %10 : vector<2x128xf32>
    %359 = arith.addf %358, %15 : vector<2x128xf32>
    %360 = vector.extract_strided_slice %359 {offsets = [0, 0], sizes = [2, 32], strides = [1, 1]} : vector<2x128xf32> to vector<2x32xf32>
    %361 = vector.extract_strided_slice %359 {offsets = [0, 32], sizes = [2, 32], strides = [1, 1]} : vector<2x128xf32> to vector<2x32xf32>
    %362 = vector.extract_strided_slice %359 {offsets = [0, 64], sizes = [2, 32], strides = [1, 1]} : vector<2x128xf32> to vector<2x32xf32>
    %363 = vector.extract_strided_slice %359 {offsets = [0, 96], sizes = [2, 32], strides = [1, 1]} : vector<2x128xf32> to vector<2x32xf32>
    %364 = arith.mulf %361, %330 : vector<2x32xf32>
    %365 = arith.mulf %360, %362 : vector<2x32xf32>
    %366 = arith.addf %364, %365 : vector<2x32xf32>
    %367 = math.tanh %366 : vector<2x32xf32>
    %368 = arith.mulf %363, %367 : vector<2x32xf32>
    %c18 = arith.constant 18 : index
    %c0_126 = arith.constant 0 : index
    %369 = vector.load %arg11[%c18, %c0_126] : memref<24x64xf32, #tpu.memory_space<vmem>>, vector<2x32xf32>
    tpu.vector_store %arg11[%c18, %c0_126], %368 {strides = array<i32>} : memref<24x64xf32, #tpu.memory_space<vmem>>, vector<2x32xf32>,
    %c0_127 = arith.constant 0 : index
    %c0_128 = arith.constant 0 : index
    %370 = vector.load %arg5[%c0_127, %c0_128] : memref<32x128xf32, #tpu.memory_space<vmem>>, vector<32x128xf32>
    %cst_129 = arith.constant dense<0.000000e+00> : vector<2x128xf32>
    %371 = tpu.matmul %368, %370, %cst_129 {dimension_numbers = #tpu.dot_dimension_numbers<[1], [0], [0], [1], [0, 0, 1, 1], [], []>} : vector<2x32xf32>, vector<32x128xf32>, vector<2x128xf32> -> vector<2x128xf32>
    %c0_130 = arith.constant 0 : index
    %c0_131 = arith.constant 0 : index
    %372 = vector.load %arg6[%c0_130, %c0_131] : memref<32x128xf32, #tpu.memory_space<vmem>>, vector<32x128xf32>
    %cst_132 = arith.constant dense<0.000000e+00> : vector<2x128xf32>
    %373 = tpu.matmul %351, %372, %cst_132 {dimension_numbers = #tpu.dot_dimension_numbers<[1], [0], [0], [1], [0, 0, 1, 1], [], []>} : vector<2x32xf32>, vector<32x128xf32>, vector<2x128xf32> -> vector<2x128xf32>
    %374 = arith.addf %371, %373 : vector<2x128xf32>
    %375 = arith.addf %374, %19 : vector<2x128xf32>
    %376 = math.tanh %375 : vector<2x128xf32>
    %377 = arith.mulf %376, %10 : vector<2x128xf32>
    %378 = arith.addf %377, %15 : vector<2x128xf32>
    %379 = vector.extract_strided_slice %378 {offsets = [0, 0], sizes = [2, 32], strides = [1, 1]} : vector<2x128xf32> to vector<2x32xf32>
    %380 = vector.extract_strided_slice %378 {offsets = [0, 32], sizes = [2, 32], strides = [1, 1]} : vector<2x128xf32> to vector<2x32xf32>
    %381 = vector.extract_strided_slice %378 {offsets = [0, 64], sizes = [2, 32], strides = [1, 1]} : vector<2x128xf32> to vector<2x32xf32>
    %382 = vector.extract_strided_slice %378 {offsets = [0, 96], sizes = [2, 32], strides = [1, 1]} : vector<2x128xf32> to vector<2x32xf32>
    %383 = arith.mulf %380, %349 : vector<2x32xf32>
    %384 = arith.mulf %379, %381 : vector<2x32xf32>
    %385 = arith.addf %383, %384 : vector<2x32xf32>
    %386 = math.tanh %385 : vector<2x32xf32>
    %387 = arith.mulf %382, %386 : vector<2x32xf32>
    %c18_133 = arith.constant 18 : index
    %c32_134 = arith.constant 32 : index
    %388 = vector.load %arg11[%c18_133, %c32_134] : memref<24x64xf32, #tpu.memory_space<vmem>>, vector<2x32xf32>
    tpu.vector_store %arg11[%c18_133, %c32_134], %387 {strides = array<i32>} : memref<24x64xf32, #tpu.memory_space<vmem>>, vector<2x32xf32>,
    %389 = vector.extract_strided_slice %24 {offsets = [20, 0], sizes = [2, 128], strides = [1, 1]} : vector<24x128xf32> to vector<2x128xf32>
    %c0_135 = arith.constant 0 : index
    %c0_136 = arith.constant 0 : index
    %390 = vector.load %arg3[%c0_135, %c0_136] : memref<32x128xf32, #tpu.memory_space<vmem>>, vector<32x128xf32>
    %cst_137 = arith.constant dense<0.000000e+00> : vector<2x128xf32>
    %391 = tpu.matmul %368, %390, %cst_137 {dimension_numbers = #tpu.dot_dimension_numbers<[1], [0], [0], [1], [0, 0, 1, 1], [], []>} : vector<2x32xf32>, vector<32x128xf32>, vector<2x128xf32> -> vector<2x128xf32>
    %392 = arith.addf %389, %391 : vector<2x128xf32>
    %393 = math.tanh %392 : vector<2x128xf32>
    %394 = arith.mulf %393, %10 : vector<2x128xf32>
    %395 = arith.addf %394, %15 : vector<2x128xf32>
    %396 = vector.extract_strided_slice %395 {offsets = [0, 0], sizes = [2, 32], strides = [1, 1]} : vector<2x128xf32> to vector<2x32xf32>
    %397 = vector.extract_strided_slice %395 {offsets = [0, 32], sizes = [2, 32], strides = [1, 1]} : vector<2x128xf32> to vector<2x32xf32>
    %398 = vector.extract_strided_slice %395 {offsets = [0, 64], sizes = [2, 32], strides = [1, 1]} : vector<2x128xf32> to vector<2x32xf32>
    %399 = vector.extract_strided_slice %395 {offsets = [0, 96], sizes = [2, 32], strides = [1, 1]} : vector<2x128xf32> to vector<2x32xf32>
    %400 = arith.mulf %397, %366 : vector<2x32xf32>
    %401 = arith.mulf %396, %398 : vector<2x32xf32>
    %402 = arith.addf %400, %401 : vector<2x32xf32>
    %403 = math.tanh %402 : vector<2x32xf32>
    %404 = arith.mulf %399, %403 : vector<2x32xf32>
    %c20 = arith.constant 20 : index
    %c0_138 = arith.constant 0 : index
    %405 = vector.load %arg11[%c20, %c0_138] : memref<24x64xf32, #tpu.memory_space<vmem>>, vector<2x32xf32>
    tpu.vector_store %arg11[%c20, %c0_138], %404 {strides = array<i32>} : memref<24x64xf32, #tpu.memory_space<vmem>>, vector<2x32xf32>,
    %c0_139 = arith.constant 0 : index
    %c0_140 = arith.constant 0 : index
    %406 = vector.load %arg5[%c0_139, %c0_140] : memref<32x128xf32, #tpu.memory_space<vmem>>, vector<32x128xf32>
    %cst_141 = arith.constant dense<0.000000e+00> : vector<2x128xf32>
    %407 = tpu.matmul %404, %406, %cst_141 {dimension_numbers = #tpu.dot_dimension_numbers<[1], [0], [0], [1], [0, 0, 1, 1], [], []>} : vector<2x32xf32>, vector<32x128xf32>, vector<2x128xf32> -> vector<2x128xf32>
    %c0_142 = arith.constant 0 : index
    %c0_143 = arith.constant 0 : index
    %408 = vector.load %arg6[%c0_142, %c0_143] : memref<32x128xf32, #tpu.memory_space<vmem>>, vector<32x128xf32>
    %cst_144 = arith.constant dense<0.000000e+00> : vector<2x128xf32>
    %409 = tpu.matmul %387, %408, %cst_144 {dimension_numbers = #tpu.dot_dimension_numbers<[1], [0], [0], [1], [0, 0, 1, 1], [], []>} : vector<2x32xf32>, vector<32x128xf32>, vector<2x128xf32> -> vector<2x128xf32>
    %410 = arith.addf %407, %409 : vector<2x128xf32>
    %411 = arith.addf %410, %19 : vector<2x128xf32>
    %412 = math.tanh %411 : vector<2x128xf32>
    %413 = arith.mulf %412, %10 : vector<2x128xf32>
    %414 = arith.addf %413, %15 : vector<2x128xf32>
    %415 = vector.extract_strided_slice %414 {offsets = [0, 0], sizes = [2, 32], strides = [1, 1]} : vector<2x128xf32> to vector<2x32xf32>
    %416 = vector.extract_strided_slice %414 {offsets = [0, 32], sizes = [2, 32], strides = [1, 1]} : vector<2x128xf32> to vector<2x32xf32>
    %417 = vector.extract_strided_slice %414 {offsets = [0, 64], sizes = [2, 32], strides = [1, 1]} : vector<2x128xf32> to vector<2x32xf32>
    %418 = vector.extract_strided_slice %414 {offsets = [0, 96], sizes = [2, 32], strides = [1, 1]} : vector<2x128xf32> to vector<2x32xf32>
    %419 = arith.mulf %416, %385 : vector<2x32xf32>
    %420 = arith.mulf %415, %417 : vector<2x32xf32>
    %421 = arith.addf %419, %420 : vector<2x32xf32>
    %422 = math.tanh %421 : vector<2x32xf32>
    %423 = arith.mulf %418, %422 : vector<2x32xf32>
    %c20_145 = arith.constant 20 : index
    %c32_146 = arith.constant 32 : index
    %424 = vector.load %arg11[%c20_145, %c32_146] : memref<24x64xf32, #tpu.memory_space<vmem>>, vector<2x32xf32>
    tpu.vector_store %arg11[%c20_145, %c32_146], %423 {strides = array<i32>} : memref<24x64xf32, #tpu.memory_space<vmem>>, vector<2x32xf32>,
    %425 = vector.extract_strided_slice %24 {offsets = [22, 0], sizes = [2, 128], strides = [1, 1]} : vector<24x128xf32> to vector<2x128xf32>
    %c0_147 = arith.constant 0 : index
    %c0_148 = arith.constant 0 : index
    %426 = vector.load %arg3[%c0_147, %c0_148] : memref<32x128xf32, #tpu.memory_space<vmem>>, vector<32x128xf32>
    %cst_149 = arith.constant dense<0.000000e+00> : vector<2x128xf32>
    %427 = tpu.matmul %404, %426, %cst_149 {dimension_numbers = #tpu.dot_dimension_numbers<[1], [0], [0], [1], [0, 0, 1, 1], [], []>} : vector<2x32xf32>, vector<32x128xf32>, vector<2x128xf32> -> vector<2x128xf32>
    %428 = arith.addf %425, %427 : vector<2x128xf32>
    %429 = math.tanh %428 : vector<2x128xf32>
    %430 = arith.mulf %429, %10 : vector<2x128xf32>
    %431 = arith.addf %430, %15 : vector<2x128xf32>
    %432 = vector.extract_strided_slice %431 {offsets = [0, 0], sizes = [2, 32], strides = [1, 1]} : vector<2x128xf32> to vector<2x32xf32>
    %433 = vector.extract_strided_slice %431 {offsets = [0, 32], sizes = [2, 32], strides = [1, 1]} : vector<2x128xf32> to vector<2x32xf32>
    %434 = vector.extract_strided_slice %431 {offsets = [0, 64], sizes = [2, 32], strides = [1, 1]} : vector<2x128xf32> to vector<2x32xf32>
    %435 = vector.extract_strided_slice %431 {offsets = [0, 96], sizes = [2, 32], strides = [1, 1]} : vector<2x128xf32> to vector<2x32xf32>
    %436 = arith.mulf %433, %402 : vector<2x32xf32>
    %437 = arith.mulf %432, %434 : vector<2x32xf32>
    %438 = arith.addf %436, %437 : vector<2x32xf32>
    %439 = math.tanh %438 : vector<2x32xf32>
    %440 = arith.mulf %435, %439 : vector<2x32xf32>
    %c22 = arith.constant 22 : index
    %c0_150 = arith.constant 0 : index
    %441 = vector.load %arg11[%c22, %c0_150] : memref<24x64xf32, #tpu.memory_space<vmem>>, vector<2x32xf32>
    tpu.vector_store %arg11[%c22, %c0_150], %440 {strides = array<i32>} : memref<24x64xf32, #tpu.memory_space<vmem>>, vector<2x32xf32>,
    %c0_151 = arith.constant 0 : index
    %c0_152 = arith.constant 0 : index
    %442 = vector.load %arg5[%c0_151, %c0_152] : memref<32x128xf32, #tpu.memory_space<vmem>>, vector<32x128xf32>
    %cst_153 = arith.constant dense<0.000000e+00> : vector<2x128xf32>
    %443 = tpu.matmul %440, %442, %cst_153 {dimension_numbers = #tpu.dot_dimension_numbers<[1], [0], [0], [1], [0, 0, 1, 1], [], []>} : vector<2x32xf32>, vector<32x128xf32>, vector<2x128xf32> -> vector<2x128xf32>
    %c0_154 = arith.constant 0 : index
    %c0_155 = arith.constant 0 : index
    %444 = vector.load %arg6[%c0_154, %c0_155] : memref<32x128xf32, #tpu.memory_space<vmem>>, vector<32x128xf32>
    %cst_156 = arith.constant dense<0.000000e+00> : vector<2x128xf32>
    %445 = tpu.matmul %423, %444, %cst_156 {dimension_numbers = #tpu.dot_dimension_numbers<[1], [0], [0], [1], [0, 0, 1, 1], [], []>} : vector<2x32xf32>, vector<32x128xf32>, vector<2x128xf32> -> vector<2x128xf32>
    %446 = arith.addf %443, %445 : vector<2x128xf32>
    %447 = arith.addf %446, %19 : vector<2x128xf32>
    %448 = math.tanh %447 : vector<2x128xf32>
    %449 = arith.mulf %448, %10 : vector<2x128xf32>
    %450 = arith.addf %449, %15 : vector<2x128xf32>
    %451 = vector.extract_strided_slice %450 {offsets = [0, 0], sizes = [2, 32], strides = [1, 1]} : vector<2x128xf32> to vector<2x32xf32>
    %452 = vector.extract_strided_slice %450 {offsets = [0, 32], sizes = [2, 32], strides = [1, 1]} : vector<2x128xf32> to vector<2x32xf32>
    %453 = vector.extract_strided_slice %450 {offsets = [0, 64], sizes = [2, 32], strides = [1, 1]} : vector<2x128xf32> to vector<2x32xf32>
    %454 = vector.extract_strided_slice %450 {offsets = [0, 96], sizes = [2, 32], strides = [1, 1]} : vector<2x128xf32> to vector<2x32xf32>
    %455 = arith.mulf %452, %421 : vector<2x32xf32>
    %456 = arith.mulf %451, %453 : vector<2x32xf32>
    %457 = arith.addf %455, %456 : vector<2x32xf32>
    %458 = math.tanh %457 : vector<2x32xf32>
    %459 = arith.mulf %454, %458 : vector<2x32xf32>
    %c22_157 = arith.constant 22 : index
    %c32_158 = arith.constant 32 : index
    %460 = vector.load %arg11[%c22_157, %c32_158] : memref<24x64xf32, #tpu.memory_space<vmem>>, vector<2x32xf32>
    tpu.vector_store %arg11[%c22_157, %c32_158], %459 {strides = array<i32>} : memref<24x64xf32, #tpu.memory_space<vmem>>, vector<2x32xf32>,
    %c0_159 = arith.constant 0 : index
    %c0_160 = arith.constant 0 : index
    %461 = vector.load %arg11[%c0_159, %c0_160] : memref<24x64xf32, #tpu.memory_space<vmem>>, vector<24x64xf32>
    %c0_161 = arith.constant 0 : index
    %c0_162 = arith.constant 0 : index
    %462 = vector.load %arg8[%c0_161, %c0_162] : memref<64x4xf32, #tpu.memory_space<vmem>>, vector<64x4xf32>
    %cst_163 = arith.constant dense<0.000000e+00> : vector<24x4xf32>
    %463 = tpu.matmul %461, %462, %cst_163 {dimension_numbers = #tpu.dot_dimension_numbers<[1], [0], [0], [1], [0, 0, 1, 1], [], []>} : vector<24x64xf32>, vector<64x4xf32>, vector<24x4xf32> -> vector<24x4xf32>
    %c0_164 = arith.constant 0 : index
    %c0_165 = arith.constant 0 : index
    %464 = vector.load %arg9[%c0_164, %c0_165] : memref<1x4xf32, #tpu.memory_space<vmem>>, vector<1x4xf32>
    %465 = vector.broadcast %464 : vector<1x4xf32> to vector<24x4xf32>
    %466 = arith.addf %463, %465 : vector<24x4xf32>
    %c0_166 = arith.constant 0 : index
    %c0_167 = arith.constant 0 : index
    %467 = vector.load %arg10[%c0_166, %c0_167] : memref<24x4xf32, #tpu.memory_space<vmem>>, vector<24x4xf32>
    tpu.vector_store %arg10[%c0_166, %c0_167], %466 {strides = array<i32>} : memref<24x4xf32, #tpu.memory_space<vmem>>, vector<24x4xf32>,
    return
  }
  func.func @transform_0(%arg0: i32) -> (i32, i32) {
    %c0_i32 = arith.constant 0 : i32
    %c0_i32_0 = arith.constant 0 : i32
    %c0_i32_1 = arith.constant 0 : i32
    return %c0_i32, %c0_i32_0 : i32, i32
  }
  func.func @transform_1(%arg0: i32) -> (i32, i32) {
    %c0_i32 = arith.constant 0 : i32
    %c0_i32_0 = arith.constant 0 : i32
    %c0_i32_1 = arith.constant 0 : i32
    return %c0_i32, %c0_i32_0 : i32, i32
  }
  func.func @transform_2(%arg0: i32) -> (i32, i32) {
    %c0_i32 = arith.constant 0 : i32
    %c0_i32_0 = arith.constant 0 : i32
    %c0_i32_1 = arith.constant 0 : i32
    return %c0_i32, %c0_i32_0 : i32, i32
  }
  func.func @transform_3(%arg0: i32) -> (i32, i32) {
    %c0_i32 = arith.constant 0 : i32
    %c0_i32_0 = arith.constant 0 : i32
    %c0_i32_1 = arith.constant 0 : i32
    return %c0_i32, %c0_i32_0 : i32, i32
  }
  func.func @transform_4(%arg0: i32) -> (i32, i32) {
    %c0_i32 = arith.constant 0 : i32
    %c0_i32_0 = arith.constant 0 : i32
    %c0_i32_1 = arith.constant 0 : i32
    return %c0_i32, %c0_i32_0 : i32, i32
  }
  func.func @transform_5(%arg0: i32) -> (i32, i32) {
    %c0_i32 = arith.constant 0 : i32
    %c0_i32_0 = arith.constant 0 : i32
    %c0_i32_1 = arith.constant 0 : i32
    return %c0_i32, %c0_i32_0 : i32, i32
  }
  func.func @transform_6(%arg0: i32) -> (i32, i32) {
    %c0_i32 = arith.constant 0 : i32
    %c0_i32_0 = arith.constant 0 : i32
    %c0_i32_1 = arith.constant 0 : i32
    return %c0_i32, %c0_i32_0 : i32, i32
  }
  func.func @transform_7(%arg0: i32) -> (i32, i32) {
    %c0_i32 = arith.constant 0 : i32
    %c0_i32_0 = arith.constant 0 : i32
    %c0_i32_1 = arith.constant 0 : i32
    return %c0_i32, %c0_i32_0 : i32, i32
  }
  func.func @transform_8(%arg0: i32) -> (i32, i32) {
    %c0_i32 = arith.constant 0 : i32
    %c0_i32_0 = arith.constant 0 : i32
    %c0_i32_1 = arith.constant 0 : i32
    return %c0_i32, %c0_i32_0 : i32, i32
  }
  func.func @transform_9(%arg0: i32) -> (i32, i32) {
    %c0_i32 = arith.constant 0 : i32
    %c0_i32_0 = arith.constant 0 : i32
    %c0_i32_1 = arith.constant 0 : i32
    return %c0_i32, %c0_i32_0 : i32, i32
  }
}

</mosaic_0001>

<llo_original>
// kernel: tpu_custom_call.1
$region0: #{tpu_custom_call.1}
  #allocation0 [shape = 'u32[]', space=smem, size = 0x4, offset = 0x4, fixed_abs, tag = 'smem constant byte address 0x4 - core index']
  #allocation1 [shape = 'u32[144,128]{1,0:T(1,128)}', space=vmem, size = 0x12000, scoped, tag = 'internal scratch']
  #allocation2 [shape = 'f32[24,64]{1,0:T(8,128)}', space=vmem, size = 0x3000, scoped, tag = 'scratch operand']
  %s0 = inlined_call_operand.vmem [shape: f32[24,6], index: 0, kind: input, shape index: {}]
  %s1 = inlined_call_operand.hbm [shape: f32[6,128], index: 1, kind: input, shape index: {}]
  %s2 = inlined_call_operand.vmem [shape: f32[32,128], index: 2, kind: input, shape index: {}]
  %s3 = inlined_call_operand.vmem [shape: f32[1,128], index: 3, kind: input, shape index: {}]
  %s4 = inlined_call_operand.vmem [shape: f32[32,128], index: 4, kind: input, shape index: {}]
  %s5 = inlined_call_operand.vmem [shape: f32[32,128], index: 5, kind: input, shape index: {}]
  %s6 = inlined_call_operand.vmem [shape: f32[1,128], index: 6, kind: input, shape index: {}]
  %s7 = inlined_call_operand.vmem [shape: f32[64,4], index: 7, kind: input, shape index: {}]
  %s8 = inlined_call_operand.vmem [shape: f32[1,4], index: 8, kind: input, shape index: {}]
  %s9 = inlined_call_operand.vmem [shape: f32[24,4], index: 9, kind: output, shape index: {}]
  %s10 = sld [smem:[#allocation0]]
  $region50: #{tpu_custom_call.1} parent=0
    _
  %s12 = ssub.s32 1, %s10
  %s13 = scalar_select 0, %s12, %s10
  $region1: #{tpu_custom_call.1} parent=0
    #allocation3 [shape = 'u8[4096]{0}', space=vmem, size = 0x1000, scoped, tag = 'input window, operand 1, single buffered']
    #allocation4 [shape = 's32[1]{0}', space=sflag, size = 0x4, scoped, tag = 'scoped memory for tpu_custom_call.1']
    %14 = vsyncpa [#allocation4], 0
    // Predicated region
    $region2: #{tpu_custom_call.1} parent=1 // pred_check
      _
    $region3: #{tpu_custom_call.1} parent=1 // pred_check_branch
      %16 = sbr.rel (0) target = $region5
    $region4: #{tpu_custom_call.1} parent=1 // pred_region
      _
    $region5: #{tpu_custom_call.1} parent=1 // pred_fallthru
      _
    // Predicated region
    $region6: #{tpu_custom_call.1} parent=1 // pred_check
      _
    $region7: #{tpu_custom_call.1} parent=1 // pred_check_branch
      %18 = sbr.rel (0) target = $region9
    $region8: #{tpu_custom_call.1} parent=1 // pred_region
      %s20 = ssub.s32 128, 128
      %21 = vsyncadd [#allocation4], %s20
      %s23 = sshll.u32 [#allocation3], 4
      %s24 = int_to_ptr.vmem [resolvable:$true] %s23
      %26 = dma.hbm_to_vmem [thread:$0]  %s1, 128, %s24, [#allocation4]
    $region9: #{tpu_custom_call.1} parent=1 // pred_fallthru
      _
    // Predicated region
    $region10: #{tpu_custom_call.1} parent=1 // pred_check
      _
    $region11: #{tpu_custom_call.1} parent=1 // pred_check_branch
      %28 = sbr.rel (0) target = $region13
    $region12: #{tpu_custom_call.1} parent=1 // pred_region
      _
    $region13: #{tpu_custom_call.1} parent=1 // pred_fallthru
      _
    // Predicated region
    $region14: #{tpu_custom_call.1} parent=1 // pred_check
      _
    $region15: #{tpu_custom_call.1} parent=1 // pred_check_branch
      %30 = sbr.rel (0) target = $region17
    $region16: #{tpu_custom_call.1} parent=1 // pred_region
      _
    $region17: #{tpu_custom_call.1} parent=1 // pred_fallthru
      _
    // Predicated region
    $region18: #{tpu_custom_call.1} parent=1 // pred_check
      _
    $region19: #{tpu_custom_call.1} parent=1 // pred_check_branch
      %32 = sbr.rel (0) target = $region21
    $region20: #{tpu_custom_call.1} parent=1 // pred_region
      _
    $region21: #{tpu_custom_call.1} parent=1 // pred_fallthru
      _
    // Predicated region
    $region22: #{tpu_custom_call.1} parent=1 // pred_check
      _
    $region23: #{tpu_custom_call.1} parent=1 // pred_check_branch
      %34 = sbr.rel (0) target = $region25
    $region24: #{tpu_custom_call.1} parent=1 // pred_region
      _
    $region25: #{tpu_custom_call.1} parent=1 // pred_fallthru
      _
    // Predicated region
    $region26: #{tpu_custom_call.1} parent=1 // pred_check
      _
    $region27: #{tpu_custom_call.1} parent=1 // pred_check_branch
      %36 = sbr.rel (0) target = $region29
    $region28: #{tpu_custom_call.1} parent=1 // pred_region
      _
    $region29: #{tpu_custom_call.1} parent=1 // pred_fallthru
      _
    // Predicated region
    $region30: #{tpu_custom_call.1} parent=1 // pred_check
      _
    $region31: #{tpu_custom_call.1} parent=1 // pred_check_branch
      %38 = sbr.rel (0) target = $region33
    $region32: #{tpu_custom_call.1} parent=1 // pred_region
      _
    $region33: #{tpu_custom_call.1} parent=1 // pred_fallthru
      _
    // Predicated region
    $region34: #{tpu_custom_call.1} parent=1 // pred_check
      _
    $region35: #{tpu_custom_call.1} parent=1 // pred_check_branch
      %40 = sbr.rel (0) target = $region37
    $region36: #{tpu_custom_call.1} parent=1 // pred_region
      _
    $region37: #{tpu_custom_call.1} parent=1 // pred_fallthru
      _
    // Predicated region
    $region38: #{tpu_custom_call.1} parent=1 // pred_check
      _
    $region39: #{tpu_custom_call.1} parent=1 // pred_check_branch
      %42 = sbr.rel (0) target = $region41
    $region40: #{tpu_custom_call.1} parent=1 // pred_region
      %43 = dma.done [#allocation4], 128
    $region41: #{tpu_custom_call.1} parent=1 // pred_fallthru
      _
    %v44 = vlaneseq
    %v45 = vand.u32 %v44, 127
    %vm46 = vcmp.ge.s32.totalorder %v45, 64
    %vm47 = vcmp.lt.s32.totalorder %v45, 96
    %vm48 = vmand %vm46, %vm47
    %v49 = vsel %vm48, 1.0, 0.5
    %v50 = vsel %vm48, 0.0, 0.5
    %v51 = vld [vmem:[%s3] sm:$0x1]
    %v52 = vld [vmem:[%s6] sm:$0x1]
    %v54 = vlaneseq
    %v55 = vshrl.u32 %v54, 7
    %v56 = vsub.s32 0, %v55
    %v57 = vrot.slane %v52, %v56
    %v59 = vld [vmem:[%s0] sm:$0xff]
    %v60 = vld [vmem:[%s0 + $0x8] sm:$0xff]
    %v61 = vld [vmem:[%s0 + $0x10] sm:$0xff]
    %v62 = vld [vmem:[#allocation3] sm:$0x3f]
    %v64 = vlaneseq
    %v65 = vshrl.u32 %v64, 7
    %v66 = vsub.s32 0, %v65
    %v67 = vrot.slane %v51, %v66
    %vm69 = vcmask 48128
    %v71 = vsel %vm69, %v59, 0
    %v74 = vsel %vm69, %v60, 0
    %v77 = vsel %vm69, %v61, 0
    %vm79 = vcmask 1045504
    %v81 = vsel %vm79, %v62, 0
    %83 = vmatprep.subr.mxu0 0.0
    %84 = vmatpush1.msra.mxu0 0.0
    %85 = vmatprep.subr.mxu0 0.0
    %86 = vmatpush1.msra.mxu0 0.0
    %87 = vmatprep.subr.mxu0 0.0
    %88 = vmatpush1.msra.mxu0 0.0
    %89 = vmatprep.subr.mxu0 0.0
    %90 = vmatpush1.msra.mxu0 0.0
    %91 = vmatprep.subr.mxu0 0.0
    %92 = vmatpush1.msra.mxu0 0.0
    %93 = vmatprep.subr.mxu0 0.0
    %94 = vmatpush1.msra.mxu0 0.0
    %95 = vmatprep.subr.mxu0 0.0
    %96 = vmatpush1.msra.mxu0 0.0
    %97 = vmatprep.subr.mxu0 0.0
    %98 = vmatpush1.msra.mxu0 0.0
    %99 = vmatprep.subr.mxu0 0.0
    %100 = vmatpush1.msra.mxu0 0.0
    %101 = vmatprep.subr.mxu0 0.0
    %102 = vmatpush1.msra.mxu0 0.0
    %103 = vmatprep.subr.mxu0 0.0
    %104 = vmatpush1.msra.mxu0 0.0
    %105 = vmatprep.subr.mxu0 0.0
    %106 = vmatpush1.msra.mxu0 0.0
    %107 = vmatprep.subr.mxu0 0.0
    %108 = vmatpush1.msra.mxu0 0.0
    %109 = vmatprep.subr.mxu0 0.0
    %110 = vmatpush1.msra.mxu0 0.0
    %111 = vmatprep.subr.mxu0 0.0
    %112 = vmatpush1.msra.mxu0 0.0
    %113 = vmatprep.subr.mxu0 0.0
    %114 = vmatpush1.msra.mxu0 %v81
    %115 = vmatprep.subr.mxu0 0.0
    %116 = vmatpush2.msra.mxu0 0.0
    %117 = vmatprep.subr.mxu0 0.0
    %118 = vmatpush2.msra.mxu0 0.0
    %119 = vmatprep.subr.mxu0 0.0
    %120 = vmatpush2.msra.mxu0 0.0
    %121 = vmatprep.subr.mxu0 0.0
    %122 = vmatpush2.msra.mxu0 0.0
    %123 = vmatprep.subr.mxu0 0.0
    %124 = vmatpush2.msra.mxu0 0.0
    %125 = vmatprep.subr.mxu0 0.0
    %126 = vmatpush2.msra.mxu0 0.0
    %127 = vmatprep.subr.mxu0 0.0
    %128 = vmatpush2.msra.mxu0 0.0
    %129 = vmatprep.subr.mxu0 0.0
    %130 = vmatpush2.msra.mxu0 0.0
    %131 = vmatprep.subr.mxu0 0.0
    %132 = vmatpush2.msra.mxu0 0.0
    %133 = vmatprep.subr.mxu0 0.0
    %134 = vmatpush2.msra.mxu0 0.0
    %135 = vmatprep.subr.mxu0 0.0
    %136 = vmatpush2.msra.mxu0 0.0
    %137 = vmatprep.subr.mxu0 0.0
    %138 = vmatpush2.msra.mxu0 0.0
    %139 = vmatprep.subr.mxu0 0.0
    %140 = vmatpush2.msra.mxu0 0.0
    %141 = vmatprep.subr.mxu0 0.0
    %142 = vmatpush2.msra.mxu0 0.0
    %143 = vmatprep.subr.mxu0 0.0
    %144 = vmatpush2.msra.mxu0 0.0
    %145 = vmatprep.subr.mxu0 0.0
    %146 = vmatpush2.msra.mxu0 0.0
    %147 = vmatprep.mubr.f32.mxu0 0.0
    %148 = vmatmul.mubr.f32.gmra.mxu0 %v71
    %v149 = vpop.f32.mrf.mxu0
    %v150 = vadd.f32 %v67, %v149
    %v151 = vpop.f32.mrf.mxu0
    %152 = vmatprep.mubr.f32.mxu0 0.0
    %153 = vmatmul.mubr.f32.gmra.mxu0 %v74
    %v154 = vpop.f32.mrf.mxu0
    %v155 = vadd.f32 %v67, %v154
    %v156 = vpop.f32.mrf.mxu0
    %157 = vmatprep.mubr.f32.mxu0 0.0
    %158 = vmatmul.mubr.f32.gmra.mxu0 %v77
    %v159 = vpop.f32.mrf.mxu0
    %v160 = vadd.f32 %v67, %v159
    %v161 = vpop.f32.mrf.mxu0
    %162 = vdwg.mxu0
    %v163 = vld [vmem:[%s2] sm:$0xff]
    %v164 = vld [vmem:[%s2 + $0x8] sm:$0xff]
    %v165 = vld [vmem:[%s2 + $0x10] sm:$0xff]
    %v166 = vld [vmem:[%s2 + $0x18] sm:$0xff]
    %vm167 = vcmask 261120
    %v169 = vsel %vm167, 0.0, 0
    %171 = vmatprep.subr.mxu0 0.0
    %172 = vmatpush1.msra.mxu0 0.0
    %173 = vmatprep.subr.mxu0 0.0
    %174 = vmatpush1.msra.mxu0 0.0
    %175 = vmatprep.subr.mxu0 0.0
    %176 = vmatpush1.msra.mxu0 0.0
    %177 = vmatprep.subr.mxu0 0.0
    %178 = vmatpush1.msra.mxu0 0.0
    %179 = vmatprep.subr.mxu0 0.0
    %180 = vmatpush1.msra.mxu0 0.0
    %181 = vmatprep.subr.mxu0 0.0
    %182 = vmatpush1.msra.mxu0 0.0
    %183 = vmatprep.subr.mxu0 0.0
    %184 = vmatpush1.msra.mxu0 0.0
    %185 = vmatprep.subr.mxu0 0.0
    %186 = vmatpush1.msra.mxu0 0.0
    %187 = vmatprep.subr.mxu0 0.0
    %188 = vmatpush1.msra.mxu0 0.0
    %189 = vmatprep.subr.mxu0 0.0
    %190 = vmatpush1.msra.mxu0 0.0
    %191 = vmatprep.subr.mxu0 0.0
    %192 = vmatpush1.msra.mxu0 0.0
    %193 = vmatprep.subr.mxu0 0.0
    %194 = vmatpush1.msra.mxu0 0.0
    %195 = vmatprep.subr.mxu0 0.0
    %196 = vmatpush1.msra.mxu0 %v166
    %197 = vmatprep.subr.mxu0 0.0
    %198 = vmatpush1.msra.mxu0 %v165
    %199 = vmatprep.subr.mxu0 0.0
    %200 = vmatpush1.msra.mxu0 %v164
    %201 = vmatprep.subr.mxu0 0.0
    %202 = vmatpush1.msra.mxu0 %v163
    %203 = vmatprep.subr.mxu0 0.0
    %204 = vmatpush2.msra.mxu0 0.0
    %205 = vmatprep.subr.mxu0 0.0
    %206 = vmatpush2.msra.mxu0 0.0
    %207 = vmatprep.subr.mxu0 0.0
    %208 = vmatpush2.msra.mxu0 0.0
    %209 = vmatprep.subr.mxu0 0.0
    %210 = vmatpush2.msra.mxu0 0.0
    %211 = vmatprep.subr.mxu0 0.0
    %212 = vmatpush2.msra.mxu0 0.0
    %213 = vmatprep.subr.mxu0 0.0
    %214 = vmatpush2.msra.mxu0 0.0
    %215 = vmatprep.subr.mxu0 0.0
    %216 = vmatpush2.msra.mxu0 0.0
    %217 = vmatprep.subr.mxu0 0.0
    %218 = vmatpush2.msra.mxu0 0.0
    %219 = vmatprep.subr.mxu0 0.0
    %220 = vmatpush2.msra.mxu0 0.0
    %221 = vmatprep.subr.mxu0 0.0
    %222 = vmatpush2.msra.mxu0 0.0
    %223 = vmatprep.subr.mxu0 0.0
    %224 = vmatpush2.msra.mxu0 0.0
    %225 = vmatprep.subr.mxu0 0.0
    %226 = vmatpush2.msra.mxu0 0.0
    %227 = vmatprep.subr.mxu0 0.0
    %228 = vmatpush2.msra.mxu0 0.0
    %229 = vmatprep.subr.mxu0 0.0
    %230 = vmatpush2.msra.mxu0 0.0
    %231 = vmatprep.subr.mxu0 0.0
    %232 = vmatpush2.msra.mxu0 0.0
    %233 = vmatprep.subr.mxu0 0.0
    %234 = vmatpush2.msra.mxu0 0.0
    %235 = vmatprep.mubr.f32.mxu0 0.0
    %236 = vmatmul.mubr.f32.gmra.mxu0 %v169
    %v237 = vpop.f32.mrf.mxu0
    %v238 = vadd.f32 0.0, %v237
    %v239 = vpop.f32.mrf.mxu0
    %240 = vdwg.mxu0
    %v241 = vadd.f32 %v150, %v238
    %v242 = vtanh.pop %v241
    %v243 = vmul.f32 %v242, %v49
    %v244 = vadd.f32 %v243, %v50
    %v245 = vmul.f32 %v244, 0.0
    %247 = vrot.lane.b32.xlu0 %v244, 64
    %v248 = vpop.permute.xlu0 %247
    %v250 = vmul.f32 %v244, %v248
    %252 = vrot.lane.b32.xlu0 %v250, 32
    %v253 = vpop.permute.xlu0 %252
    %v255 = vadd.f32 %v245, %v253
    %v256 = vtanh.pop %v255
    %258 = vrot.lane.b32.xlu0 %v256, 64
    %v259 = vpop.permute.xlu0 %258
    %v261 = vmul.f32 %v244, %v259
    %263 = vrot.lane.b32.xlu0 %v261, 32
    %v264 = vpop.permute.xlu0 %263
    %vm266 = vcmask 254976
    %267 = vst.msk [vmem:[#allocation2] sm:$0x3] %vm266, %v264
    %v268 = vld [vmem:[%s4] sm:$0xff]
    %v269 = vld [vmem:[%s4 + $0x8] sm:$0xff]
    %v270 = vld [vmem:[%s4 + $0x10] sm:$0xff]
    %v271 = vld [vmem:[%s4 + $0x18] sm:$0xff]
    %v272 = vld [vmem:[%s5] sm:$0xff]
    %v273 = vld [vmem:[%s5 + $0x8] sm:$0xff]
    %v274 = vld [vmem:[%s5 + $0x10] sm:$0xff]
    %v275 = vld [vmem:[%s5 + $0x18] sm:$0xff]
    %276 = vmatprep.subr.mxu0 0.0
    %277 = vmatpush1.msra.mxu0 0.0
    %278 = vmatprep.subr.mxu0 0.0
    %279 = vmatpush1.msra.mxu0 0.0
    %280 = vmatprep.subr.mxu0 0.0
    %281 = vmatpush1.msra.mxu0 0.0
    %282 = vmatprep.subr.mxu0 0.0
    %283 = vmatpush1.msra.mxu0 0.0
    %284 = vmatprep.subr.mxu0 0.0
    %285 = vmatpush1.msra.mxu0 0.0
    %286 = vmatprep.subr.mxu0 0.0
    %287 = vmatpush1.msra.mxu0 0.0
    %288 = vmatprep.subr.mxu0 0.0
    %289 = vmatpush1.msra.mxu0 0.0
    %290 = vmatprep.subr.mxu0 0.0
    %291 = vmatpush1.msra.mxu0 0.0
    %292 = vmatprep.subr.mxu0 0.0
    %293 = vmatpush1.msra.mxu0 0.0
    %294 = vmatprep.subr.mxu0 0.0
    %295 = vmatpush1.msra.mxu0 0.0
    %296 = vmatprep.subr.mxu0 0.0
    %297 = vmatpush1.msra.mxu0 0.0
    %298 = vmatprep.subr.mxu0 0.0
    %299 = vmatpush1.msra.mxu0 0.0
    %300 = vmatprep.subr.mxu0 0.0
    %301 = vmatpush1.msra.mxu0 %v275
    %302 = vmatprep.subr.mxu0 0.0
    %303 = vmatpush1.msra.mxu0 %v274
    %304 = vmatprep.subr.mxu0 0.0
    %305 = vmatpush1.msra.mxu0 %v273
    %306 = vmatprep.subr.mxu0 0.0
    %307 = vmatpush1.msra.mxu0 %v272
    %308 = vmatprep.subr.mxu0 0.0
    %309 = vmatpush2.msra.mxu0 0.0
    %310 = vmatprep.subr.mxu0 0.0
    %311 = vmatpush2.msra.mxu0 0.0
    %312 = vmatprep.subr.mxu0 0.0
    %313 = vmatpush2.msra.mxu0 0.0
    %314 = vmatprep.subr.mxu0 0.0
    %315 = vmatpush2.msra.mxu0 0.0
    %316 = vmatprep.subr.mxu0 0.0
    %317 = vmatpush2.msra.mxu0 0.0
    %318 = vmatprep.subr.mxu0 0.0
    %319 = vmatpush2.msra.mxu0 0.0
    %320 = vmatprep.subr.mxu0 0.0
    %321 = vmatpush2.msra.mxu0 0.0
    %322 = vmatprep.subr.mxu0 0.0
    %323 = vmatpush2.msra.mxu0 0.0
    %324 = vmatprep.subr.mxu0 0.0
    %325 = vmatpush2.msra.mxu0 0.0
    %326 = vmatprep.subr.mxu0 0.0
    %327 = vmatpush2.msra.mxu0 0.0
    %328 = vmatprep.subr.mxu0 0.0
    %329 = vmatpush2.msra.mxu0 0.0
    %330 = vmatprep.subr.mxu0 0.0
    %331 = vmatpush2.msra.mxu0 0.0
    %332 = vmatprep.subr.mxu0 0.0
    %333 = vmatpush2.msra.mxu0 0.0
    %334 = vmatprep.subr.mxu0 0.0
    %335 = vmatpush2.msra.mxu0 0.0
    %336 = vmatprep.subr.mxu0 0.0
    %337 = vmatpush2.msra.mxu0 0.0
    %338 = vmatprep.subr.mxu0 0.0
    %339 = vmatpush2.msra.mxu0 0.0
    %340 = vmatprep.mubr.f32.mxu0 0.0
    %341 = vmatmul.mubr.f32.gmra.mxu0 %v169
    %v342 = vpop.f32.mrf.mxu0
    %v343 = vadd.f32 0.0, %v342
    %v344 = vpop.f32.mrf.mxu0
    %345 = vdwg.mxu0
    %v346 = vsel %vm167, %v264, 0
    %348 = vmatprep.subr.mxu0 0.0
    %349 = vmatpush1.msra.mxu0 0.0
    %350 = vmatprep.subr.mxu0 0.0
    %351 = vmatpush1.msra.mxu0 0.0
    %352 = vmatprep.subr.mxu0 0.0
    %353 = vmatpush1.msra.mxu0 0.0
    %354 = vmatprep.subr.mxu0 0.0
    %355 = vmatpush1.msra.mxu0 0.0
    %356 = vmatprep.subr.mxu0 0.0
    %357 = vmatpush1.msra.mxu0 0.0
    %358 = vmatprep.subr.mxu0 0.0
    %359 = vmatpush1.msra.mxu0 0.0
    %360 = vmatprep.subr.mxu0 0.0
    %361 = vmatpush1.msra.mxu0 0.0
    %362 = vmatprep.subr.mxu0 0.0
    %363 = vmatpush1.msra.mxu0 0.0
    %364 = vmatprep.subr.mxu0 0.0
    %365 = vmatpush1.msra.mxu0 0.0
    %366 = vmatprep.subr.mxu0 0.0
    %367 = vmatpush1.msra.mxu0 0.0
    %368 = vmatprep.subr.mxu0 0.0
    %369 = vmatpush1.msra.mxu0 0.0
    %370 = vmatprep.subr.mxu0 0.0
    %371 = vmatpush1.msra.mxu0 0.0
    %372 = vmatprep.subr.mxu0 0.0
    %373 = vmatpush1.msra.mxu0 %v271
    %374 = vmatprep.subr.mxu0 0.0
    %375 = vmatpush1.msra.mxu0 %v270
    %376 = vmatprep.subr.mxu0 0.0
    %377 = vmatpush1.msra.mxu0 %v269
    %378 = vmatprep.subr.mxu0 0.0
    %379 = vmatpush1.msra.mxu0 %v268
    %380 = vmatprep.subr.mxu0 0.0
    %381 = vmatpush2.msra.mxu0 0.0
    %382 = vmatprep.subr.mxu0 0.0
    %383 = vmatpush2.msra.mxu0 0.0
    %384 = vmatprep.subr.mxu0 0.0
    %385 = vmatpush2.msra.mxu0 0.0
    %386 = vmatprep.subr.mxu0 0.0
    %387 = vmatpush2.msra.mxu0 0.0
    %388 = vmatprep.subr.mxu0 0.0
    %389 = vmatpush2.msra.mxu0 0.0
    %390 = vmatprep.subr.mxu0 0.0
    %391 = vmatpush2.msra.mxu0 0.0
    %392 = vmatprep.subr.mxu0 0.0
    %393 = vmatpush2.msra.mxu0 0.0
    %394 = vmatprep.subr.mxu0 0.0
    %395 = vmatpush2.msra.mxu0 0.0
    %396 = vmatprep.subr.mxu0 0.0
    %397 = vmatpush2.msra.mxu0 0.0
    %398 = vmatprep.subr.mxu0 0.0
    %399 = vmatpush2.msra.mxu0 0.0
    %400 = vmatprep.subr.mxu0 0.0
    %401 = vmatpush2.msra.mxu0 0.0
    %402 = vmatprep.subr.mxu0 0.0
    %403 = vmatpush2.msra.mxu0 0.0
    %404 = vmatprep.subr.mxu0 0.0
    %405 = vmatpush2.msra.mxu0 0.0
    %406 = vmatprep.subr.mxu0 0.0
    %407 = vmatpush2.msra.mxu0 0.0
    %408 = vmatprep.subr.mxu0 0.0
    %409 = vmatpush2.msra.mxu0 0.0
    %410 = vmatprep.subr.mxu0 0.0
    %411 = vmatpush2.msra.mxu0 0.0
    %412 = vmatprep.mubr.f32.mxu0 0.0
    %413 = vmatmul.mubr.f32.gmra.mxu0 %v346
    %v414 = vpop.f32.mrf.mxu0
    %v415 = vadd.f32 %v343, %v414
    %v416 = vpop.f32.mrf.mxu0
    %417 = vdwg.mxu0
    %v418 = vadd.f32 %v415, %v57
    %v419 = vtanh.pop %v418
    %v420 = vmul.f32 %v419, %v49
    %v421 = vadd.f32 %v420, %v50
    %v422 = vmul.f32 %v421, 0.0
    %424 = vrot.lane.b32.xlu0 %v421, 64
    %v425 = vpop.permute.xlu0 %424
    %v427 = vmul.f32 %v421, %v425
    %429 = vrot.lane.b32.xlu0 %v427, 32
    %v430 = vpop.permute.xlu0 %429
    %v432 = vadd.f32 %v422, %v430
    %v433 = vtanh.pop %v432
    %435 = vrot.lane.b32.xlu0 %v433, 64
    %v436 = vpop.permute.xlu0 %435
    %v438 = vmul.f32 %v421, %v436
    %440 = vrot.lane.b32.xlu0 %v438, 64
    %v441 = vpop.permute.xlu0 %440
    %vm443 = vcmask 517376
    %444 = vst.msk [vmem:[#allocation2] sm:$0x3] %vm443, %v441
    %v445 = vld [vmem:[%s2] sm:$0xff]
    %v446 = vld [vmem:[%s2 + $0x8] sm:$0xff]
    %v447 = vld [vmem:[%s2 + $0x10] sm:$0xff]
    %v448 = vld [vmem:[%s2 + $0x18] sm:$0xff]
    %449 = vmatprep.subr.mxu0 0.0
    %450 = vmatpush1.msra.mxu0 0.0
    %451 = vmatprep.subr.mxu0 0.0
    %452 = vmatpush1.msra.mxu0 0.0
    %453 = vmatprep.subr.mxu0 0.0
    %454 = vmatpush1.msra.mxu0 0.0
    %455 = vmatprep.subr.mxu0 0.0
    %456 = vmatpush1.msra.mxu0 0.0
    %457 = vmatprep.subr.mxu0 0.0
    %458 = vmatpush1.msra.mxu0 0.0
    %459 = vmatprep.subr.mxu0 0.0
    %460 = vmatpush1.msra.mxu0 0.0
    %461 = vmatprep.subr.mxu0 0.0
    %462 = vmatpush1.msra.mxu0 0.0
    %463 = vmatprep.subr.mxu0 0.0
    %464 = vmatpush1.msra.mxu0 0.0
    %465 = vmatprep.subr.mxu0 0.0
    %466 = vmatpush1.msra.mxu0 0.0
    %467 = vmatprep.subr.mxu0 0.0
    %468 = vmatpush1.msra.mxu0 0.0
    %469 = vmatprep.subr.mxu0 0.0
    %470 = vmatpush1.msra.mxu0 0.0
    %471 = vmatprep.subr.mxu0 0.0
    %472 = vmatpush1.msra.mxu0 0.0
    %473 = vmatprep.subr.mxu0 0.0
    %474 = vmatpush1.msra.mxu0 %v448
    %475 = vmatprep.subr.mxu0 0.0
    %476 = vmatpush1.msra.mxu0 %v447
    %477 = vmatprep.subr.mxu0 0.0
    %478 = vmatpush1.msra.mxu0 %v446
    %479 = vmatprep.subr.mxu0 0.0
    %480 = vmatpush1.msra.mxu0 %v445
    %481 = vmatprep.subr.mxu0 0.0
    %482 = vmatpush2.msra.mxu0 0.0
    %483 = vmatprep.subr.mxu0 0.0
    %484 = vmatpush2.msra.mxu0 0.0
    %485 = vmatprep.subr.mxu0 0.0
    %486 = vmatpush2.msra.mxu0 0.0
    %487 = vmatprep.subr.mxu0 0.0
    %488 = vmatpush2.msra.mxu0 0.0
    %489 = vmatprep.subr.mxu0 0.0
    %490 = vmatpush2.msra.mxu0 0.0
    %491 = vmatprep.subr.mxu0 0.0
    %492 = vmatpush2.msra.mxu0 0.0
    %493 = vmatprep.subr.mxu0 0.0
    %494 = vmatpush2.msra.mxu0 0.0
    %495 = vmatprep.subr.mxu0 0.0
    %496 = vmatpush2.msra.mxu0 0.0
    %497 = vmatprep.subr.mxu0 0.0
    %498 = vmatpush2.msra.mxu0 0.0
    %499 = vmatprep.subr.mxu0 0.0
    %500 = vmatpush2.msra.mxu0 0.0
    %501 = vmatprep.subr.mxu0 0.0
    %502 = vmatpush2.msra.mxu0 0.0
    %503 = vmatprep.subr.mxu0 0.0
    %504 = vmatpush2.msra.mxu0 0.0
    %505 = vmatprep.subr.mxu0 0.0
    %506 = vmatpush2.msra.mxu0 0.0
    %507 = vmatprep.subr.mxu0 0.0
    %508 = vmatpush2.msra.mxu0 0.0
    %509 = vmatprep.subr.mxu0 0.0
    %510 = vmatpush2.msra.mxu0 0.0
    %511 = vmatprep.subr.mxu0 0.0
    %512 = vmatpush2.msra.mxu0 0.0
    %513 = vmatprep.mubr.f32.mxu0 0.0
    %514 = vmatmul.mubr.f32.gmra.mxu0 %v346
    %v515 = vpop.f32.mrf.mxu0
    %v516 = vadd.f32 0.0, %v515
    %v517 = vpop.f32.mrf.mxu0
    %518 = vdwg.mxu0
    %v520 = vrot.slane %v516, 6
    %v522 = vadd.f32 %v150, %v520
    %v523 = vtanh.pop %v522
    %v524 = vmul.f32 %v523, %v49
    %v525 = vadd.f32 %v524, %v50
    %v527 = vrot.slane %v255, 6
    %v529 = vmul.f32 %v525, %v527
    %531 = vrot.lane.b32.xlu0 %v525, 64
    %v532 = vpop.permute.xlu0 %531
    %v534 = vmul.f32 %v525, %v532
    %536 = vrot.lane.b32.xlu0 %v534, 32
    %v537 = vpop.permute.xlu0 %536
    %v539 = vadd.f32 %v529, %v537
    %v540 = vtanh.pop %v539
    %542 = vrot.lane.b32.xlu0 %v540, 64
    %v543 = vpop.permute.xlu0 %542
    %v545 = vmul.f32 %v525, %v543
    %547 = vrot.lane.b32.xlu0 %v545, 32
    %v548 = vpop.permute.xlu0 %547
    %vm550 = vcmask 257026
    %551 = vst.msk [vmem:[#allocation2] sm:$0xc] %vm550, %v548
    %v552 = vld [vmem:[%s4] sm:$0xff]
    %v553 = vld [vmem:[%s4 + $0x8] sm:$0xff]
    %v554 = vld [vmem:[%s4 + $0x10] sm:$0xff]
    %v555 = vld [vmem:[%s4 + $0x18] sm:$0xff]
    %v556 = vld [vmem:[%s5] sm:$0xff]
    %v557 = vld [vmem:[%s5 + $0x8] sm:$0xff]
    %v558 = vld [vmem:[%s5 + $0x10] sm:$0xff]
    %v559 = vld [vmem:[%s5 + $0x18] sm:$0xff]
    %560 = vrot.lane.b32.xlu0 %v438, 32
    %v561 = vpop.permute.xlu0 %560
    %v562 = vsel %vm167, %v561, 0
    %564 = vmatprep.subr.mxu0 0.0
    %565 = vmatpush1.msra.mxu0 0.0
    %566 = vmatprep.subr.mxu0 0.0
    %567 = vmatpush1.msra.mxu0 0.0
    %568 = vmatprep.subr.mxu0 0.0
    %569 = vmatpush1.msra.mxu0 0.0
    %570 = vmatprep.subr.mxu0 0.0
    %571 = vmatpush1.msra.mxu0 0.0
    %572 = vmatprep.subr.mxu0 0.0
    %573 = vmatpush1.msra.mxu0 0.0
    %574 = vmatprep.subr.mxu0 0.0
    %575 = vmatpush1.msra.mxu0 0.0
    %576 = vmatprep.subr.mxu0 0.0
    %577 = vmatpush1.msra.mxu0 0.0
    %578 = vmatprep.subr.mxu0 0.0
    %579 = vmatpush1.msra.mxu0 0.0
    %580 = vmatprep.subr.mxu0 0.0
    %581 = vmatpush1.msra.mxu0 0.0
    %582 = vmatprep.subr.mxu0 0.0
    %583 = vmatpush1.msra.mxu0 0.0
    %584 = vmatprep.subr.mxu0 0.0
    %585 = vmatpush1.msra.mxu0 0.0
    %586 = vmatprep.subr.mxu0 0.0
    %587 = vmatpush1.msra.mxu0 0.0
    %588 = vmatprep.subr.mxu0 0.0
    %589 = vmatpush1.msra.mxu0 %v559
    %590 = vmatprep.subr.mxu0 0.0
    %591 = vmatpush1.msra.mxu0 %v558
    %592 = vmatprep.subr.mxu0 0.0
    %593 = vmatpush1.msra.mxu0 %v557
    %594 = vmatprep.subr.mxu0 0.0
    %595 = vmatpush1.msra.mxu0 %v556
    %596 = vmatprep.subr.mxu0 0.0
    %597 = vmatpush2.msra.mxu0 0.0
    %598 = vmatprep.subr.mxu0 0.0
    %599 = vmatpush2.msra.mxu0 0.0
    %600 = vmatprep.subr.mxu0 0.0
    %601 = vmatpush2.msra.mxu0 0.0
    %602 = vmatprep.subr.mxu0 0.0
    %603 = vmatpush2.msra.mxu0 0.0
    %604 = vmatprep.subr.mxu0 0.0
    %605 = vmatpush2.msra.mxu0 0.0
    %606 = vmatprep.subr.mxu0 0.0
    %607 = vmatpush2.msra.mxu0 0.0
    %608 = vmatprep.subr.mxu0 0.0
    %609 = vmatpush2.msra.mxu0 0.0
    %610 = vmatprep.subr.mxu0 0.0
    %611 = vmatpush2.msra.mxu0 0.0
    %612 = vmatprep.subr.mxu0 0.0
    %613 = vmatpush2.msra.mxu0 0.0
    %614 = vmatprep.subr.mxu0 0.0
    %615 = vmatpush2.msra.mxu0 0.0
    %616 = vmatprep.subr.mxu0 0.0
    %617 = vmatpush2.msra.mxu0 0.0
    %618 = vmatprep.subr.mxu0 0.0
    %619 = vmatpush2.msra.mxu0 0.0
    %620 = vmatprep.subr.mxu0 0.0
    %621 = vmatpush2.msra.mxu0 0.0
    %622 = vmatprep.subr.mxu0 0.0
    %623 = vmatpush2.msra.mxu0 0.0
    %624 = vmatprep.subr.mxu0 0.0
    %625 = vmatpush2.msra.mxu0 0.0
    %626 = vmatprep.subr.mxu0 0.0
    %627 = vmatpush2.msra.mxu0 0.0
    %628 = vmatprep.mubr.f32.mxu0 0.0
    %629 = vmatmul.mubr.f32.gmra.mxu0 %v562
    %v630 = vpop.f32.mrf.mxu0
    %v631 = vadd.f32 0.0, %v630
    %v632 = vpop.f32.mrf.mxu0
    %633 = vdwg.mxu0
    %v634 = vrot.slane %v545, 2
    %635 = vrot.lane.b32.xlu0 %v634, 32
    %v636 = vpop.permute.xlu0 %635
    %v637 = vsel %vm167, %v636, 0
    %639 = vmatprep.subr.mxu0 0.0
    %640 = vmatpush1.msra.mxu0 0.0
    %641 = vmatprep.subr.mxu0 0.0
    %642 = vmatpush1.msra.mxu0 0.0
    %643 = vmatprep.subr.mxu0 0.0
    %644 = vmatpush1.msra.mxu0 0.0
    %645 = vmatprep.subr.mxu0 0.0
    %646 = vmatpush1.msra.mxu0 0.0
    %647 = vmatprep.subr.mxu0 0.0
    %648 = vmatpush1.msra.mxu0 0.0
    %649 = vmatprep.subr.mxu0 0.0
    %650 = vmatpush1.msra.mxu0 0.0
    %651 = vmatprep.subr.mxu0 0.0
    %652 = vmatpush1.msra.mxu0 0.0
    %653 = vmatprep.subr.mxu0 0.0
    %654 = vmatpush1.msra.mxu0 0.0
    %655 = vmatprep.subr.mxu0 0.0
    %656 = vmatpush1.msra.mxu0 0.0
    %657 = vmatprep.subr.mxu0 0.0
    %658 = vmatpush1.msra.mxu0 0.0
    %659 = vmatprep.subr.mxu0 0.0
    %660 = vmatpush1.msra.mxu0 0.0
    %661 = vmatprep.subr.mxu0 0.0
    %662 = vmatpush1.msra.mxu0 0.0
    %663 = vmatprep.subr.mxu0 0.0
    %664 = vmatpush1.msra.mxu0 %v555
    %665 = vmatprep.subr.mxu0 0.0
    %666 = vmatpush1.msra.mxu0 %v554
    %667 = vmatprep.subr.mxu0 0.0
    %668 = vmatpush1.msra.mxu0 %v553
    %669 = vmatprep.subr.mxu0 0.0
    %670 = vmatpush1.msra.mxu0 %v552
    %671 = vmatprep.subr.mxu0 0.0
    %672 = vmatpush2.msra.mxu0 0.0
    %673 = vmatprep.subr.mxu0 0.0
    %674 = vmatpush2.msra.mxu0 0.0
    %675 = vmatprep.subr.mxu0 0.0
    %676 = vmatpush2.msra.mxu0 0.0
    %677 = vmatprep.subr.mxu0 0.0
    %678 = vmatpush2.msra.mxu0 0.0
    %679 = vmatprep.subr.mxu0 0.0
    %680 = vmatpush2.msra.mxu0 0.0
    %681 = vmatprep.subr.mxu0 0.0
    %682 = vmatpush2.msra.mxu0 0.0
    %683 = vmatprep.subr.mxu0 0.0
    %684 = vmatpush2.msra.mxu0 0.0
    %685 = vmatprep.subr.mxu0 0.0
    %686 = vmatpush2.msra.mxu0 0.0
    %687 = vmatprep.subr.mxu0 0.0
    %688 = vmatpush2.msra.mxu0 0.0
    %689 = vmatprep.subr.mxu0 0.0
    %690 = vmatpush2.msra.mxu0 0.0
    %691 = vmatprep.subr.mxu0 0.0
    %692 = vmatpush2.msra.mxu0 0.0
    %693 = vmatprep.subr.mxu0 0.0
    %694 = vmatpush2.msra.mxu0 0.0
    %695 = vmatprep.subr.mxu0 0.0
    %696 = vmatpush2.msra.mxu0 0.0
    %697 = vmatprep.subr.mxu0 0.0
    %698 = vmatpush2.msra.mxu0 0.0
    %699 = vmatprep.subr.mxu0 0.0
    %700 = vmatpush2.msra.mxu0 0.0
    %701 = vmatprep.subr.mxu0 0.0
    %702 = vmatpush2.msra.mxu0 0.0
    %703 = vmatprep.mubr.f32.mxu0 0.0
    %704 = vmatmul.mubr.f32.gmra.mxu0 %v637
    %v705 = vpop.f32.mrf.mxu0
    %v706 = vadd.f32 %v631, %v705
    %v707 = vpop.f32.mrf.mxu0
    %708 = vdwg.mxu0
    %v709 = vadd.f32 %v706, %v57
    %v710 = vtanh.pop %v709
    %v711 = vmul.f32 %v710, %v49
    %v712 = vadd.f32 %v711, %v50
    %v713 = vmul.f32 %v712, %v432
    %715 = vrot.lane.b32.xlu0 %v712, 64
    %v716 = vpop.permute.xlu0 %715
    %v718 = vmul.f32 %v712, %v716
    %720 = vrot.lane.b32.xlu0 %v718, 32
    %v721 = vpop.permute.xlu0 %720
    %v723 = vadd.f32 %v713, %v721
    %v724 = vtanh.pop %v723
    %726 = vrot.lane.b32.xlu0 %v724, 64
    %v727 = vpop.permute.xlu0 %726
    %v729 = vmul.f32 %v712, %v727
    %731 = vrot.lane.b32.xlu0 %v729, 64
    %v732 = vpop.permute.xlu0 %731
    %734 = vst.msk [vmem:[#allocation2 + $0x2] sm:$0x3] %vm443, %v732
    %v735 = vld [vmem:[%s2] sm:$0xff]
    %v736 = vld [vmem:[%s2 + $0x8] sm:$0xff]
    %v737 = vld [vmem:[%s2 + $0x10] sm:$0xff]
    %v738 = vld [vmem:[%s2 + $0x18] sm:$0xff]
    %739 = vmatprep.subr.mxu0 0.0
    %740 = vmatpush1.msra.mxu0 0.0
    %741 = vmatprep.subr.mxu0 0.0
    %742 = vmatpush1.msra.mxu0 0.0
    %743 = vmatprep.subr.mxu0 0.0
    %744 = vmatpush1.msra.mxu0 0.0
    %745 = vmatprep.subr.mxu0 0.0
    %746 = vmatpush1.msra.mxu0 0.0
    %747 = vmatprep.subr.mxu0 0.0
    %748 = vmatpush1.msra.mxu0 0.0
    %749 = vmatprep.subr.mxu0 0.0
    %750 = vmatpush1.msra.mxu0 0.0
    %751 = vmatprep.subr.mxu0 0.0
    %752 = vmatpush1.msra.mxu0 0.0
    %753 = vmatprep.subr.mxu0 0.0
    %754 = vmatpush1.msra.mxu0 0.0
    %755 = vmatprep.subr.mxu0 0.0
    %756 = vmatpush1.msra.mxu0 0.0
    %757 = vmatprep.subr.mxu0 0.0
    %758 = vmatpush1.msra.mxu0 0.0
    %759 = vmatprep.subr.mxu0 0.0
    %760 = vmatpush1.msra.mxu0 0.0
    %761 = vmatprep.subr.mxu0 0.0
    %762 = vmatpush1.msra.mxu0 0.0
    %763 = vmatprep.subr.mxu0 0.0
    %764 = vmatpush1.msra.mxu0 %v738
    %765 = vmatprep.subr.mxu0 0.0
    %766 = vmatpush1.msra.mxu0 %v737
    %767 = vmatprep.subr.mxu0 0.0
    %768 = vmatpush1.msra.mxu0 %v736
    %769 = vmatprep.subr.mxu0 0.0
    %770 = vmatpush1.msra.mxu0 %v735
    %771 = vmatprep.subr.mxu0 0.0
    %772 = vmatpush2.msra.mxu0 0.0
    %773 = vmatprep.subr.mxu0 0.0
    %774 = vmatpush2.msra.mxu0 0.0
    %775 = vmatprep.subr.mxu0 0.0
    %776 = vmatpush2.msra.mxu0 0.0
    %777 = vmatprep.subr.mxu0 0.0
    %778 = vmatpush2.msra.mxu0 0.0
    %779 = vmatprep.subr.mxu0 0.0
    %780 = vmatpush2.msra.mxu0 0.0
    %781 = vmatprep.subr.mxu0 0.0
    %782 = vmatpush2.msra.mxu0 0.0
    %783 = vmatprep.subr.mxu0 0.0
    %784 = vmatpush2.msra.mxu0 0.0
    %785 = vmatprep.subr.mxu0 0.0
    %786 = vmatpush2.msra.mxu0 0.0
    %787 = vmatprep.subr.mxu0 0.0
    %788 = vmatpush2.msra.mxu0 0.0
    %789 = vmatprep.subr.mxu0 0.0
    %790 = vmatpush2.msra.mxu0 0.0
    %791 = vmatprep.subr.mxu0 0.0
    %792 = vmatpush2.msra.mxu0 0.0
    %793 = vmatprep.subr.mxu0 0.0
    %794 = vmatpush2.msra.mxu0 0.0
    %795 = vmatprep.subr.mxu0 0.0
    %796 = vmatpush2.msra.mxu0 0.0
    %797 = vmatprep.subr.mxu0 0.0
    %798 = vmatpush2.msra.mxu0 0.0
    %799 = vmatprep.subr.mxu0 0.0
    %800 = vmatpush2.msra.mxu0 0.0
    %801 = vmatprep.subr.mxu0 0.0
    %802 = vmatpush2.msra.mxu0 0.0
    %803 = vmatprep.mubr.f32.mxu0 0.0
    %804 = vmatmul.mubr.f32.gmra.mxu0 %v637
    %v805 = vpop.f32.mrf.mxu0
    %v806 = vadd.f32 0.0, %v805
    %v807 = vpop.f32.mrf.mxu0
    %808 = vdwg.mxu0
    %v810 = vrot.slane %v806, 4
    %v812 = vadd.f32 %v150, %v810
    %v813 = vtanh.pop %v812
    %v814 = vmul.f32 %v813, %v49
    %v815 = vadd.f32 %v814, %v50
    %v817 = vrot.slane %v539, 6
    %v819 = vmul.f32 %v815, %v817
    %821 = vrot.lane.b32.xlu0 %v815, 64
    %v822 = vpop.permute.xlu0 %821
    %v824 = vmul.f32 %v815, %v822
    %826 = vrot.lane.b32.xlu0 %v824, 32
    %v827 = vpop.permute.xlu0 %826
    %v829 = vadd.f32 %v819, %v827
    %v830 = vtanh.pop %v829
    %832 = vrot.lane.b32.xlu0 %v830, 64
    %v833 = vpop.permute.xlu0 %832
    %v835 = vmul.f32 %v815, %v833
    %837 = vrot.lane.b32.xlu0 %v835, 32
    %v838 = vpop.permute.xlu0 %837
    %vm840 = vcmask 259076
    %841 = vst.msk [vmem:[#allocation2] sm:$0x30] %vm840, %v838
    %v842 = vld [vmem:[%s4] sm:$0xff]
    %v843 = vld [vmem:[%s4 + $0x8] sm:$0xff]
    %v844 = vld [vmem:[%s4 + $0x10] sm:$0xff]
    %v845 = vld [vmem:[%s4 + $0x18] sm:$0xff]
    %v846 = vld [vmem:[%s5] sm:$0xff]
    %v847 = vld [vmem:[%s5 + $0x8] sm:$0xff]
    %v848 = vld [vmem:[%s5 + $0x10] sm:$0xff]
    %v849 = vld [vmem:[%s5 + $0x18] sm:$0xff]
    %850 = vrot.lane.b32.xlu0 %v729, 32
    %v851 = vpop.permute.xlu0 %850
    %v852 = vsel %vm167, %v851, 0
    %854 = vmatprep.subr.mxu0 0.0
    %855 = vmatpush1.msra.mxu0 0.0
    %856 = vmatprep.subr.mxu0 0.0
    %857 = vmatpush1.msra.mxu0 0.0
    %858 = vmatprep.subr.mxu0 0.0
    %859 = vmatpush1.msra.mxu0 0.0
    %860 = vmatprep.subr.mxu0 0.0
    %861 = vmatpush1.msra.mxu0 0.0
    %862 = vmatprep.subr.mxu0 0.0
    %863 = vmatpush1.msra.mxu0 0.0
    %864 = vmatprep.subr.mxu0 0.0
    %865 = vmatpush1.msra.mxu0 0.0
    %866 = vmatprep.subr.mxu0 0.0
    %867 = vmatpush1.msra.mxu0 0.0
    %868 = vmatprep.subr.mxu0 0.0
    %869 = vmatpush1.msra.mxu0 0.0
    %870 = vmatprep.subr.mxu0 0.0
    %871 = vmatpush1.msra.mxu0 0.0
    %872 = vmatprep.subr.mxu0 0.0
    %873 = vmatpush1.msra.mxu0 0.0
    %874 = vmatprep.subr.mxu0 0.0
    %875 = vmatpush1.msra.mxu0 0.0
    %876 = vmatprep.subr.mxu0 0.0
    %877 = vmatpush1.msra.mxu0 0.0
    %878 = vmatprep.subr.mxu0 0.0
    %879 = vmatpush1.msra.mxu0 %v849
    %880 = vmatprep.subr.mxu0 0.0
    %881 = vmatpush1.msra.mxu0 %v848
    %882 = vmatprep.subr.mxu0 0.0
    %883 = vmatpush1.msra.mxu0 %v847
    %884 = vmatprep.subr.mxu0 0.0
    %885 = vmatpush1.msra.mxu0 %v846
    %886 = vmatprep.subr.mxu0 0.0
    %887 = vmatpush2.msra.mxu0 0.0
    %888 = vmatprep.subr.mxu0 0.0
    %889 = vmatpush2.msra.mxu0 0.0
    %890 = vmatprep.subr.mxu0 0.0
    %891 = vmatpush2.msra.mxu0 0.0
    %892 = vmatprep.subr.mxu0 0.0
    %893 = vmatpush2.msra.mxu0 0.0
    %894 = vmatprep.subr.mxu0 0.0
    %895 = vmatpush2.msra.mxu0 0.0
    %896 = vmatprep.subr.mxu0 0.0
    %897 = vmatpush2.msra.mxu0 0.0
    %898 = vmatprep.subr.mxu0 0.0
    %899 = vmatpush2.msra.mxu0 0.0
    %900 = vmatprep.subr.mxu0 0.0
    %901 = vmatpush2.msra.mxu0 0.0
    %902 = vmatprep.subr.mxu0 0.0
    %903 = vmatpush2.msra.mxu0 0.0
    %904 = vmatprep.subr.mxu0 0.0
    %905 = vmatpush2.msra.mxu0 0.0
    %906 = vmatprep.subr.mxu0 0.0
    %907 = vmatpush2.msra.mxu0 0.0
    %908 = vmatprep.subr.mxu0 0.0
    %909 = vmatpush2.msra.mxu0 0.0
    %910 = vmatprep.subr.mxu0 0.0
    %911 = vmatpush2.msra.mxu0 0.0
    %912 = vmatprep.subr.mxu0 0.0
    %913 = vmatpush2.msra.mxu0 0.0
    %914 = vmatprep.subr.mxu0 0.0
    %915 = vmatpush2.msra.mxu0 0.0
    %916 = vmatprep.subr.mxu0 0.0
    %917 = vmatpush2.msra.mxu0 0.0
    %918 = vmatprep.mubr.f32.mxu0 0.0
    %919 = vmatmul.mubr.f32.gmra.mxu0 %v852
    %v920 = vpop.f32.mrf.mxu0
    %v921 = vadd.f32 0.0, %v920
    %v922 = vpop.f32.mrf.mxu0
    %923 = vdwg.mxu0
    %v924 = vrot.slane %v835, 4
    %925 = vrot.lane.b32.xlu0 %v924, 32
    %v926 = vpop.permute.xlu0 %925
    %v927 = vsel %vm167, %v926, 0
    %929 = vmatprep.subr.mxu0 0.0
    %930 = vmatpush1.msra.mxu0 0.0
    %931 = vmatprep.subr.mxu0 0.0
    %932 = vmatpush1.msra.mxu0 0.0
    %933 = vmatprep.subr.mxu0 0.0
    %934 = vmatpush1.msra.mxu0 0.0
    %935 = vmatprep.subr.mxu0 0.0
    %936 = vmatpush1.msra.mxu0 0.0
    %937 = vmatprep.subr.mxu0 0.0
    %938 = vmatpush1.msra.mxu0 0.0
    %939 = vmatprep.subr.mxu0 0.0
    %940 = vmatpush1.msra.mxu0 0.0
    %941 = vmatprep.subr.mxu0 0.0
    %942 = vmatpush1.msra.mxu0 0.0
    %943 = vmatprep.subr.mxu0 0.0
    %944 = vmatpush1.msra.mxu0 0.0
    %945 = vmatprep.subr.mxu0 0.0
    %946 = vmatpush1.msra.mxu0 0.0
    %947 = vmatprep.subr.mxu0 0.0
    %948 = vmatpush1.msra.mxu0 0.0
    %949 = vmatprep.subr.mxu0 0.0
    %950 = vmatpush1.msra.mxu0 0.0
    %951 = vmatprep.subr.mxu0 0.0
    %952 = vmatpush1.msra.mxu0 0.0
    %953 = vmatprep.subr.mxu0 0.0
    %954 = vmatpush1.msra.mxu0 %v845
    %955 = vmatprep.subr.mxu0 0.0
    %956 = vmatpush1.msra.mxu0 %v844
    %957 = vmatprep.subr.mxu0 0.0
    %958 = vmatpush1.msra.mxu0 %v843
    %959 = vmatprep.subr.mxu0 0.0
    %960 = vmatpush1.msra.mxu0 %v842
    %961 = vmatprep.subr.mxu0 0.0
    %962 = vmatpush2.msra.mxu0 0.0
    %963 = vmatprep.subr.mxu0 0.0
    %964 = vmatpush2.msra.mxu0 0.0
    %965 = vmatprep.subr.mxu0 0.0
    %966 = vmatpush2.msra.mxu0 0.0
    %967 = vmatprep.subr.mxu0 0.0
    %968 = vmatpush2.msra.mxu0 0.0
    %969 = vmatprep.subr.mxu0 0.0
    %970 = vmatpush2.msra.mxu0 0.0
    %971 = vmatprep.subr.mxu0 0.0
    %972 = vmatpush2.msra.mxu0 0.0
    %973 = vmatprep.subr.mxu0 0.0
    %974 = vmatpush2.msra.mxu0 0.0
    %975 = vmatprep.subr.mxu0 0.0
    %976 = vmatpush2.msra.mxu0 0.0
    %977 = vmatprep.subr.mxu0 0.0
    %978 = vmatpush2.msra.mxu0 0.0
    %979 = vmatprep.subr.mxu0 0.0
    %980 = vmatpush2.msra.mxu0 0.0
    %981 = vmatprep.subr.mxu0 0.0
    %982 = vmatpush2.msra.mxu0 0.0
    %983 = vmatprep.subr.mxu0 0.0
    %984 = vmatpush2.msra.mxu0 0.0
    %985 = vmatprep.subr.mxu0 0.0
    %986 = vmatpush2.msra.mxu0 0.0
    %987 = vmatprep.subr.mxu0 0.0
    %988 = vmatpush2.msra.mxu0 0.0
    %989 = vmatprep.subr.mxu0 0.0
    %990 = vmatpush2.msra.mxu0 0.0
    %991 = vmatprep.subr.mxu0 0.0
    %992 = vmatpush2.msra.mxu0 0.0
    %993 = vmatprep.mubr.f32.mxu0 0.0
    %994 = vmatmul.mubr.f32.gmra.mxu0 %v927
    %v995 = vpop.f32.mrf.mxu0
    %v996 = vadd.f32 %v921, %v995
    %v997 = vpop.f32.mrf.mxu0
    %998 = vdwg.mxu0
    %v999 = vadd.f32 %v996, %v57
    %v1000 = vtanh.pop %v999
    %v1001 = vmul.f32 %v1000, %v49
    %v1002 = vadd.f32 %v1001, %v50
    %v1003 = vmul.f32 %v1002, %v723
    %1005 = vrot.lane.b32.xlu0 %v1002, 64
    %v1006 = vpop.permute.xlu0 %1005
    %v1008 = vmul.f32 %v1002, %v1006
    %1010 = vrot.lane.b32.xlu0 %v1008, 32
    %v1011 = vpop.permute.xlu0 %1010
    %v1013 = vadd.f32 %v1003, %v1011
    %v1014 = vtanh.pop %v1013
    %1016 = vrot.lane.b32.xlu0 %v1014, 64
    %v1017 = vpop.permute.xlu0 %1016
    %v1019 = vmul.f32 %v1002, %v1017
    %1021 = vrot.lane.b32.xlu0 %v1019, 64
    %v1022 = vpop.permute.xlu0 %1021
    %1024 = vst.msk [vmem:[#allocation2 + $0x4] sm:$0x3] %vm443, %v1022
    %v1025 = vld [vmem:[%s2] sm:$0xff]
    %v1026 = vld [vmem:[%s2 + $0x8] sm:$0xff]
    %v1027 = vld [vmem:[%s2 + $0x10] sm:$0xff]
    %v1028 = vld [vmem:[%s2 + $0x18] sm:$0xff]
    %1029 = vmatprep.subr.mxu0 0.0
    %1030 = vmatpush1.msra.mxu0 0.0
    %1031 = vmatprep.subr.mxu0 0.0
    %1032 = vmatpush1.msra.mxu0 0.0
    %1033 = vmatprep.subr.mxu0 0.0
    %1034 = vmatpush1.msra.mxu0 0.0
    %1035 = vmatprep.subr.mxu0 0.0
    %1036 = vmatpush1.msra.mxu0 0.0
    %1037 = vmatprep.subr.mxu0 0.0
    %1038 = vmatpush1.msra.mxu0 0.0
    %1039 = vmatprep.subr.mxu0 0.0
    %1040 = vmatpush1.msra.mxu0 0.0
    %1041 = vmatprep.subr.mxu0 0.0
    %1042 = vmatpush1.msra.mxu0 0.0
    %1043 = vmatprep.subr.mxu0 0.0
    %1044 = vmatpush1.msra.mxu0 0.0
    %1045 = vmatprep.subr.mxu0 0.0
    %1046 = vmatpush1.msra.mxu0 0.0
    %1047 = vmatprep.subr.mxu0 0.0
    %1048 = vmatpush1.msra.mxu0 0.0
    %1049 = vmatprep.subr.mxu0 0.0
    %1050 = vmatpush1.msra.mxu0 0.0
    %1051 = vmatprep.subr.mxu0 0.0
    %1052 = vmatpush1.msra.mxu0 0.0
    %1053 = vmatprep.subr.mxu0 0.0
    %1054 = vmatpush1.msra.mxu0 %v1028
    %1055 = vmatprep.subr.mxu0 0.0
    %1056 = vmatpush1.msra.mxu0 %v1027
    %1057 = vmatprep.subr.mxu0 0.0
    %1058 = vmatpush1.msra.mxu0 %v1026
    %1059 = vmatprep.subr.mxu0 0.0
    %1060 = vmatpush1.msra.mxu0 %v1025
    %1061 = vmatprep.subr.mxu0 0.0
    %1062 = vmatpush2.msra.mxu0 0.0
    %1063 = vmatprep.subr.mxu0 0.0
    %1064 = vmatpush2.msra.mxu0 0.0
    %1065 = vmatprep.subr.mxu0 0.0
    %1066 = vmatpush2.msra.mxu0 0.0
    %1067 = vmatprep.subr.mxu0 0.0
    %1068 = vmatpush2.msra.mxu0 0.0
    %1069 = vmatprep.subr.mxu0 0.0
    %1070 = vmatpush2.msra.mxu0 0.0
    %1071 = vmatprep.subr.mxu0 0.0
    %1072 = vmatpush2.msra.mxu0 0.0
    %1073 = vmatprep.subr.mxu0 0.0
    %1074 = vmatpush2.msra.mxu0 0.0
    %1075 = vmatprep.subr.mxu0 0.0
    %1076 = vmatpush2.msra.mxu0 0.0
    %1077 = vmatprep.subr.mxu0 0.0
    %1078 = vmatpush2.msra.mxu0 0.0
    %1079 = vmatprep.subr.mxu0 0.0
    %1080 = vmatpush2.msra.mxu0 0.0
    %1081 = vmatprep.subr.mxu0 0.0
    %1082 = vmatpush2.msra.mxu0 0.0
    %1083 = vmatprep.subr.mxu0 0.0
    %1084 = vmatpush2.msra.mxu0 0.0
    %1085 = vmatprep.subr.mxu0 0.0
    %1086 = vmatpush2.msra.mxu0 0.0
    %1087 = vmatprep.subr.mxu0 0.0
    %1088 = vmatpush2.msra.mxu0 0.0
    %1089 = vmatprep.subr.mxu0 0.0
    %1090 = vmatpush2.msra.mxu0 0.0
    %1091 = vmatprep.subr.mxu0 0.0
    %1092 = vmatpush2.msra.mxu0 0.0
    %1093 = vmatprep.mubr.f32.mxu0 0.0
    %1094 = vmatmul.mubr.f32.gmra.mxu0 %v927
    %v1095 = vpop.f32.mrf.mxu0
    %v1096 = vadd.f32 0.0, %v1095
    %v1097 = vpop.f32.mrf.mxu0
    %1098 = vdwg.mxu0
    %v1100 = vrot.slane %v1096, 2
    %v1102 = vadd.f32 %v150, %v1100
    %v1103 = vtanh.pop %v1102
    %v1104 = vmul.f32 %v1103, %v49
    %v1105 = vadd.f32 %v1104, %v50
    %v1107 = vrot.slane %v829, 6
    %v1109 = vmul.f32 %v1105, %v1107
    %1111 = vrot.lane.b32.xlu0 %v1105, 64
    %v1112 = vpop.permute.xlu0 %1111
    %v1114 = vmul.f32 %v1105, %v1112
    %1116 = vrot.lane.b32.xlu0 %v1114, 32
    %v1117 = vpop.permute.xlu0 %1116
    %v1119 = vadd.f32 %v1109, %v1117
    %v1120 = vtanh.pop %v1119
    %1122 = vrot.lane.b32.xlu0 %v1120, 64
    %v1123 = vpop.permute.xlu0 %1122
    %v1125 = vmul.f32 %v1105, %v1123
    %1127 = vrot.lane.b32.xlu0 %v1125, 32
    %v1128 = vpop.permute.xlu0 %1127
    %vm1130 = vcmask 261126
    %1131 = vst.msk [vmem:[#allocation2] sm:$0xc0] %vm1130, %v1128
    %v1132 = vld [vmem:[%s4] sm:$0xff]
    %v1133 = vld [vmem:[%s4 + $0x8] sm:$0xff]
    %v1134 = vld [vmem:[%s4 + $0x10] sm:$0xff]
    %v1135 = vld [vmem:[%s4 + $0x18] sm:$0xff]
    %v1136 = vld [vmem:[%s5] sm:$0xff]
    %v1137 = vld [vmem:[%s5 + $0x8] sm:$0xff]
    %v1138 = vld [vmem:[%s5 + $0x10] sm:$0xff]
    %v1139 = vld [vmem:[%s5 + $0x18] sm:$0xff]
    %1140 = vrot.lane.b32.xlu0 %v1019, 32
    %v1141 = vpop.permute.xlu0 %1140
    %v1142 = vsel %vm167, %v1141, 0
    %1144 = vmatprep.subr.mxu0 0.0
    %1145 = vmatpush1.msra.mxu0 0.0
    %1146 = vmatprep.subr.mxu0 0.0
    %1147 = vmatpush1.msra.mxu0 0.0
    %1148 = vmatprep.subr.mxu0 0.0
    %1149 = vmatpush1.msra.mxu0 0.0
    %1150 = vmatprep.subr.mxu0 0.0
    %1151 = vmatpush1.msra.mxu0 0.0
    %1152 = vmatprep.subr.mxu0 0.0
    %1153 = vmatpush1.msra.mxu0 0.0
    %1154 = vmatprep.subr.mxu0 0.0
    %1155 = vmatpush1.msra.mxu0 0.0
    %1156 = vmatprep.subr.mxu0 0.0
    %1157 = vmatpush1.msra.mxu0 0.0
    %1158 = vmatprep.subr.mxu0 0.0
    %1159 = vmatpush1.msra.mxu0 0.0
    %1160 = vmatprep.subr.mxu0 0.0
    %1161 = vmatpush1.msra.mxu0 0.0
    %1162 = vmatprep.subr.mxu0 0.0
    %1163 = vmatpush1.msra.mxu0 0.0
    %1164 = vmatprep.subr.mxu0 0.0
    %1165 = vmatpush1.msra.mxu0 0.0
    %1166 = vmatprep.subr.mxu0 0.0
    %1167 = vmatpush1.msra.mxu0 0.0
    %1168 = vmatprep.subr.mxu0 0.0
    %1169 = vmatpush1.msra.mxu0 %v1139
    %1170 = vmatprep.subr.mxu0 0.0
    %1171 = vmatpush1.msra.mxu0 %v1138
    %1172 = vmatprep.subr.mxu0 0.0
    %1173 = vmatpush1.msra.mxu0 %v1137
    %1174 = vmatprep.subr.mxu0 0.0
    %1175 = vmatpush1.msra.mxu0 %v1136
    %1176 = vmatprep.subr.mxu0 0.0
    %1177 = vmatpush2.msra.mxu0 0.0
    %1178 = vmatprep.subr.mxu0 0.0
    %1179 = vmatpush2.msra.mxu0 0.0
    %1180 = vmatprep.subr.mxu0 0.0
    %1181 = vmatpush2.msra.mxu0 0.0
    %1182 = vmatprep.subr.mxu0 0.0
    %1183 = vmatpush2.msra.mxu0 0.0
    %1184 = vmatprep.subr.mxu0 0.0
    %1185 = vmatpush2.msra.mxu0 0.0
    %1186 = vmatprep.subr.mxu0 0.0
    %1187 = vmatpush2.msra.mxu0 0.0
    %1188 = vmatprep.subr.mxu0 0.0
    %1189 = vmatpush2.msra.mxu0 0.0
    %1190 = vmatprep.subr.mxu0 0.0
    %1191 = vmatpush2.msra.mxu0 0.0
    %1192 = vmatprep.subr.mxu0 0.0
    %1193 = vmatpush2.msra.mxu0 0.0
    %1194 = vmatprep.subr.mxu0 0.0
    %1195 = vmatpush2.msra.mxu0 0.0
    %1196 = vmatprep.subr.mxu0 0.0
    %1197 = vmatpush2.msra.mxu0 0.0
    %1198 = vmatprep.subr.mxu0 0.0
    %1199 = vmatpush2.msra.mxu0 0.0
    %1200 = vmatprep.subr.mxu0 0.0
    %1201 = vmatpush2.msra.mxu0 0.0
    %1202 = vmatprep.subr.mxu0 0.0
    %1203 = vmatpush2.msra.mxu0 0.0
    %1204 = vmatprep.subr.mxu0 0.0
    %1205 = vmatpush2.msra.mxu0 0.0
    %1206 = vmatprep.subr.mxu0 0.0
    %1207 = vmatpush2.msra.mxu0 0.0
    %1208 = vmatprep.mubr.f32.mxu0 0.0
    %1209 = vmatmul.mubr.f32.gmra.mxu0 %v1142
    %v1210 = vpop.f32.mrf.mxu0
    %v1211 = vadd.f32 0.0, %v1210
    %v1212 = vpop.f32.mrf.mxu0
    %1213 = vdwg.mxu0
    %v1214 = vrot.slane %v1125, 6
    %1215 = vrot.lane.b32.xlu0 %v1214, 32
    %v1216 = vpop.permute.xlu0 %1215
    %v1217 = vsel %vm167, %v1216, 0
    %1219 = vmatprep.subr.mxu0 0.0
    %1220 = vmatpush1.msra.mxu0 0.0
    %1221 = vmatprep.subr.mxu0 0.0
    %1222 = vmatpush1.msra.mxu0 0.0
    %1223 = vmatprep.subr.mxu0 0.0
    %1224 = vmatpush1.msra.mxu0 0.0
    %1225 = vmatprep.subr.mxu0 0.0
    %1226 = vmatpush1.msra.mxu0 0.0
    %1227 = vmatprep.subr.mxu0 0.0
    %1228 = vmatpush1.msra.mxu0 0.0
    %1229 = vmatprep.subr.mxu0 0.0
    %1230 = vmatpush1.msra.mxu0 0.0
    %1231 = vmatprep.subr.mxu0 0.0
    %1232 = vmatpush1.msra.mxu0 0.0
    %1233 = vmatprep.subr.mxu0 0.0
    %1234 = vmatpush1.msra.mxu0 0.0
    %1235 = vmatprep.subr.mxu0 0.0
    %1236 = vmatpush1.msra.mxu0 0.0
    %1237 = vmatprep.subr.mxu0 0.0
    %1238 = vmatpush1.msra.mxu0 0.0
    %1239 = vmatprep.subr.mxu0 0.0
    %1240 = vmatpush1.msra.mxu0 0.0
    %1241 = vmatprep.subr.mxu0 0.0
    %1242 = vmatpush1.msra.mxu0 0.0
    %1243 = vmatprep.subr.mxu0 0.0
    %1244 = vmatpush1.msra.mxu0 %v1135
    %1245 = vmatprep.subr.mxu0 0.0
    %1246 = vmatpush1.msra.mxu0 %v1134
    %1247 = vmatprep.subr.mxu0 0.0
    %1248 = vmatpush1.msra.mxu0 %v1133
    %1249 = vmatprep.subr.mxu0 0.0
    %1250 = vmatpush1.msra.mxu0 %v1132
    %1251 = vmatprep.subr.mxu0 0.0
    %1252 = vmatpush2.msra.mxu0 0.0
    %1253 = vmatprep.subr.mxu0 0.0
    %1254 = vmatpush2.msra.mxu0 0.0
    %1255 = vmatprep.subr.mxu0 0.0
    %1256 = vmatpush2.msra.mxu0 0.0
    %1257 = vmatprep.subr.mxu0 0.0
    %1258 = vmatpush2.msra.mxu0 0.0
    %1259 = vmatprep.subr.mxu0 0.0
    %1260 = vmatpush2.msra.mxu0 0.0
    %1261 = vmatprep.subr.mxu0 0.0
    %1262 = vmatpush2.msra.mxu0 0.0
    %1263 = vmatprep.subr.mxu0 0.0
    %1264 = vmatpush2.msra.mxu0 0.0
    %1265 = vmatprep.subr.mxu0 0.0
    %1266 = vmatpush2.msra.mxu0 0.0
    %1267 = vmatprep.subr.mxu0 0.0
    %1268 = vmatpush2.msra.mxu0 0.0
    %1269 = vmatprep.subr.mxu0 0.0
    %1270 = vmatpush2.msra.mxu0 0.0
    %1271 = vmatprep.subr.mxu0 0.0
    %1272 = vmatpush2.msra.mxu0 0.0
    %1273 = vmatprep.subr.mxu0 0.0
    %1274 = vmatpush2.msra.mxu0 0.0
    %1275 = vmatprep.subr.mxu0 0.0
    %1276 = vmatpush2.msra.mxu0 0.0
    %1277 = vmatprep.subr.mxu0 0.0
    %1278 = vmatpush2.msra.mxu0 0.0
    %1279 = vmatprep.subr.mxu0 0.0
    %1280 = vmatpush2.msra.mxu0 0.0
    %1281 = vmatprep.subr.mxu0 0.0
    %1282 = vmatpush2.msra.mxu0 0.0
    %1283 = vmatprep.mubr.f32.mxu0 0.0
    %1284 = vmatmul.mubr.f32.gmra.mxu0 %v1217
    %v1285 = vpop.f32.mrf.mxu0
    %v1286 = vadd.f32 %v1211, %v1285
    %v1287 = vpop.f32.mrf.mxu0
    %1288 = vdwg.mxu0
    %v1289 = vadd.f32 %v1286, %v57
    %v1290 = vtanh.pop %v1289
    %v1291 = vmul.f32 %v1290, %v49
    %v1292 = vadd.f32 %v1291, %v50
    %v1293 = vmul.f32 %v1292, %v1013
    %1295 = vrot.lane.b32.xlu0 %v1292, 64
    %v1296 = vpop.permute.xlu0 %1295
    %v1298 = vmul.f32 %v1292, %v1296
    %1300 = vrot.lane.b32.xlu0 %v1298, 32
    %v1301 = vpop.permute.xlu0 %1300
    %v1303 = vadd.f32 %v1293, %v1301
    %v1304 = vtanh.pop %v1303
    %1306 = vrot.lane.b32.xlu0 %v1304, 64
    %v1307 = vpop.permute.xlu0 %1306
    %v1309 = vmul.f32 %v1292, %v1307
    %1311 = vrot.lane.b32.xlu0 %v1309, 64
    %v1312 = vpop.permute.xlu0 %1311
    %1314 = vst.msk [vmem:[#allocation2 + $0x6] sm:$0x3] %vm443, %v1312
    %v1315 = vld [vmem:[%s2] sm:$0xff]
    %v1316 = vld [vmem:[%s2 + $0x8] sm:$0xff]
    %v1317 = vld [vmem:[%s2 + $0x10] sm:$0xff]
    %v1318 = vld [vmem:[%s2 + $0x18] sm:$0xff]
    %1319 = vmatprep.subr.mxu0 0.0
    %1320 = vmatpush1.msra.mxu0 0.0
    %1321 = vmatprep.subr.mxu0 0.0
    %1322 = vmatpush1.msra.mxu0 0.0
    %1323 = vmatprep.subr.mxu0 0.0
    %1324 = vmatpush1.msra.mxu0 0.0
    %1325 = vmatprep.subr.mxu0 0.0
    %1326 = vmatpush1.msra.mxu0 0.0
    %1327 = vmatprep.subr.mxu0 0.0
    %1328 = vmatpush1.msra.mxu0 0.0
    %1329 = vmatprep.subr.mxu0 0.0
    %1330 = vmatpush1.msra.mxu0 0.0
    %1331 = vmatprep.subr.mxu0 0.0
    %1332 = vmatpush1.msra.mxu0 0.0
    %1333 = vmatprep.subr.mxu0 0.0
    %1334 = vmatpush1.msra.mxu0 0.0
    %1335 = vmatprep.subr.mxu0 0.0
    %1336 = vmatpush1.msra.mxu0 0.0
    %1337 = vmatprep.subr.mxu0 0.0
    %1338 = vmatpush1.msra.mxu0 0.0
    %1339 = vmatprep.subr.mxu0 0.0
    %1340 = vmatpush1.msra.mxu0 0.0
    %1341 = vmatprep.subr.mxu0 0.0
    %1342 = vmatpush1.msra.mxu0 0.0
    %1343 = vmatprep.subr.mxu0 0.0
    %1344 = vmatpush1.msra.mxu0 %v1318
    %1345 = vmatprep.subr.mxu0 0.0
    %1346 = vmatpush1.msra.mxu0 %v1317
    %1347 = vmatprep.subr.mxu0 0.0
    %1348 = vmatpush1.msra.mxu0 %v1316
    %1349 = vmatprep.subr.mxu0 0.0
    %1350 = vmatpush1.msra.mxu0 %v1315
    %1351 = vmatprep.subr.mxu0 0.0
    %1352 = vmatpush2.msra.mxu0 0.0
    %1353 = vmatprep.subr.mxu0 0.0
    %1354 = vmatpush2.msra.mxu0 0.0
    %1355 = vmatprep.subr.mxu0 0.0
    %1356 = vmatpush2.msra.mxu0 0.0
    %1357 = vmatprep.subr.mxu0 0.0
    %1358 = vmatpush2.msra.mxu0 0.0
    %1359 = vmatprep.subr.mxu0 0.0
    %1360 = vmatpush2.msra.mxu0 0.0
    %1361 = vmatprep.subr.mxu0 0.0
    %1362 = vmatpush2.msra.mxu0 0.0
    %1363 = vmatprep.subr.mxu0 0.0
    %1364 = vmatpush2.msra.mxu0 0.0
    %1365 = vmatprep.subr.mxu0 0.0
    %1366 = vmatpush2.msra.mxu0 0.0
    %1367 = vmatprep.subr.mxu0 0.0
    %1368 = vmatpush2.msra.mxu0 0.0
    %1369 = vmatprep.subr.mxu0 0.0
    %1370 = vmatpush2.msra.mxu0 0.0
    %1371 = vmatprep.subr.mxu0 0.0
    %1372 = vmatpush2.msra.mxu0 0.0
    %1373 = vmatprep.subr.mxu0 0.0
    %1374 = vmatpush2.msra.mxu0 0.0
    %1375 = vmatprep.subr.mxu0 0.0
    %1376 = vmatpush2.msra.mxu0 0.0
    %1377 = vmatprep.subr.mxu0 0.0
    %1378 = vmatpush2.msra.mxu0 0.0
    %1379 = vmatprep.subr.mxu0 0.0
    %1380 = vmatpush2.msra.mxu0 0.0
    %1381 = vmatprep.subr.mxu0 0.0
    %1382 = vmatpush2.msra.mxu0 0.0
    %1383 = vmatprep.mubr.f32.mxu0 0.0
    %1384 = vmatmul.mubr.f32.gmra.mxu0 %v1217
    %v1385 = vpop.f32.mrf.mxu0
    %v1386 = vadd.f32 0.0, %v1385
    %v1387 = vpop.f32.mrf.mxu0
    %1388 = vdwg.mxu0
    %v1389 = vadd.f32 %v155, %v1386
    %v1390 = vtanh.pop %v1389
    %v1391 = vmul.f32 %v1390, %v49
    %v1392 = vadd.f32 %v1391, %v50
    %v1394 = vrot.slane %v1119, 6
    %v1396 = vmul.f32 %v1392, %v1394
    %1398 = vrot.lane.b32.xlu0 %v1392, 64
    %v1399 = vpop.permute.xlu0 %1398
    %v1401 = vmul.f32 %v1392, %v1399
    %1403 = vrot.lane.b32.xlu0 %v1401, 32
    %v1404 = vpop.permute.xlu0 %1403
    %v1406 = vadd.f32 %v1396, %v1404
    %v1407 = vtanh.pop %v1406
    %1409 = vrot.lane.b32.xlu0 %v1407, 64
    %v1410 = vpop.permute.xlu0 %1409
    %v1412 = vmul.f32 %v1392, %v1410
    %1414 = vrot.lane.b32.xlu0 %v1412, 32
    %v1415 = vpop.permute.xlu0 %1414
    %1417 = vst.msk [vmem:[#allocation2 + $0x8] sm:$0x3] %vm266, %v1415
    %v1418 = vld [vmem:[%s4] sm:$0xff]
    %v1419 = vld [vmem:[%s4 + $0x8] sm:$0xff]
    %v1420 = vld [vmem:[%s4 + $0x10] sm:$0xff]
    %v1421 = vld [vmem:[%s4 + $0x18] sm:$0xff]
    %v1422 = vld [vmem:[%s5] sm:$0xff]
    %v1423 = vld [vmem:[%s5 + $0x8] sm:$0xff]
    %v1424 = vld [vmem:[%s5 + $0x10] sm:$0xff]
    %v1425 = vld [vmem:[%s5 + $0x18] sm:$0xff]
    %1426 = vrot.lane.b32.xlu0 %v1309, 32
    %v1427 = vpop.permute.xlu0 %1426
    %v1428 = vsel %vm167, %v1427, 0
    %1430 = vmatprep.subr.mxu0 0.0
    %1431 = vmatpush1.msra.mxu0 0.0
    %1432 = vmatprep.subr.mxu0 0.0
    %1433 = vmatpush1.msra.mxu0 0.0
    %1434 = vmatprep.subr.mxu0 0.0
    %1435 = vmatpush1.msra.mxu0 0.0
    %1436 = vmatprep.subr.mxu0 0.0
    %1437 = vmatpush1.msra.mxu0 0.0
    %1438 = vmatprep.subr.mxu0 0.0
    %1439 = vmatpush1.msra.mxu0 0.0
    %1440 = vmatprep.subr.mxu0 0.0
    %1441 = vmatpush1.msra.mxu0 0.0
    %1442 = vmatprep.subr.mxu0 0.0
    %1443 = vmatpush1.msra.mxu0 0.0
    %1444 = vmatprep.subr.mxu0 0.0
    %1445 = vmatpush1.msra.mxu0 0.0
    %1446 = vmatprep.subr.mxu0 0.0
    %1447 = vmatpush1.msra.mxu0 0.0
    %1448 = vmatprep.subr.mxu0 0.0
    %1449 = vmatpush1.msra.mxu0 0.0
    %1450 = vmatprep.subr.mxu0 0.0
    %1451 = vmatpush1.msra.mxu0 0.0
    %1452 = vmatprep.subr.mxu0 0.0
    %1453 = vmatpush1.msra.mxu0 0.0
    %1454 = vmatprep.subr.mxu0 0.0
    %1455 = vmatpush1.msra.mxu0 %v1425
    %1456 = vmatprep.subr.mxu0 0.0
    %1457 = vmatpush1.msra.mxu0 %v1424
    %1458 = vmatprep.subr.mxu0 0.0
    %1459 = vmatpush1.msra.mxu0 %v1423
    %1460 = vmatprep.subr.mxu0 0.0
    %1461 = vmatpush1.msra.mxu0 %v1422
    %1462 = vmatprep.subr.mxu0 0.0
    %1463 = vmatpush2.msra.mxu0 0.0
    %1464 = vmatprep.subr.mxu0 0.0
    %1465 = vmatpush2.msra.mxu0 0.0
    %1466 = vmatprep.subr.mxu0 0.0
    %1467 = vmatpush2.msra.mxu0 0.0
    %1468 = vmatprep.subr.mxu0 0.0
    %1469 = vmatpush2.msra.mxu0 0.0
    %1470 = vmatprep.subr.mxu0 0.0
    %1471 = vmatpush2.msra.mxu0 0.0
    %1472 = vmatprep.subr.mxu0 0.0
    %1473 = vmatpush2.msra.mxu0 0.0
    %1474 = vmatprep.subr.mxu0 0.0
    %1475 = vmatpush2.msra.mxu0 0.0
    %1476 = vmatprep.subr.mxu0 0.0
    %1477 = vmatpush2.msra.mxu0 0.0
    %1478 = vmatprep.subr.mxu0 0.0
    %1479 = vmatpush2.msra.mxu0 0.0
    %1480 = vmatprep.subr.mxu0 0.0
    %1481 = vmatpush2.msra.mxu0 0.0
    %1482 = vmatprep.subr.mxu0 0.0
    %1483 = vmatpush2.msra.mxu0 0.0
    %1484 = vmatprep.subr.mxu0 0.0
    %1485 = vmatpush2.msra.mxu0 0.0
    %1486 = vmatprep.subr.mxu0 0.0
    %1487 = vmatpush2.msra.mxu0 0.0
    %1488 = vmatprep.subr.mxu0 0.0
    %1489 = vmatpush2.msra.mxu0 0.0
    %1490 = vmatprep.subr.mxu0 0.0
    %1491 = vmatpush2.msra.mxu0 0.0
    %1492 = vmatprep.subr.mxu0 0.0
    %1493 = vmatpush2.msra.mxu0 0.0
    %1494 = vmatprep.mubr.f32.mxu0 0.0
    %1495 = vmatmul.mubr.f32.gmra.mxu0 %v1428
    %v1496 = vpop.f32.mrf.mxu0
    %v1497 = vadd.f32 0.0, %v1496
    %v1498 = vpop.f32.mrf.mxu0
    %1499 = vdwg.mxu0
    %v1500 = vsel %vm167, %v1415, 0
    %1502 = vmatprep.subr.mxu0 0.0
    %1503 = vmatpush1.msra.mxu0 0.0
    %1504 = vmatprep.subr.mxu0 0.0
    %1505 = vmatpush1.msra.mxu0 0.0
    %1506 = vmatprep.subr.mxu0 0.0
    %1507 = vmatpush1.msra.mxu0 0.0
    %1508 = vmatprep.subr.mxu0 0.0
    %1509 = vmatpush1.msra.mxu0 0.0
    %1510 = vmatprep.subr.mxu0 0.0
    %1511 = vmatpush1.msra.mxu0 0.0
    %1512 = vmatprep.subr.mxu0 0.0
    %1513 = vmatpush1.msra.mxu0 0.0
    %1514 = vmatprep.subr.mxu0 0.0
    %1515 = vmatpush1.msra.mxu0 0.0
    %1516 = vmatprep.subr.mxu0 0.0
    %1517 = vmatpush1.msra.mxu0 0.0
    %1518 = vmatprep.subr.mxu0 0.0
    %1519 = vmatpush1.msra.mxu0 0.0
    %1520 = vmatprep.subr.mxu0 0.0
    %1521 = vmatpush1.msra.mxu0 0.0
    %1522 = vmatprep.subr.mxu0 0.0
    %1523 = vmatpush1.msra.mxu0 0.0
    %1524 = vmatprep.subr.mxu0 0.0
    %1525 = vmatpush1.msra.mxu0 0.0
    %1526 = vmatprep.subr.mxu0 0.0
    %1527 = vmatpush1.msra.mxu0 %v1421
    %1528 = vmatprep.subr.mxu0 0.0
    %1529 = vmatpush1.msra.mxu0 %v1420
    %1530 = vmatprep.subr.mxu0 0.0
    %1531 = vmatpush1.msra.mxu0 %v1419
    %1532 = vmatprep.subr.mxu0 0.0
    %1533 = vmatpush1.msra.mxu0 %v1418
    %1534 = vmatprep.subr.mxu0 0.0
    %1535 = vmatpush2.msra.mxu0 0.0
    %1536 = vmatprep.subr.mxu0 0.0
    %1537 = vmatpush2.msra.mxu0 0.0
    %1538 = vmatprep.subr.mxu0 0.0
    %1539 = vmatpush2.msra.mxu0 0.0
    %1540 = vmatprep.subr.mxu0 0.0
    %1541 = vmatpush2.msra.mxu0 0.0
    %1542 = vmatprep.subr.mxu0 0.0
    %1543 = vmatpush2.msra.mxu0 0.0
    %1544 = vmatprep.subr.mxu0 0.0
    %1545 = vmatpush2.msra.mxu0 0.0
    %1546 = vmatprep.subr.mxu0 0.0
    %1547 = vmatpush2.msra.mxu0 0.0
    %1548 = vmatprep.subr.mxu0 0.0
    %1549 = vmatpush2.msra.mxu0 0.0
    %1550 = vmatprep.subr.mxu0 0.0
    %1551 = vmatpush2.msra.mxu0 0.0
    %1552 = vmatprep.subr.mxu0 0.0
    %1553 = vmatpush2.msra.mxu0 0.0
    %1554 = vmatprep.subr.mxu0 0.0
    %1555 = vmatpush2.msra.mxu0 0.0
    %1556 = vmatprep.subr.mxu0 0.0
    %1557 = vmatpush2.msra.mxu0 0.0
    %1558 = vmatprep.subr.mxu0 0.0
    %1559 = vmatpush2.msra.mxu0 0.0
    %1560 = vmatprep.subr.mxu0 0.0
    %1561 = vmatpush2.msra.mxu0 0.0
    %1562 = vmatprep.subr.mxu0 0.0
    %1563 = vmatpush2.msra.mxu0 0.0
    %1564 = vmatprep.subr.mxu0 0.0
    %1565 = vmatpush2.msra.mxu0 0.0
    %1566 = vmatprep.mubr.f32.mxu0 0.0
    %1567 = vmatmul.mubr.f32.gmra.mxu0 %v1500
    %v1568 = vpop.f32.mrf.mxu0
    %v1569 = vadd.f32 %v1497, %v1568
    %v1570 = vpop.f32.mrf.mxu0
    %1571 = vdwg.mxu0
    %v1572 = vadd.f32 %v1569, %v57
    %v1573 = vtanh.pop %v1572
    %v1574 = vmul.f32 %v1573, %v49
    %v1575 = vadd.f32 %v1574, %v50
    %v1576 = vmul.f32 %v1575, %v1303
    %1578 = vrot.lane.b32.xlu0 %v1575, 64
    %v1579 = vpop.permute.xlu0 %1578
    %v1581 = vmul.f32 %v1575, %v1579
    %1583 = vrot.lane.b32.xlu0 %v1581, 32
    %v1584 = vpop.permute.xlu0 %1583
    %v1586 = vadd.f32 %v1576, %v1584
    %v1587 = vtanh.pop %v1586
    %1589 = vrot.lane.b32.xlu0 %v1587, 64
    %v1590 = vpop.permute.xlu0 %1589
    %v1592 = vmul.f32 %v1575, %v1590
    %1594 = vrot.lane.b32.xlu0 %v1592, 64
    %v1595 = vpop.permute.xlu0 %1594
    %1597 = vst.msk [vmem:[#allocation2 + $0x8] sm:$0x3] %vm443, %v1595
    %v1598 = vld [vmem:[%s2] sm:$0xff]
    %v1599 = vld [vmem:[%s2 + $0x8] sm:$0xff]
    %v1600 = vld [vmem:[%s2 + $0x10] sm:$0xff]
    %v1601 = vld [vmem:[%s2 + $0x18] sm:$0xff]
    %1602 = vmatprep.subr.mxu0 0.0
    %1603 = vmatpush1.msra.mxu0 0.0
    %1604 = vmatprep.subr.mxu0 0.0
    %1605 = vmatpush1.msra.mxu0 0.0
    %1606 = vmatprep.subr.mxu0 0.0
    %1607 = vmatpush1.msra.mxu0 0.0
    %1608 = vmatprep.subr.mxu0 0.0
    %1609 = vmatpush1.msra.mxu0 0.0
    %1610 = vmatprep.subr.mxu0 0.0
    %1611 = vmatpush1.msra.mxu0 0.0
    %1612 = vmatprep.subr.mxu0 0.0
    %1613 = vmatpush1.msra.mxu0 0.0
    %1614 = vmatprep.subr.mxu0 0.0
    %1615 = vmatpush1.msra.mxu0 0.0
    %1616 = vmatprep.subr.mxu0 0.0
    %1617 = vmatpush1.msra.mxu0 0.0
    %1618 = vmatprep.subr.mxu0 0.0
    %1619 = vmatpush1.msra.mxu0 0.0
    %1620 = vmatprep.subr.mxu0 0.0
    %1621 = vmatpush1.msra.mxu0 0.0
    %1622 = vmatprep.subr.mxu0 0.0
    %1623 = vmatpush1.msra.mxu0 0.0
    %1624 = vmatprep.subr.mxu0 0.0
    %1625 = vmatpush1.msra.mxu0 0.0
    %1626 = vmatprep.subr.mxu0 0.0
    %1627 = vmatpush1.msra.mxu0 %v1601
    %1628 = vmatprep.subr.mxu0 0.0
    %1629 = vmatpush1.msra.mxu0 %v1600
    %1630 = vmatprep.subr.mxu0 0.0
    %1631 = vmatpush1.msra.mxu0 %v1599
    %1632 = vmatprep.subr.mxu0 0.0
    %1633 = vmatpush1.msra.mxu0 %v1598
    %1634 = vmatprep.subr.mxu0 0.0
    %1635 = vmatpush2.msra.mxu0 0.0
    %1636 = vmatprep.subr.mxu0 0.0
    %1637 = vmatpush2.msra.mxu0 0.0
    %1638 = vmatprep.subr.mxu0 0.0
    %1639 = vmatpush2.msra.mxu0 0.0
    %1640 = vmatprep.subr.mxu0 0.0
    %1641 = vmatpush2.msra.mxu0 0.0
    %1642 = vmatprep.subr.mxu0 0.0
    %1643 = vmatpush2.msra.mxu0 0.0
    %1644 = vmatprep.subr.mxu0 0.0
    %1645 = vmatpush2.msra.mxu0 0.0
    %1646 = vmatprep.subr.mxu0 0.0
    %1647 = vmatpush2.msra.mxu0 0.0
    %1648 = vmatprep.subr.mxu0 0.0
    %1649 = vmatpush2.msra.mxu0 0.0
    %1650 = vmatprep.subr.mxu0 0.0
    %1651 = vmatpush2.msra.mxu0 0.0
    %1652 = vmatprep.subr.mxu0 0.0
    %1653 = vmatpush2.msra.mxu0 0.0
    %1654 = vmatprep.subr.mxu0 0.0
    %1655 = vmatpush2.msra.mxu0 0.0
    %1656 = vmatprep.subr.mxu0 0.0
    %1657 = vmatpush2.msra.mxu0 0.0
    %1658 = vmatprep.subr.mxu0 0.0
    %1659 = vmatpush2.msra.mxu0 0.0
    %1660 = vmatprep.subr.mxu0 0.0
    %1661 = vmatpush2.msra.mxu0 0.0
    %1662 = vmatprep.subr.mxu0 0.0
    %1663 = vmatpush2.msra.mxu0 0.0
    %1664 = vmatprep.subr.mxu0 0.0
    %1665 = vmatpush2.msra.mxu0 0.0
    %1666 = vmatprep.mubr.f32.mxu0 0.0
    %1667 = vmatmul.mubr.f32.gmra.mxu0 %v1500
    %v1668 = vpop.f32.mrf.mxu0
    %v1669 = vadd.f32 0.0, %v1668
    %v1670 = vpop.f32.mrf.mxu0
    %1671 = vdwg.mxu0
    %v1673 = vrot.slane %v1669, 6
    %v1675 = vadd.f32 %v155, %v1673
    %v1676 = vtanh.pop %v1675
    %v1677 = vmul.f32 %v1676, %v49
    %v1678 = vadd.f32 %v1677, %v50
    %v1680 = vrot.slane %v1406, 6
    %v1682 = vmul.f32 %v1678, %v1680
    %1684 = vrot.lane.b32.xlu0 %v1678, 64
    %v1685 = vpop.permute.xlu0 %1684
    %v1687 = vmul.f32 %v1678, %v1685
    %1689 = vrot.lane.b32.xlu0 %v1687, 32
    %v1690 = vpop.permute.xlu0 %1689
    %v1692 = vadd.f32 %v1682, %v1690
    %v1693 = vtanh.pop %v1692
    %1695 = vrot.lane.b32.xlu0 %v1693, 64
    %v1696 = vpop.permute.xlu0 %1695
    %v1698 = vmul.f32 %v1678, %v1696
    %1700 = vrot.lane.b32.xlu0 %v1698, 32
    %v1701 = vpop.permute.xlu0 %1700
    %1703 = vst.msk [vmem:[#allocation2 + $0x8] sm:$0xc] %vm550, %v1701
    %v1704 = vld [vmem:[%s4] sm:$0xff]
    %v1705 = vld [vmem:[%s4 + $0x8] sm:$0xff]
    %v1706 = vld [vmem:[%s4 + $0x10] sm:$0xff]
    %v1707 = vld [vmem:[%s4 + $0x18] sm:$0xff]
    %v1708 = vld [vmem:[%s5] sm:$0xff]
    %v1709 = vld [vmem:[%s5 + $0x8] sm:$0xff]
    %v1710 = vld [vmem:[%s5 + $0x10] sm:$0xff]
    %v1711 = vld [vmem:[%s5 + $0x18] sm:$0xff]
    %1712 = vrot.lane.b32.xlu0 %v1592, 32
    %v1713 = vpop.permute.xlu0 %1712
    %v1714 = vsel %vm167, %v1713, 0
    %1716 = vmatprep.subr.mxu0 0.0
    %1717 = vmatpush1.msra.mxu0 0.0
    %1718 = vmatprep.subr.mxu0 0.0
    %1719 = vmatpush1.msra.mxu0 0.0
    %1720 = vmatprep.subr.mxu0 0.0
    %1721 = vmatpush1.msra.mxu0 0.0
    %1722 = vmatprep.subr.mxu0 0.0
    %1723 = vmatpush1.msra.mxu0 0.0
    %1724 = vmatprep.subr.mxu0 0.0
    %1725 = vmatpush1.msra.mxu0 0.0
    %1726 = vmatprep.subr.mxu0 0.0
    %1727 = vmatpush1.msra.mxu0 0.0
    %1728 = vmatprep.subr.mxu0 0.0
    %1729 = vmatpush1.msra.mxu0 0.0
    %1730 = vmatprep.subr.mxu0 0.0
    %1731 = vmatpush1.msra.mxu0 0.0
    %1732 = vmatprep.subr.mxu0 0.0
    %1733 = vmatpush1.msra.mxu0 0.0
    %1734 = vmatprep.subr.mxu0 0.0
    %1735 = vmatpush1.msra.mxu0 0.0
    %1736 = vmatprep.subr.mxu0 0.0
    %1737 = vmatpush1.msra.mxu0 0.0
    %1738 = vmatprep.subr.mxu0 0.0
    %1739 = vmatpush1.msra.mxu0 0.0
    %1740 = vmatprep.subr.mxu0 0.0
    %1741 = vmatpush1.msra.mxu0 %v1711
    %1742 = vmatprep.subr.mxu0 0.0
    %1743 = vmatpush1.msra.mxu0 %v1710
    %1744 = vmatprep.subr.mxu0 0.0
    %1745 = vmatpush1.msra.mxu0 %v1709
    %1746 = vmatprep.subr.mxu0 0.0
    %1747 = vmatpush1.msra.mxu0 %v1708
    %1748 = vmatprep.subr.mxu0 0.0
    %1749 = vmatpush2.msra.mxu0 0.0
    %1750 = vmatprep.subr.mxu0 0.0
    %1751 = vmatpush2.msra.mxu0 0.0
    %1752 = vmatprep.subr.mxu0 0.0
    %1753 = vmatpush2.msra.mxu0 0.0
    %1754 = vmatprep.subr.mxu0 0.0
    %1755 = vmatpush2.msra.mxu0 0.0
    %1756 = vmatprep.subr.mxu0 0.0
    %1757 = vmatpush2.msra.mxu0 0.0
    %1758 = vmatprep.subr.mxu0 0.0
    %1759 = vmatpush2.msra.mxu0 0.0
    %1760 = vmatprep.subr.mxu0 0.0
    %1761 = vmatpush2.msra.mxu0 0.0
    %1762 = vmatprep.subr.mxu0 0.0
    %1763 = vmatpush2.msra.mxu0 0.0
    %1764 = vmatprep.subr.mxu0 0.0
    %1765 = vmatpush2.msra.mxu0 0.0
    %1766 = vmatprep.subr.mxu0 0.0
    %1767 = vmatpush2.msra.mxu0 0.0
    %1768 = vmatprep.subr.mxu0 0.0
    %1769 = vmatpush2.msra.mxu0 0.0
    %1770 = vmatprep.subr.mxu0 0.0
    %1771 = vmatpush2.msra.mxu0 0.0
    %1772 = vmatprep.subr.mxu0 0.0
    %1773 = vmatpush2.msra.mxu0 0.0
    %1774 = vmatprep.subr.mxu0 0.0
    %1775 = vmatpush2.msra.mxu0 0.0
    %1776 = vmatprep.subr.mxu0 0.0
    %1777 = vmatpush2.msra.mxu0 0.0
    %1778 = vmatprep.subr.mxu0 0.0
    %1779 = vmatpush2.msra.mxu0 0.0
    %1780 = vmatprep.mubr.f32.mxu0 0.0
    %1781 = vmatmul.mubr.f32.gmra.mxu0 %v1714
    %v1782 = vpop.f32.mrf.mxu0
    %v1783 = vadd.f32 0.0, %v1782
    %v1784 = vpop.f32.mrf.mxu0
    %1785 = vdwg.mxu0
    %v1786 = vrot.slane %v1698, 2
    %1787 = vrot.lane.b32.xlu0 %v1786, 32
    %v1788 = vpop.permute.xlu0 %1787
    %v1789 = vsel %vm167, %v1788, 0
    %1791 = vmatprep.subr.mxu0 0.0
    %1792 = vmatpush1.msra.mxu0 0.0
    %1793 = vmatprep.subr.mxu0 0.0
    %1794 = vmatpush1.msra.mxu0 0.0
    %1795 = vmatprep.subr.mxu0 0.0
    %1796 = vmatpush1.msra.mxu0 0.0
    %1797 = vmatprep.subr.mxu0 0.0
    %1798 = vmatpush1.msra.mxu0 0.0
    %1799 = vmatprep.subr.mxu0 0.0
    %1800 = vmatpush1.msra.mxu0 0.0
    %1801 = vmatprep.subr.mxu0 0.0
    %1802 = vmatpush1.msra.mxu0 0.0
    %1803 = vmatprep.subr.mxu0 0.0
    %1804 = vmatpush1.msra.mxu0 0.0
    %1805 = vmatprep.subr.mxu0 0.0
    %1806 = vmatpush1.msra.mxu0 0.0
    %1807 = vmatprep.subr.mxu0 0.0
    %1808 = vmatpush1.msra.mxu0 0.0
    %1809 = vmatprep.subr.mxu0 0.0
    %1810 = vmatpush1.msra.mxu0 0.0
    %1811 = vmatprep.subr.mxu0 0.0
    %1812 = vmatpush1.msra.mxu0 0.0
    %1813 = vmatprep.subr.mxu0 0.0
    %1814 = vmatpush1.msra.mxu0 0.0
    %1815 = vmatprep.subr.mxu0 0.0
    %1816 = vmatpush1.msra.mxu0 %v1707
    %1817 = vmatprep.subr.mxu0 0.0
    %1818 = vmatpush1.msra.mxu0 %v1706
    %1819 = vmatprep.subr.mxu0 0.0
    %1820 = vmatpush1.msra.mxu0 %v1705
    %1821 = vmatprep.subr.mxu0 0.0
    %1822 = vmatpush1.msra.mxu0 %v1704
    %1823 = vmatprep.subr.mxu0 0.0
    %1824 = vmatpush2.msra.mxu0 0.0
    %1825 = vmatprep.subr.mxu0 0.0
    %1826 = vmatpush2.msra.mxu0 0.0
    %1827 = vmatprep.subr.mxu0 0.0
    %1828 = vmatpush2.msra.mxu0 0.0
    %1829 = vmatprep.subr.mxu0 0.0
    %1830 = vmatpush2.msra.mxu0 0.0
    %1831 = vmatprep.subr.mxu0 0.0
    %1832 = vmatpush2.msra.mxu0 0.0
    %1833 = vmatprep.subr.mxu0 0.0
    %1834 = vmatpush2.msra.mxu0 0.0
    %1835 = vmatprep.subr.mxu0 0.0
    %1836 = vmatpush2.msra.mxu0 0.0
    %1837 = vmatprep.subr.mxu0 0.0
    %1838 = vmatpush2.msra.mxu0 0.0
    %1839 = vmatprep.subr.mxu0 0.0
    %1840 = vmatpush2.msra.mxu0 0.0
    %1841 = vmatprep.subr.mxu0 0.0
    %1842 = vmatpush2.msra.mxu0 0.0
    %1843 = vmatprep.subr.mxu0 0.0
    %1844 = vmatpush2.msra.mxu0 0.0
    %1845 = vmatprep.subr.mxu0 0.0
    %1846 = vmatpush2.msra.mxu0 0.0
    %1847 = vmatprep.subr.mxu0 0.0
    %1848 = vmatpush2.msra.mxu0 0.0
    %1849 = vmatprep.subr.mxu0 0.0
    %1850 = vmatpush2.msra.mxu0 0.0
    %1851 = vmatprep.subr.mxu0 0.0
    %1852 = vmatpush2.msra.mxu0 0.0
    %1853 = vmatprep.subr.mxu0 0.0
    %1854 = vmatpush2.msra.mxu0 0.0
    %1855 = vmatprep.mubr.f32.mxu0 0.0
    %1856 = vmatmul.mubr.f32.gmra.mxu0 %v1789
    %v1857 = vpop.f32.mrf.mxu0
    %v1858 = vadd.f32 %v1783, %v1857
    %v1859 = vpop.f32.mrf.mxu0
    %1860 = vdwg.mxu0
    %v1861 = vadd.f32 %v1858, %v57
    %v1862 = vtanh.pop %v1861
    %v1863 = vmul.f32 %v1862, %v49
    %v1864 = vadd.f32 %v1863, %v50
    %v1865 = vmul.f32 %v1864, %v1586
    %1867 = vrot.lane.b32.xlu0 %v1864, 64
    %v1868 = vpop.permute.xlu0 %1867
    %v1870 = vmul.f32 %v1864, %v1868
    %1872 = vrot.lane.b32.xlu0 %v1870, 32
    %v1873 = vpop.permute.xlu0 %1872
    %v1875 = vadd.f32 %v1865, %v1873
    %v1876 = vtanh.pop %v1875
    %1878 = vrot.lane.b32.xlu0 %v1876, 64
    %v1879 = vpop.permute.xlu0 %1878
    %v1881 = vmul.f32 %v1864, %v1879
    %1883 = vrot.lane.b32.xlu0 %v1881, 64
    %v1884 = vpop.permute.xlu0 %1883
    %1886 = vst.msk [vmem:[#allocation2 + $0xa] sm:$0x3] %vm443, %v1884
    %v1887 = vld [vmem:[%s2] sm:$0xff]
    %v1888 = vld [vmem:[%s2 + $0x8] sm:$0xff]
    %v1889 = vld [vmem:[%s2 + $0x10] sm:$0xff]
    %v1890 = vld [vmem:[%s2 + $0x18] sm:$0xff]
    %1891 = vmatprep.subr.mxu0 0.0
    %1892 = vmatpush1.msra.mxu0 0.0
    %1893 = vmatprep.subr.mxu0 0.0
    %1894 = vmatpush1.msra.mxu0 0.0
    %1895 = vmatprep.subr.mxu0 0.0
    %1896 = vmatpush1.msra.mxu0 0.0
    %1897 = vmatprep.subr.mxu0 0.0
    %1898 = vmatpush1.msra.mxu0 0.0
    %1899 = vmatprep.subr.mxu0 0.0
    %1900 = vmatpush1.msra.mxu0 0.0
    %1901 = vmatprep.subr.mxu0 0.0
    %1902 = vmatpush1.msra.mxu0 0.0
    %1903 = vmatprep.subr.mxu0 0.0
    %1904 = vmatpush1.msra.mxu0 0.0
    %1905 = vmatprep.subr.mxu0 0.0
    %1906 = vmatpush1.msra.mxu0 0.0
    %1907 = vmatprep.subr.mxu0 0.0
    %1908 = vmatpush1.msra.mxu0 0.0
    %1909 = vmatprep.subr.mxu0 0.0
    %1910 = vmatpush1.msra.mxu0 0.0
    %1911 = vmatprep.subr.mxu0 0.0
    %1912 = vmatpush1.msra.mxu0 0.0
    %1913 = vmatprep.subr.mxu0 0.0
    %1914 = vmatpush1.msra.mxu0 0.0
    %1915 = vmatprep.subr.mxu0 0.0
    %1916 = vmatpush1.msra.mxu0 %v1890
    %1917 = vmatprep.subr.mxu0 0.0
    %1918 = vmatpush1.msra.mxu0 %v1889
    %1919 = vmatprep.subr.mxu0 0.0
    %1920 = vmatpush1.msra.mxu0 %v1888
    %1921 = vmatprep.subr.mxu0 0.0
    %1922 = vmatpush1.msra.mxu0 %v1887
    %1923 = vmatprep.subr.mxu0 0.0
    %1924 = vmatpush2.msra.mxu0 0.0
    %1925 = vmatprep.subr.mxu0 0.0
    %1926 = vmatpush2.msra.mxu0 0.0
    %1927 = vmatprep.subr.mxu0 0.0
    %1928 = vmatpush2.msra.mxu0 0.0
    %1929 = vmatprep.subr.mxu0 0.0
    %1930 = vmatpush2.msra.mxu0 0.0
    %1931 = vmatprep.subr.mxu0 0.0
    %1932 = vmatpush2.msra.mxu0 0.0
    %1933 = vmatprep.subr.mxu0 0.0
    %1934 = vmatpush2.msra.mxu0 0.0
    %1935 = vmatprep.subr.mxu0 0.0
    %1936 = vmatpush2.msra.mxu0 0.0
    %1937 = vmatprep.subr.mxu0 0.0
    %1938 = vmatpush2.msra.mxu0 0.0
    %1939 = vmatprep.subr.mxu0 0.0
    %1940 = vmatpush2.msra.mxu0 0.0
    %1941 = vmatprep.subr.mxu0 0.0
    %1942 = vmatpush2.msra.mxu0 0.0
    %1943 = vmatprep.subr.mxu0 0.0
    %1944 = vmatpush2.msra.mxu0 0.0
    %1945 = vmatprep.subr.mxu0 0.0
    %1946 = vmatpush2.msra.mxu0 0.0
    %1947 = vmatprep.subr.mxu0 0.0
    %1948 = vmatpush2.msra.mxu0 0.0
    %1949 = vmatprep.subr.mxu0 0.0
    %1950 = vmatpush2.msra.mxu0 0.0
    %1951 = vmatprep.subr.mxu0 0.0
    %1952 = vmatpush2.msra.mxu0 0.0
    %1953 = vmatprep.subr.mxu0 0.0
    %1954 = vmatpush2.msra.mxu0 0.0
    %1955 = vmatprep.mubr.f32.mxu0 0.0
    %1956 = vmatmul.mubr.f32.gmra.mxu0 %v1789
    %v1957 = vpop.f32.mrf.mxu0
    %v1958 = vadd.f32 0.0, %v1957
    %v1959 = vpop.f32.mrf.mxu0
    %1960 = vdwg.mxu0
    %v1962 = vrot.slane %v1958, 4
    %v1964 = vadd.f32 %v155, %v1962
    %v1965 = vtanh.pop %v1964
    %v1966 = vmul.f32 %v1965, %v49
    %v1967 = vadd.f32 %v1966, %v50
    %v1969 = vrot.slane %v1692, 6
    %v1971 = vmul.f32 %v1967, %v1969
    %1973 = vrot.lane.b32.xlu0 %v1967, 64
    %v1974 = vpop.permute.xlu0 %1973
    %v1976 = vmul.f32 %v1967, %v1974
    %1978 = vrot.lane.b32.xlu0 %v1976, 32
    %v1979 = vpop.permute.xlu0 %1978
    %v1981 = vadd.f32 %v1971, %v1979
    %v1982 = vtanh.pop %v1981
    %1984 = vrot.lane.b32.xlu0 %v1982, 64
    %v1985 = vpop.permute.xlu0 %1984
    %v1987 = vmul.f32 %v1967, %v1985
    %1989 = vrot.lane.b32.xlu0 %v1987, 32
    %v1990 = vpop.permute.xlu0 %1989
    %1992 = vst.msk [vmem:[#allocation2 + $0x8] sm:$0x30] %vm840, %v1990
    %v1993 = vld [vmem:[%s4] sm:$0xff]
    %v1994 = vld [vmem:[%s4 + $0x8] sm:$0xff]
    %v1995 = vld [vmem:[%s4 + $0x10] sm:$0xff]
    %v1996 = vld [vmem:[%s4 + $0x18] sm:$0xff]
    %v1997 = vld [vmem:[%s5] sm:$0xff]
    %v1998 = vld [vmem:[%s5 + $0x8] sm:$0xff]
    %v1999 = vld [vmem:[%s5 + $0x10] sm:$0xff]
    %v2000 = vld [vmem:[%s5 + $0x18] sm:$0xff]
    %2001 = vrot.lane.b32.xlu0 %v1881, 32
    %v2002 = vpop.permute.xlu0 %2001
    %v2003 = vsel %vm167, %v2002, 0
    %2005 = vmatprep.subr.mxu0 0.0
    %2006 = vmatpush1.msra.mxu0 0.0
    %2007 = vmatprep.subr.mxu0 0.0
    %2008 = vmatpush1.msra.mxu0 0.0
    %2009 = vmatprep.subr.mxu0 0.0
    %2010 = vmatpush1.msra.mxu0 0.0
    %2011 = vmatprep.subr.mxu0 0.0
    %2012 = vmatpush1.msra.mxu0 0.0
    %2013 = vmatprep.subr.mxu0 0.0
    %2014 = vmatpush1.msra.mxu0 0.0
    %2015 = vmatprep.subr.mxu0 0.0
    %2016 = vmatpush1.msra.mxu0 0.0
    %2017 = vmatprep.subr.mxu0 0.0
    %2018 = vmatpush1.msra.mxu0 0.0
    %2019 = vmatprep.subr.mxu0 0.0
    %2020 = vmatpush1.msra.mxu0 0.0
    %2021 = vmatprep.subr.mxu0 0.0
    %2022 = vmatpush1.msra.mxu0 0.0
    %2023 = vmatprep.subr.mxu0 0.0
    %2024 = vmatpush1.msra.mxu0 0.0
    %2025 = vmatprep.subr.mxu0 0.0
    %2026 = vmatpush1.msra.mxu0 0.0
    %2027 = vmatprep.subr.mxu0 0.0
    %2028 = vmatpush1.msra.mxu0 0.0
    %2029 = vmatprep.subr.mxu0 0.0
    %2030 = vmatpush1.msra.mxu0 %v2000
    %2031 = vmatprep.subr.mxu0 0.0
    %2032 = vmatpush1.msra.mxu0 %v1999
    %2033 = vmatprep.subr.mxu0 0.0
    %2034 = vmatpush1.msra.mxu0 %v1998
    %2035 = vmatprep.subr.mxu0 0.0
    %2036 = vmatpush1.msra.mxu0 %v1997
    %2037 = vmatprep.subr.mxu0 0.0
    %2038 = vmatpush2.msra.mxu0 0.0
    %2039 = vmatprep.subr.mxu0 0.0
    %2040 = vmatpush2.msra.mxu0 0.0
    %2041 = vmatprep.subr.mxu0 0.0
    %2042 = vmatpush2.msra.mxu0 0.0
    %2043 = vmatprep.subr.mxu0 0.0
    %2044 = vmatpush2.msra.mxu0 0.0
    %2045 = vmatprep.subr.mxu0 0.0
    %2046 = vmatpush2.msra.mxu0 0.0
    %2047 = vmatprep.subr.mxu0 0.0
    %2048 = vmatpush2.msra.mxu0 0.0
    %2049 = vmatprep.subr.mxu0 0.0
    %2050 = vmatpush2.msra.mxu0 0.0
    %2051 = vmatprep.subr.mxu0 0.0
    %2052 = vmatpush2.msra.mxu0 0.0
    %2053 = vmatprep.subr.mxu0 0.0
    %2054 = vmatpush2.msra.mxu0 0.0
    %2055 = vmatprep.subr.mxu0 0.0
    %2056 = vmatpush2.msra.mxu0 0.0
    %2057 = vmatprep.subr.mxu0 0.0
    %2058 = vmatpush2.msra.mxu0 0.0
    %2059 = vmatprep.subr.mxu0 0.0
    %2060 = vmatpush2.msra.mxu0 0.0
    %2061 = vmatprep.subr.mxu0 0.0
    %2062 = vmatpush2.msra.mxu0 0.0
    %2063 = vmatprep.subr.mxu0 0.0
    %2064 = vmatpush2.msra.mxu0 0.0
    %2065 = vmatprep.subr.mxu0 0.0
    %2066 = vmatpush2.msra.mxu0 0.0
    %2067 = vmatprep.subr.mxu0 0.0
    %2068 = vmatpush2.msra.mxu0 0.0
    %2069 = vmatprep.mubr.f32.mxu0 0.0
    %2070 = vmatmul.mubr.f32.gmra.mxu0 %v2003
    %v2071 = vpop.f32.mrf.mxu0
    %v2072 = vadd.f32 0.0, %v2071
    %v2073 = vpop.f32.mrf.mxu0
    %2074 = vdwg.mxu0
    %v2075 = vrot.slane %v1987, 4
    %2076 = vrot.lane.b32.xlu0 %v2075, 32
    %v2077 = vpop.permute.xlu0 %2076
    %v2078 = vsel %vm167, %v2077, 0
    %2080 = vmatprep.subr.mxu0 0.0
    %2081 = vmatpush1.msra.mxu0 0.0
    %2082 = vmatprep.subr.mxu0 0.0
    %2083 = vmatpush1.msra.mxu0 0.0
    %2084 = vmatprep.subr.mxu0 0.0
    %2085 = vmatpush1.msra.mxu0 0.0
    %2086 = vmatprep.subr.mxu0 0.0
    %2087 = vmatpush1.msra.mxu0 0.0
    %2088 = vmatprep.subr.mxu0 0.0
    %2089 = vmatpush1.msra.mxu0 0.0
    %2090 = vmatprep.subr.mxu0 0.0
    %2091 = vmatpush1.msra.mxu0 0.0
    %2092 = vmatprep.subr.mxu0 0.0
    %2093 = vmatpush1.msra.mxu0 0.0
    %2094 = vmatprep.subr.mxu0 0.0
    %2095 = vmatpush1.msra.mxu0 0.0
    %2096 = vmatprep.subr.mxu0 0.0
    %2097 = vmatpush1.msra.mxu0 0.0
    %2098 = vmatprep.subr.mxu0 0.0
    %2099 = vmatpush1.msra.mxu0 0.0
    %2100 = vmatprep.subr.mxu0 0.0
    %2101 = vmatpush1.msra.mxu0 0.0
    %2102 = vmatprep.subr.mxu0 0.0
    %2103 = vmatpush1.msra.mxu0 0.0
    %2104 = vmatprep.subr.mxu0 0.0
    %2105 = vmatpush1.msra.mxu0 %v1996
    %2106 = vmatprep.subr.mxu0 0.0
    %2107 = vmatpush1.msra.mxu0 %v1995
    %2108 = vmatprep.subr.mxu0 0.0
    %2109 = vmatpush1.msra.mxu0 %v1994
    %2110 = vmatprep.subr.mxu0 0.0
    %2111 = vmatpush1.msra.mxu0 %v1993
    %2112 = vmatprep.subr.mxu0 0.0
    %2113 = vmatpush2.msra.mxu0 0.0
    %2114 = vmatprep.subr.mxu0 0.0
    %2115 = vmatpush2.msra.mxu0 0.0
    %2116 = vmatprep.subr.mxu0 0.0
    %2117 = vmatpush2.msra.mxu0 0.0
    %2118 = vmatprep.subr.mxu0 0.0
    %2119 = vmatpush2.msra.mxu0 0.0
    %2120 = vmatprep.subr.mxu0 0.0
    %2121 = vmatpush2.msra.mxu0 0.0
    %2122 = vmatprep.subr.mxu0 0.0
    %2123 = vmatpush2.msra.mxu0 0.0
    %2124 = vmatprep.subr.mxu0 0.0
    %2125 = vmatpush2.msra.mxu0 0.0
    %2126 = vmatprep.subr.mxu0 0.0
    %2127 = vmatpush2.msra.mxu0 0.0
    %2128 = vmatprep.subr.mxu0 0.0
    %2129 = vmatpush2.msra.mxu0 0.0
    %2130 = vmatprep.subr.mxu0 0.0
    %2131 = vmatpush2.msra.mxu0 0.0
    %2132 = vmatprep.subr.mxu0 0.0
    %2133 = vmatpush2.msra.mxu0 0.0
    %2134 = vmatprep.subr.mxu0 0.0
    %2135 = vmatpush2.msra.mxu0 0.0
    %2136 = vmatprep.subr.mxu0 0.0
    %2137 = vmatpush2.msra.mxu0 0.0
    %2138 = vmatprep.subr.mxu0 0.0
    %2139 = vmatpush2.msra.mxu0 0.0
    %2140 = vmatprep.subr.mxu0 0.0
    %2141 = vmatpush2.msra.mxu0 0.0
    %2142 = vmatprep.subr.mxu0 0.0
    %2143 = vmatpush2.msra.mxu0 0.0
    %2144 = vmatprep.mubr.f32.mxu0 0.0
    %2145 = vmatmul.mubr.f32.gmra.mxu0 %v2078
    %v2146 = vpop.f32.mrf.mxu0
    %v2147 = vadd.f32 %v2072, %v2146
    %v2148 = vpop.f32.mrf.mxu0
    %2149 = vdwg.mxu0
    %v2150 = vadd.f32 %v2147, %v57
    %v2151 = vtanh.pop %v2150
    %v2152 = vmul.f32 %v2151, %v49
    %v2153 = vadd.f32 %v2152, %v50
    %v2154 = vmul.f32 %v2153, %v1875
    %2156 = vrot.lane.b32.xlu0 %v2153, 64
    %v2157 = vpop.permute.xlu0 %2156
    %v2159 = vmul.f32 %v2153, %v2157
    %2161 = vrot.lane.b32.xlu0 %v2159, 32
    %v2162 = vpop.permute.xlu0 %2161
    %v2164 = vadd.f32 %v2154, %v2162
    %v2165 = vtanh.pop %v2164
    %2167 = vrot.lane.b32.xlu0 %v2165, 64
    %v2168 = vpop.permute.xlu0 %2167
    %v2170 = vmul.f32 %v2153, %v2168
    %2172 = vrot.lane.b32.xlu0 %v2170, 64
    %v2173 = vpop.permute.xlu0 %2172
    %2175 = vst.msk [vmem:[#allocation2 + $0xc] sm:$0x3] %vm443, %v2173
    %v2176 = vld [vmem:[%s2] sm:$0xff]
    %v2177 = vld [vmem:[%s2 + $0x8] sm:$0xff]
    %v2178 = vld [vmem:[%s2 + $0x10] sm:$0xff]
    %v2179 = vld [vmem:[%s2 + $0x18] sm:$0xff]
    %2180 = vmatprep.subr.mxu0 0.0
    %2181 = vmatpush1.msra.mxu0 0.0
    %2182 = vmatprep.subr.mxu0 0.0
    %2183 = vmatpush1.msra.mxu0 0.0
    %2184 = vmatprep.subr.mxu0 0.0
    %2185 = vmatpush1.msra.mxu0 0.0
    %2186 = vmatprep.subr.mxu0 0.0
    %2187 = vmatpush1.msra.mxu0 0.0
    %2188 = vmatprep.subr.mxu0 0.0
    %2189 = vmatpush1.msra.mxu0 0.0
    %2190 = vmatprep.subr.mxu0 0.0
    %2191 = vmatpush1.msra.mxu0 0.0
    %2192 = vmatprep.subr.mxu0 0.0
    %2193 = vmatpush1.msra.mxu0 0.0
    %2194 = vmatprep.subr.mxu0 0.0
    %2195 = vmatpush1.msra.mxu0 0.0
    %2196 = vmatprep.subr.mxu0 0.0
    %2197 = vmatpush1.msra.mxu0 0.0
    %2198 = vmatprep.subr.mxu0 0.0
    %2199 = vmatpush1.msra.mxu0 0.0
    %2200 = vmatprep.subr.mxu0 0.0
    %2201 = vmatpush1.msra.mxu0 0.0
    %2202 = vmatprep.subr.mxu0 0.0
    %2203 = vmatpush1.msra.mxu0 0.0
    %2204 = vmatprep.subr.mxu0 0.0
    %2205 = vmatpush1.msra.mxu0 %v2179
    %2206 = vmatprep.subr.mxu0 0.0
    %2207 = vmatpush1.msra.mxu0 %v2178
    %2208 = vmatprep.subr.mxu0 0.0
    %2209 = vmatpush1.msra.mxu0 %v2177
    %2210 = vmatprep.subr.mxu0 0.0
    %2211 = vmatpush1.msra.mxu0 %v2176
    %2212 = vmatprep.subr.mxu0 0.0
    %2213 = vmatpush2.msra.mxu0 0.0
    %2214 = vmatprep.subr.mxu0 0.0
    %2215 = vmatpush2.msra.mxu0 0.0
    %2216 = vmatprep.subr.mxu0 0.0
    %2217 = vmatpush2.msra.mxu0 0.0
    %2218 = vmatprep.subr.mxu0 0.0
    %2219 = vmatpush2.msra.mxu0 0.0
    %2220 = vmatprep.subr.mxu0 0.0
    %2221 = vmatpush2.msra.mxu0 0.0
    %2222 = vmatprep.subr.mxu0 0.0
    %2223 = vmatpush2.msra.mxu0 0.0
    %2224 = vmatprep.subr.mxu0 0.0
    %2225 = vmatpush2.msra.mxu0 0.0
    %2226 = vmatprep.subr.mxu0 0.0
    %2227 = vmatpush2.msra.mxu0 0.0
    %2228 = vmatprep.subr.mxu0 0.0
    %2229 = vmatpush2.msra.mxu0 0.0
    %2230 = vmatprep.subr.mxu0 0.0
    %2231 = vmatpush2.msra.mxu0 0.0
    %2232 = vmatprep.subr.mxu0 0.0
    %2233 = vmatpush2.msra.mxu0 0.0
    %2234 = vmatprep.subr.mxu0 0.0
    %2235 = vmatpush2.msra.mxu0 0.0
    %2236 = vmatprep.subr.mxu0 0.0
    %2237 = vmatpush2.msra.mxu0 0.0
    %2238 = vmatprep.subr.mxu0 0.0
    %2239 = vmatpush2.msra.mxu0 0.0
    %2240 = vmatprep.subr.mxu0 0.0
    %2241 = vmatpush2.msra.mxu0 0.0
    %2242 = vmatprep.subr.mxu0 0.0
    %2243 = vmatpush2.msra.mxu0 0.0
    %2244 = vmatprep.mubr.f32.mxu0 0.0
    %2245 = vmatmul.mubr.f32.gmra.mxu0 %v2078
    %v2246 = vpop.f32.mrf.mxu0
    %v2247 = vadd.f32 0.0, %v2246
    %v2248 = vpop.f32.mrf.mxu0
    %2249 = vdwg.mxu0
    %v2251 = vrot.slane %v2247, 2
    %v2253 = vadd.f32 %v155, %v2251
    %v2254 = vtanh.pop %v2253
    %v2255 = vmul.f32 %v2254, %v49
    %v2256 = vadd.f32 %v2255, %v50
    %v2258 = vrot.slane %v1981, 6
    %v2260 = vmul.f32 %v2256, %v2258
    %2262 = vrot.lane.b32.xlu0 %v2256, 64
    %v2263 = vpop.permute.xlu0 %2262
    %v2265 = vmul.f32 %v2256, %v2263
    %2267 = vrot.lane.b32.xlu0 %v2265, 32
    %v2268 = vpop.permute.xlu0 %2267
    %v2270 = vadd.f32 %v2260, %v2268
    %v2271 = vtanh.pop %v2270
    %2273 = vrot.lane.b32.xlu0 %v2271, 64
    %v2274 = vpop.permute.xlu0 %2273
    %v2276 = vmul.f32 %v2256, %v2274
    %2278 = vrot.lane.b32.xlu0 %v2276, 32
    %v2279 = vpop.permute.xlu0 %2278
    %2281 = vst.msk [vmem:[#allocation2 + $0x8] sm:$0xc0] %vm1130, %v2279
    %v2282 = vld [vmem:[%s4] sm:$0xff]
    %v2283 = vld [vmem:[%s4 + $0x8] sm:$0xff]
    %v2284 = vld [vmem:[%s4 + $0x10] sm:$0xff]
    %v2285 = vld [vmem:[%s4 + $0x18] sm:$0xff]
    %v2286 = vld [vmem:[%s5] sm:$0xff]
    %v2287 = vld [vmem:[%s5 + $0x8] sm:$0xff]
    %v2288 = vld [vmem:[%s5 + $0x10] sm:$0xff]
    %v2289 = vld [vmem:[%s5 + $0x18] sm:$0xff]
    %2290 = vrot.lane.b32.xlu0 %v2170, 32
    %v2291 = vpop.permute.xlu0 %2290
    %v2292 = vsel %vm167, %v2291, 0
    %2294 = vmatprep.subr.mxu0 0.0
    %2295 = vmatpush1.msra.mxu0 0.0
    %2296 = vmatprep.subr.mxu0 0.0
    %2297 = vmatpush1.msra.mxu0 0.0
    %2298 = vmatprep.subr.mxu0 0.0
    %2299 = vmatpush1.msra.mxu0 0.0
    %2300 = vmatprep.subr.mxu0 0.0
    %2301 = vmatpush1.msra.mxu0 0.0
    %2302 = vmatprep.subr.mxu0 0.0
    %2303 = vmatpush1.msra.mxu0 0.0
    %2304 = vmatprep.subr.mxu0 0.0
    %2305 = vmatpush1.msra.mxu0 0.0
    %2306 = vmatprep.subr.mxu0 0.0
    %2307 = vmatpush1.msra.mxu0 0.0
    %2308 = vmatprep.subr.mxu0 0.0
    %2309 = vmatpush1.msra.mxu0 0.0
    %2310 = vmatprep.subr.mxu0 0.0
    %2311 = vmatpush1.msra.mxu0 0.0
    %2312 = vmatprep.subr.mxu0 0.0
    %2313 = vmatpush1.msra.mxu0 0.0
    %2314 = vmatprep.subr.mxu0 0.0
    %2315 = vmatpush1.msra.mxu0 0.0
    %2316 = vmatprep.subr.mxu0 0.0
    %2317 = vmatpush1.msra.mxu0 0.0
    %2318 = vmatprep.subr.mxu0 0.0
    %2319 = vmatpush1.msra.mxu0 %v2289
    %2320 = vmatprep.subr.mxu0 0.0
    %2321 = vmatpush1.msra.mxu0 %v2288
    %2322 = vmatprep.subr.mxu0 0.0
    %2323 = vmatpush1.msra.mxu0 %v2287
    %2324 = vmatprep.subr.mxu0 0.0
    %2325 = vmatpush1.msra.mxu0 %v2286
    %2326 = vmatprep.subr.mxu0 0.0
    %2327 = vmatpush2.msra.mxu0 0.0
    %2328 = vmatprep.subr.mxu0 0.0
    %2329 = vmatpush2.msra.mxu0 0.0
    %2330 = vmatprep.subr.mxu0 0.0
    %2331 = vmatpush2.msra.mxu0 0.0
    %2332 = vmatprep.subr.mxu0 0.0
    %2333 = vmatpush2.msra.mxu0 0.0
    %2334 = vmatprep.subr.mxu0 0.0
    %2335 = vmatpush2.msra.mxu0 0.0
    %2336 = vmatprep.subr.mxu0 0.0
    %2337 = vmatpush2.msra.mxu0 0.0
    %2338 = vmatprep.subr.mxu0 0.0
    %2339 = vmatpush2.msra.mxu0 0.0
    %2340 = vmatprep.subr.mxu0 0.0
    %2341 = vmatpush2.msra.mxu0 0.0
    %2342 = vmatprep.subr.mxu0 0.0
    %2343 = vmatpush2.msra.mxu0 0.0
    %2344 = vmatprep.subr.mxu0 0.0
    %2345 = vmatpush2.msra.mxu0 0.0
    %2346 = vmatprep.subr.mxu0 0.0
    %2347 = vmatpush2.msra.mxu0 0.0
    %2348 = vmatprep.subr.mxu0 0.0
    %2349 = vmatpush2.msra.mxu0 0.0
    %2350 = vmatprep.subr.mxu0 0.0
    %2351 = vmatpush2.msra.mxu0 0.0
    %2352 = vmatprep.subr.mxu0 0.0
    %2353 = vmatpush2.msra.mxu0 0.0
    %2354 = vmatprep.subr.mxu0 0.0
    %2355 = vmatpush2.msra.mxu0 0.0
    %2356 = vmatprep.subr.mxu0 0.0
    %2357 = vmatpush2.msra.mxu0 0.0
    %2358 = vmatprep.mubr.f32.mxu0 0.0
    %2359 = vmatmul.mubr.f32.gmra.mxu0 %v2292
    %v2360 = vpop.f32.mrf.mxu0
    %v2361 = vadd.f32 0.0, %v2360
    %v2362 = vpop.f32.mrf.mxu0
    %2363 = vdwg.mxu0
    %v2364 = vrot.slane %v2276, 6
    %2365 = vrot.lane.b32.xlu0 %v2364, 32
    %v2366 = vpop.permute.xlu0 %2365
    %v2367 = vsel %vm167, %v2366, 0
    %2369 = vmatprep.subr.mxu0 0.0
    %2370 = vmatpush1.msra.mxu0 0.0
    %2371 = vmatprep.subr.mxu0 0.0
    %2372 = vmatpush1.msra.mxu0 0.0
    %2373 = vmatprep.subr.mxu0 0.0
    %2374 = vmatpush1.msra.mxu0 0.0
    %2375 = vmatprep.subr.mxu0 0.0
    %2376 = vmatpush1.msra.mxu0 0.0
    %2377 = vmatprep.subr.mxu0 0.0
    %2378 = vmatpush1.msra.mxu0 0.0
    %2379 = vmatprep.subr.mxu0 0.0
    %2380 = vmatpush1.msra.mxu0 0.0
    %2381 = vmatprep.subr.mxu0 0.0
    %2382 = vmatpush1.msra.mxu0 0.0
    %2383 = vmatprep.subr.mxu0 0.0
    %2384 = vmatpush1.msra.mxu0 0.0
    %2385 = vmatprep.subr.mxu0 0.0
    %2386 = vmatpush1.msra.mxu0 0.0
    %2387 = vmatprep.subr.mxu0 0.0
    %2388 = vmatpush1.msra.mxu0 0.0
    %2389 = vmatprep.subr.mxu0 0.0
    %2390 = vmatpush1.msra.mxu0 0.0
    %2391 = vmatprep.subr.mxu0 0.0
    %2392 = vmatpush1.msra.mxu0 0.0
    %2393 = vmatprep.subr.mxu0 0.0
    %2394 = vmatpush1.msra.mxu0 %v2285
    %2395 = vmatprep.subr.mxu0 0.0
    %2396 = vmatpush1.msra.mxu0 %v2284
    %2397 = vmatprep.subr.mxu0 0.0
    %2398 = vmatpush1.msra.mxu0 %v2283
    %2399 = vmatprep.subr.mxu0 0.0
    %2400 = vmatpush1.msra.mxu0 %v2282
    %2401 = vmatprep.subr.mxu0 0.0
    %2402 = vmatpush2.msra.mxu0 0.0
    %2403 = vmatprep.subr.mxu0 0.0
    %2404 = vmatpush2.msra.mxu0 0.0
    %2405 = vmatprep.subr.mxu0 0.0
    %2406 = vmatpush2.msra.mxu0 0.0
    %2407 = vmatprep.subr.mxu0 0.0
    %2408 = vmatpush2.msra.mxu0 0.0
    %2409 = vmatprep.subr.mxu0 0.0
    %2410 = vmatpush2.msra.mxu0 0.0
    %2411 = vmatprep.subr.mxu0 0.0
    %2412 = vmatpush2.msra.mxu0 0.0
    %2413 = vmatprep.subr.mxu0 0.0
    %2414 = vmatpush2.msra.mxu0 0.0
    %2415 = vmatprep.subr.mxu0 0.0
    %2416 = vmatpush2.msra.mxu0 0.0
    %2417 = vmatprep.subr.mxu0 0.0
    %2418 = vmatpush2.msra.mxu0 0.0
    %2419 = vmatprep.subr.mxu0 0.0
    %2420 = vmatpush2.msra.mxu0 0.0
    %2421 = vmatprep.subr.mxu0 0.0
    %2422 = vmatpush2.msra.mxu0 0.0
    %2423 = vmatprep.subr.mxu0 0.0
    %2424 = vmatpush2.msra.mxu0 0.0
    %2425 = vmatprep.subr.mxu0 0.0
    %2426 = vmatpush2.msra.mxu0 0.0
    %2427 = vmatprep.subr.mxu0 0.0
    %2428 = vmatpush2.msra.mxu0 0.0
    %2429 = vmatprep.subr.mxu0 0.0
    %2430 = vmatpush2.msra.mxu0 0.0
    %2431 = vmatprep.subr.mxu0 0.0
    %2432 = vmatpush2.msra.mxu0 0.0
    %2433 = vmatprep.mubr.f32.mxu0 0.0
    %2434 = vmatmul.mubr.f32.gmra.mxu0 %v2367
    %v2435 = vpop.f32.mrf.mxu0
    %v2436 = vadd.f32 %v2361, %v2435
    %v2437 = vpop.f32.mrf.mxu0
    %2438 = vdwg.mxu0
    %v2439 = vadd.f32 %v2436, %v57
    %v2440 = vtanh.pop %v2439
    %v2441 = vmul.f32 %v2440, %v49
    %v2442 = vadd.f32 %v2441, %v50
    %v2443 = vmul.f32 %v2442, %v2164
    %2445 = vrot.lane.b32.xlu0 %v2442, 64
    %v2446 = vpop.permute.xlu0 %2445
    %v2448 = vmul.f32 %v2442, %v2446
    %2450 = vrot.lane.b32.xlu0 %v2448, 32
    %v2451 = vpop.permute.xlu0 %2450
    %v2453 = vadd.f32 %v2443, %v2451
    %v2454 = vtanh.pop %v2453
    %2456 = vrot.lane.b32.xlu0 %v2454, 64
    %v2457 = vpop.permute.xlu0 %2456
    %v2459 = vmul.f32 %v2442, %v2457
    %2461 = vrot.lane.b32.xlu0 %v2459, 64
    %v2462 = vpop.permute.xlu0 %2461
    %2464 = vst.msk [vmem:[#allocation2 + $0xe] sm:$0x3] %vm443, %v2462
    %v2465 = vld [vmem:[%s2] sm:$0xff]
    %v2466 = vld [vmem:[%s2 + $0x8] sm:$0xff]
    %v2467 = vld [vmem:[%s2 + $0x10] sm:$0xff]
    %v2468 = vld [vmem:[%s2 + $0x18] sm:$0xff]
    %2469 = vmatprep.subr.mxu0 0.0
    %2470 = vmatpush1.msra.mxu0 0.0
    %2471 = vmatprep.subr.mxu0 0.0
    %2472 = vmatpush1.msra.mxu0 0.0
    %2473 = vmatprep.subr.mxu0 0.0
    %2474 = vmatpush1.msra.mxu0 0.0
    %2475 = vmatprep.subr.mxu0 0.0
    %2476 = vmatpush1.msra.mxu0 0.0
    %2477 = vmatprep.subr.mxu0 0.0
    %2478 = vmatpush1.msra.mxu0 0.0
    %2479 = vmatprep.subr.mxu0 0.0
    %2480 = vmatpush1.msra.mxu0 0.0
    %2481 = vmatprep.subr.mxu0 0.0
    %2482 = vmatpush1.msra.mxu0 0.0
    %2483 = vmatprep.subr.mxu0 0.0
    %2484 = vmatpush1.msra.mxu0 0.0
    %2485 = vmatprep.subr.mxu0 0.0
    %2486 = vmatpush1.msra.mxu0 0.0
    %2487 = vmatprep.subr.mxu0 0.0
    %2488 = vmatpush1.msra.mxu0 0.0
    %2489 = vmatprep.subr.mxu0 0.0
    %2490 = vmatpush1.msra.mxu0 0.0
    %2491 = vmatprep.subr.mxu0 0.0
    %2492 = vmatpush1.msra.mxu0 0.0
    %2493 = vmatprep.subr.mxu0 0.0
    %2494 = vmatpush1.msra.mxu0 %v2468
    %2495 = vmatprep.subr.mxu0 0.0
    %2496 = vmatpush1.msra.mxu0 %v2467
    %2497 = vmatprep.subr.mxu0 0.0
    %2498 = vmatpush1.msra.mxu0 %v2466
    %2499 = vmatprep.subr.mxu0 0.0
    %2500 = vmatpush1.msra.mxu0 %v2465
    %2501 = vmatprep.subr.mxu0 0.0
    %2502 = vmatpush2.msra.mxu0 0.0
    %2503 = vmatprep.subr.mxu0 0.0
    %2504 = vmatpush2.msra.mxu0 0.0
    %2505 = vmatprep.subr.mxu0 0.0
    %2506 = vmatpush2.msra.mxu0 0.0
    %2507 = vmatprep.subr.mxu0 0.0
    %2508 = vmatpush2.msra.mxu0 0.0
    %2509 = vmatprep.subr.mxu0 0.0
    %2510 = vmatpush2.msra.mxu0 0.0
    %2511 = vmatprep.subr.mxu0 0.0
    %2512 = vmatpush2.msra.mxu0 0.0
    %2513 = vmatprep.subr.mxu0 0.0
    %2514 = vmatpush2.msra.mxu0 0.0
    %2515 = vmatprep.subr.mxu0 0.0
    %2516 = vmatpush2.msra.mxu0 0.0
    %2517 = vmatprep.subr.mxu0 0.0
    %2518 = vmatpush2.msra.mxu0 0.0
    %2519 = vmatprep.subr.mxu0 0.0
    %2520 = vmatpush2.msra.mxu0 0.0
    %2521 = vmatprep.subr.mxu0 0.0
    %2522 = vmatpush2.msra.mxu0 0.0
    %2523 = vmatprep.subr.mxu0 0.0
    %2524 = vmatpush2.msra.mxu0 0.0
    %2525 = vmatprep.subr.mxu0 0.0
    %2526 = vmatpush2.msra.mxu0 0.0
    %2527 = vmatprep.subr.mxu0 0.0
    %2528 = vmatpush2.msra.mxu0 0.0
    %2529 = vmatprep.subr.mxu0 0.0
    %2530 = vmatpush2.msra.mxu0 0.0
    %2531 = vmatprep.subr.mxu0 0.0
    %2532 = vmatpush2.msra.mxu0 0.0
    %2533 = vmatprep.mubr.f32.mxu0 0.0
    %2534 = vmatmul.mubr.f32.gmra.mxu0 %v2367
    %v2535 = vpop.f32.mrf.mxu0
    %v2536 = vadd.f32 0.0, %v2535
    %v2537 = vpop.f32.mrf.mxu0
    %2538 = vdwg.mxu0
    %v2539 = vadd.f32 %v160, %v2536
    %v2540 = vtanh.pop %v2539
    %v2541 = vmul.f32 %v2540, %v49
    %v2542 = vadd.f32 %v2541, %v50
    %v2544 = vrot.slane %v2270, 6
    %v2546 = vmul.f32 %v2542, %v2544
    %2548 = vrot.lane.b32.xlu0 %v2542, 64
    %v2549 = vpop.permute.xlu0 %2548
    %v2551 = vmul.f32 %v2542, %v2549
    %2553 = vrot.lane.b32.xlu0 %v2551, 32
    %v2554 = vpop.permute.xlu0 %2553
    %v2556 = vadd.f32 %v2546, %v2554
    %v2557 = vtanh.pop %v2556
    %2559 = vrot.lane.b32.xlu0 %v2557, 64
    %v2560 = vpop.permute.xlu0 %2559
    %v2562 = vmul.f32 %v2542, %v2560
    %2564 = vrot.lane.b32.xlu0 %v2562, 32
    %v2565 = vpop.permute.xlu0 %2564
    %2567 = vst.msk [vmem:[#allocation2 + $0x10] sm:$0x3] %vm266, %v2565
    %v2568 = vld [vmem:[%s4] sm:$0xff]
    %v2569 = vld [vmem:[%s4 + $0x8] sm:$0xff]
    %v2570 = vld [vmem:[%s4 + $0x10] sm:$0xff]
    %v2571 = vld [vmem:[%s4 + $0x18] sm:$0xff]
    %v2572 = vld [vmem:[%s5] sm:$0xff]
    %v2573 = vld [vmem:[%s5 + $0x8] sm:$0xff]
    %v2574 = vld [vmem:[%s5 + $0x10] sm:$0xff]
    %v2575 = vld [vmem:[%s5 + $0x18] sm:$0xff]
    %2576 = vrot.lane.b32.xlu0 %v2459, 32
    %v2577 = vpop.permute.xlu0 %2576
    %v2578 = vsel %vm167, %v2577, 0
    %2580 = vmatprep.subr.mxu0 0.0
    %2581 = vmatpush1.msra.mxu0 0.0
    %2582 = vmatprep.subr.mxu0 0.0
    %2583 = vmatpush1.msra.mxu0 0.0
    %2584 = vmatprep.subr.mxu0 0.0
    %2585 = vmatpush1.msra.mxu0 0.0
    %2586 = vmatprep.subr.mxu0 0.0
    %2587 = vmatpush1.msra.mxu0 0.0
    %2588 = vmatprep.subr.mxu0 0.0
    %2589 = vmatpush1.msra.mxu0 0.0
    %2590 = vmatprep.subr.mxu0 0.0
    %2591 = vmatpush1.msra.mxu0 0.0
    %2592 = vmatprep.subr.mxu0 0.0
    %2593 = vmatpush1.msra.mxu0 0.0
    %2594 = vmatprep.subr.mxu0 0.0
    %2595 = vmatpush1.msra.mxu0 0.0
    %2596 = vmatprep.subr.mxu0 0.0
    %2597 = vmatpush1.msra.mxu0 0.0
    %2598 = vmatprep.subr.mxu0 0.0
    %2599 = vmatpush1.msra.mxu0 0.0
    %2600 = vmatprep.subr.mxu0 0.0
    %2601 = vmatpush1.msra.mxu0 0.0
    %2602 = vmatprep.subr.mxu0 0.0
    %2603 = vmatpush1.msra.mxu0 0.0
    %2604 = vmatprep.subr.mxu0 0.0
    %2605 = vmatpush1.msra.mxu0 %v2575
    %2606 = vmatprep.subr.mxu0 0.0
    %2607 = vmatpush1.msra.mxu0 %v2574
    %2608 = vmatprep.subr.mxu0 0.0
    %2609 = vmatpush1.msra.mxu0 %v2573
    %2610 = vmatprep.subr.mxu0 0.0
    %2611 = vmatpush1.msra.mxu0 %v2572
    %2612 = vmatprep.subr.mxu0 0.0
    %2613 = vmatpush2.msra.mxu0 0.0
    %2614 = vmatprep.subr.mxu0 0.0
    %2615 = vmatpush2.msra.mxu0 0.0
    %2616 = vmatprep.subr.mxu0 0.0
    %2617 = vmatpush2.msra.mxu0 0.0
    %2618 = vmatprep.subr.mxu0 0.0
    %2619 = vmatpush2.msra.mxu0 0.0
    %2620 = vmatprep.subr.mxu0 0.0
    %2621 = vmatpush2.msra.mxu0 0.0
    %2622 = vmatprep.subr.mxu0 0.0
    %2623 = vmatpush2.msra.mxu0 0.0
    %2624 = vmatprep.subr.mxu0 0.0
    %2625 = vmatpush2.msra.mxu0 0.0
    %2626 = vmatprep.subr.mxu0 0.0
    %2627 = vmatpush2.msra.mxu0 0.0
    %2628 = vmatprep.subr.mxu0 0.0
    %2629 = vmatpush2.msra.mxu0 0.0
    %2630 = vmatprep.subr.mxu0 0.0
    %2631 = vmatpush2.msra.mxu0 0.0
    %2632 = vmatprep.subr.mxu0 0.0
    %2633 = vmatpush2.msra.mxu0 0.0
    %2634 = vmatprep.subr.mxu0 0.0
    %2635 = vmatpush2.msra.mxu0 0.0
    %2636 = vmatprep.subr.mxu0 0.0
    %2637 = vmatpush2.msra.mxu0 0.0
    %2638 = vmatprep.subr.mxu0 0.0
    %2639 = vmatpush2.msra.mxu0 0.0
    %2640 = vmatprep.subr.mxu0 0.0
    %2641 = vmatpush2.msra.mxu0 0.0
    %2642 = vmatprep.subr.mxu0 0.0
    %2643 = vmatpush2.msra.mxu0 0.0
    %2644 = vmatprep.mubr.f32.mxu0 0.0
    %2645 = vmatmul.mubr.f32.gmra.mxu0 %v2578
    %v2646 = vpop.f32.mrf.mxu0
    %v2647 = vadd.f32 0.0, %v2646
    %v2648 = vpop.f32.mrf.mxu0
    %2649 = vdwg.mxu0
    %v2650 = vsel %vm167, %v2565, 0
    %2652 = vmatprep.subr.mxu0 0.0
    %2653 = vmatpush1.msra.mxu0 0.0
    %2654 = vmatprep.subr.mxu0 0.0
    %2655 = vmatpush1.msra.mxu0 0.0
    %2656 = vmatprep.subr.mxu0 0.0
    %2657 = vmatpush1.msra.mxu0 0.0
    %2658 = vmatprep.subr.mxu0 0.0
    %2659 = vmatpush1.msra.mxu0 0.0
    %2660 = vmatprep.subr.mxu0 0.0
    %2661 = vmatpush1.msra.mxu0 0.0
    %2662 = vmatprep.subr.mxu0 0.0
    %2663 = vmatpush1.msra.mxu0 0.0
    %2664 = vmatprep.subr.mxu0 0.0
    %2665 = vmatpush1.msra.mxu0 0.0
    %2666 = vmatprep.subr.mxu0 0.0
    %2667 = vmatpush1.msra.mxu0 0.0
    %2668 = vmatprep.subr.mxu0 0.0
    %2669 = vmatpush1.msra.mxu0 0.0
    %2670 = vmatprep.subr.mxu0 0.0
    %2671 = vmatpush1.msra.mxu0 0.0
    %2672 = vmatprep.subr.mxu0 0.0
    %2673 = vmatpush1.msra.mxu0 0.0
    %2674 = vmatprep.subr.mxu0 0.0
    %2675 = vmatpush1.msra.mxu0 0.0
    %2676 = vmatprep.subr.mxu0 0.0
    %2677 = vmatpush1.msra.mxu0 %v2571
    %2678 = vmatprep.subr.mxu0 0.0
    %2679 = vmatpush1.msra.mxu0 %v2570
    %2680 = vmatprep.subr.mxu0 0.0
    %2681 = vmatpush1.msra.mxu0 %v2569
    %2682 = vmatprep.subr.mxu0 0.0
    %2683 = vmatpush1.msra.mxu0 %v2568
    %2684 = vmatprep.subr.mxu0 0.0
    %2685 = vmatpush2.msra.mxu0 0.0
    %2686 = vmatprep.subr.mxu0 0.0
    %2687 = vmatpush2.msra.mxu0 0.0
    %2688 = vmatprep.subr.mxu0 0.0
    %2689 = vmatpush2.msra.mxu0 0.0
    %2690 = vmatprep.subr.mxu0 0.0
    %2691 = vmatpush2.msra.mxu0 0.0
    %2692 = vmatprep.subr.mxu0 0.0
    %2693 = vmatpush2.msra.mxu0 0.0
    %2694 = vmatprep.subr.mxu0 0.0
    %2695 = vmatpush2.msra.mxu0 0.0
    %2696 = vmatprep.subr.mxu0 0.0
    %2697 = vmatpush2.msra.mxu0 0.0
    %2698 = vmatprep.subr.mxu0 0.0
    %2699 = vmatpush2.msra.mxu0 0.0
    %2700 = vmatprep.subr.mxu0 0.0
    %2701 = vmatpush2.msra.mxu0 0.0
    %2702 = vmatprep.subr.mxu0 0.0
    %2703 = vmatpush2.msra.mxu0 0.0
    %2704 = vmatprep.subr.mxu0 0.0
    %2705 = vmatpush2.msra.mxu0 0.0
    %2706 = vmatprep.subr.mxu0 0.0
    %2707 = vmatpush2.msra.mxu0 0.0
    %2708 = vmatprep.subr.mxu0 0.0
    %2709 = vmatpush2.msra.mxu0 0.0
    %2710 = vmatprep.subr.mxu0 0.0
    %2711 = vmatpush2.msra.mxu0 0.0
    %2712 = vmatprep.subr.mxu0 0.0
    %2713 = vmatpush2.msra.mxu0 0.0
    %2714 = vmatprep.subr.mxu0 0.0
    %2715 = vmatpush2.msra.mxu0 0.0
    %2716 = vmatprep.mubr.f32.mxu0 0.0
    %2717 = vmatmul.mubr.f32.gmra.mxu0 %v2650
    %v2718 = vpop.f32.mrf.mxu0
    %v2719 = vadd.f32 %v2647, %v2718
    %v2720 = vpop.f32.mrf.mxu0
    %2721 = vdwg.mxu0
    %v2722 = vadd.f32 %v2719, %v57
    %v2723 = vtanh.pop %v2722
    %v2724 = vmul.f32 %v2723, %v49
    %v2725 = vadd.f32 %v2724, %v50
    %v2726 = vmul.f32 %v2725, %v2453
    %2728 = vrot.lane.b32.xlu0 %v2725, 64
    %v2729 = vpop.permute.xlu0 %2728
    %v2731 = vmul.f32 %v2725, %v2729
    %2733 = vrot.lane.b32.xlu0 %v2731, 32
    %v2734 = vpop.permute.xlu0 %2733
    %v2736 = vadd.f32 %v2726, %v2734
    %v2737 = vtanh.pop %v2736
    %2739 = vrot.lane.b32.xlu0 %v2737, 64
    %v2740 = vpop.permute.xlu0 %2739
    %v2742 = vmul.f32 %v2725, %v2740
    %2744 = vrot.lane.b32.xlu0 %v2742, 64
    %v2745 = vpop.permute.xlu0 %2744
    %2747 = vst.msk [vmem:[#allocation2 + $0x10] sm:$0x3] %vm443, %v2745
    %v2748 = vld [vmem:[%s2] sm:$0xff]
    %v2749 = vld [vmem:[%s2 + $0x8] sm:$0xff]
    %v2750 = vld [vmem:[%s2 + $0x10] sm:$0xff]
    %v2751 = vld [vmem:[%s2 + $0x18] sm:$0xff]
    %2752 = vmatprep.subr.mxu0 0.0
    %2753 = vmatpush1.msra.mxu0 0.0
    %2754 = vmatprep.subr.mxu0 0.0
    %2755 = vmatpush1.msra.mxu0 0.0
    %2756 = vmatprep.subr.mxu0 0.0
    %2757 = vmatpush1.msra.mxu0 0.0
    %2758 = vmatprep.subr.mxu0 0.0
    %2759 = vmatpush1.msra.mxu0 0.0
    %2760 = vmatprep.subr.mxu0 0.0
    %2761 = vmatpush1.msra.mxu0 0.0
    %2762 = vmatprep.subr.mxu0 0.0
    %2763 = vmatpush1.msra.mxu0 0.0
    %2764 = vmatprep.subr.mxu0 0.0
    %2765 = vmatpush1.msra.mxu0 0.0
    %2766 = vmatprep.subr.mxu0 0.0
    %2767 = vmatpush1.msra.mxu0 0.0
    %2768 = vmatprep.subr.mxu0 0.0
    %2769 = vmatpush1.msra.mxu0 0.0
    %2770 = vmatprep.subr.mxu0 0.0
    %2771 = vmatpush1.msra.mxu0 0.0
    %2772 = vmatprep.subr.mxu0 0.0
    %2773 = vmatpush1.msra.mxu0 0.0
    %2774 = vmatprep.subr.mxu0 0.0
    %2775 = vmatpush1.msra.mxu0 0.0
    %2776 = vmatprep.subr.mxu0 0.0
    %2777 = vmatpush1.msra.mxu0 %v2751
    %2778 = vmatprep.subr.mxu0 0.0
    %2779 = vmatpush1.msra.mxu0 %v2750
    %2780 = vmatprep.subr.mxu0 0.0
    %2781 = vmatpush1.msra.mxu0 %v2749
    %2782 = vmatprep.subr.mxu0 0.0
    %2783 = vmatpush1.msra.mxu0 %v2748
    %2784 = vmatprep.subr.mxu0 0.0
    %2785 = vmatpush2.msra.mxu0 0.0
    %2786 = vmatprep.subr.mxu0 0.0
    %2787 = vmatpush2.msra.mxu0 0.0
    %2788 = vmatprep.subr.mxu0 0.0
    %2789 = vmatpush2.msra.mxu0 0.0
    %2790 = vmatprep.subr.mxu0 0.0
    %2791 = vmatpush2.msra.mxu0 0.0
    %2792 = vmatprep.subr.mxu0 0.0
    %2793 = vmatpush2.msra.mxu0 0.0
    %2794 = vmatprep.subr.mxu0 0.0
    %2795 = vmatpush2.msra.mxu0 0.0
    %2796 = vmatprep.subr.mxu0 0.0
    %2797 = vmatpush2.msra.mxu0 0.0
    %2798 = vmatprep.subr.mxu0 0.0
    %2799 = vmatpush2.msra.mxu0 0.0
    %2800 = vmatprep.subr.mxu0 0.0
    %2801 = vmatpush2.msra.mxu0 0.0
    %2802 = vmatprep.subr.mxu0 0.0
    %2803 = vmatpush2.msra.mxu0 0.0
    %2804 = vmatprep.subr.mxu0 0.0
    %2805 = vmatpush2.msra.mxu0 0.0
    %2806 = vmatprep.subr.mxu0 0.0
    %2807 = vmatpush2.msra.mxu0 0.0
    %2808 = vmatprep.subr.mxu0 0.0
    %2809 = vmatpush2.msra.mxu0 0.0
    %2810 = vmatprep.subr.mxu0 0.0
    %2811 = vmatpush2.msra.mxu0 0.0
    %2812 = vmatprep.subr.mxu0 0.0
    %2813 = vmatpush2.msra.mxu0 0.0
    %2814 = vmatprep.subr.mxu0 0.0
    %2815 = vmatpush2.msra.mxu0 0.0
    %2816 = vmatprep.mubr.f32.mxu0 0.0
    %2817 = vmatmul.mubr.f32.gmra.mxu0 %v2650
    %v2818 = vpop.f32.mrf.mxu0
    %v2819 = vadd.f32 0.0, %v2818
    %v2820 = vpop.f32.mrf.mxu0
    %2821 = vdwg.mxu0
    %v2823 = vrot.slane %v2819, 6
    %v2825 = vadd.f32 %v160, %v2823
    %v2826 = vtanh.pop %v2825
    %v2827 = vmul.f32 %v2826, %v49
    %v2828 = vadd.f32 %v2827, %v50
    %v2830 = vrot.slane %v2556, 6
    %v2832 = vmul.f32 %v2828, %v2830
    %2834 = vrot.lane.b32.xlu0 %v2828, 64
    %v2835 = vpop.permute.xlu0 %2834
    %v2837 = vmul.f32 %v2828, %v2835
    %2839 = vrot.lane.b32.xlu0 %v2837, 32
    %v2840 = vpop.permute.xlu0 %2839
    %v2842 = vadd.f32 %v2832, %v2840
    %v2843 = vtanh.pop %v2842
    %2845 = vrot.lane.b32.xlu0 %v2843, 64
    %v2846 = vpop.permute.xlu0 %2845
    %v2848 = vmul.f32 %v2828, %v2846
    %2850 = vrot.lane.b32.xlu0 %v2848, 32
    %v2851 = vpop.permute.xlu0 %2850
    %2853 = vst.msk [vmem:[#allocation2 + $0x10] sm:$0xc] %vm550, %v2851
    %v2854 = vld [vmem:[%s4] sm:$0xff]
    %v2855 = vld [vmem:[%s4 + $0x8] sm:$0xff]
    %v2856 = vld [vmem:[%s4 + $0x10] sm:$0xff]
    %v2857 = vld [vmem:[%s4 + $0x18] sm:$0xff]
    %v2858 = vld [vmem:[%s5] sm:$0xff]
    %v2859 = vld [vmem:[%s5 + $0x8] sm:$0xff]
    %v2860 = vld [vmem:[%s5 + $0x10] sm:$0xff]
    %v2861 = vld [vmem:[%s5 + $0x18] sm:$0xff]
    %2862 = vrot.lane.b32.xlu0 %v2742, 32
    %v2863 = vpop.permute.xlu0 %2862
    %v2864 = vsel %vm167, %v2863, 0
    %2866 = vmatprep.subr.mxu0 0.0
    %2867 = vmatpush1.msra.mxu0 0.0
    %2868 = vmatprep.subr.mxu0 0.0
    %2869 = vmatpush1.msra.mxu0 0.0
    %2870 = vmatprep.subr.mxu0 0.0
    %2871 = vmatpush1.msra.mxu0 0.0
    %2872 = vmatprep.subr.mxu0 0.0
    %2873 = vmatpush1.msra.mxu0 0.0
    %2874 = vmatprep.subr.mxu0 0.0
    %2875 = vmatpush1.msra.mxu0 0.0
    %2876 = vmatprep.subr.mxu0 0.0
    %2877 = vmatpush1.msra.mxu0 0.0
    %2878 = vmatprep.subr.mxu0 0.0
    %2879 = vmatpush1.msra.mxu0 0.0
    %2880 = vmatprep.subr.mxu0 0.0
    %2881 = vmatpush1.msra.mxu0 0.0
    %2882 = vmatprep.subr.mxu0 0.0
    %2883 = vmatpush1.msra.mxu0 0.0
    %2884 = vmatprep.subr.mxu0 0.0
    %2885 = vmatpush1.msra.mxu0 0.0
    %2886 = vmatprep.subr.mxu0 0.0
    %2887 = vmatpush1.msra.mxu0 0.0
    %2888 = vmatprep.subr.mxu0 0.0
    %2889 = vmatpush1.msra.mxu0 0.0
    %2890 = vmatprep.subr.mxu0 0.0
    %2891 = vmatpush1.msra.mxu0 %v2861
    %2892 = vmatprep.subr.mxu0 0.0
    %2893 = vmatpush1.msra.mxu0 %v2860
    %2894 = vmatprep.subr.mxu0 0.0
    %2895 = vmatpush1.msra.mxu0 %v2859
    %2896 = vmatprep.subr.mxu0 0.0
    %2897 = vmatpush1.msra.mxu0 %v2858
    %2898 = vmatprep.subr.mxu0 0.0
    %2899 = vmatpush2.msra.mxu0 0.0
    %2900 = vmatprep.subr.mxu0 0.0
    %2901 = vmatpush2.msra.mxu0 0.0
    %2902 = vmatprep.subr.mxu0 0.0
    %2903 = vmatpush2.msra.mxu0 0.0
    %2904 = vmatprep.subr.mxu0 0.0
    %2905 = vmatpush2.msra.mxu0 0.0
    %2906 = vmatprep.subr.mxu0 0.0
    %2907 = vmatpush2.msra.mxu0 0.0
    %2908 = vmatprep.subr.mxu0 0.0
    %2909 = vmatpush2.msra.mxu0 0.0
    %2910 = vmatprep.subr.mxu0 0.0
    %2911 = vmatpush2.msra.mxu0 0.0
    %2912 = vmatprep.subr.mxu0 0.0
    %2913 = vmatpush2.msra.mxu0 0.0
    %2914 = vmatprep.subr.mxu0 0.0
    %2915 = vmatpush2.msra.mxu0 0.0
    %2916 = vmatprep.subr.mxu0 0.0
    %2917 = vmatpush2.msra.mxu0 0.0
    %2918 = vmatprep.subr.mxu0 0.0
    %2919 = vmatpush2.msra.mxu0 0.0
    %2920 = vmatprep.subr.mxu0 0.0
    %2921 = vmatpush2.msra.mxu0 0.0
    %2922 = vmatprep.subr.mxu0 0.0
    %2923 = vmatpush2.msra.mxu0 0.0
    %2924 = vmatprep.subr.mxu0 0.0
    %2925 = vmatpush2.msra.mxu0 0.0
    %2926 = vmatprep.subr.mxu0 0.0
    %2927 = vmatpush2.msra.mxu0 0.0
    %2928 = vmatprep.subr.mxu0 0.0
    %2929 = vmatpush2.msra.mxu0 0.0
    %2930 = vmatprep.mubr.f32.mxu0 0.0
    %2931 = vmatmul.mubr.f32.gmra.mxu0 %v2864
    %v2932 = vpop.f32.mrf.mxu0
    %v2933 = vadd.f32 0.0, %v2932
    %v2934 = vpop.f32.mrf.mxu0
    %2935 = vdwg.mxu0
    %v2936 = vrot.slane %v2848, 2
    %2937 = vrot.lane.b32.xlu0 %v2936, 32
    %v2938 = vpop.permute.xlu0 %2937
    %v2939 = vsel %vm167, %v2938, 0
    %2941 = vmatprep.subr.mxu0 0.0
    %2942 = vmatpush1.msra.mxu0 0.0
    %2943 = vmatprep.subr.mxu0 0.0
    %2944 = vmatpush1.msra.mxu0 0.0
    %2945 = vmatprep.subr.mxu0 0.0
    %2946 = vmatpush1.msra.mxu0 0.0
    %2947 = vmatprep.subr.mxu0 0.0
    %2948 = vmatpush1.msra.mxu0 0.0
    %2949 = vmatprep.subr.mxu0 0.0
    %2950 = vmatpush1.msra.mxu0 0.0
    %2951 = vmatprep.subr.mxu0 0.0
    %2952 = vmatpush1.msra.mxu0 0.0
    %2953 = vmatprep.subr.mxu0 0.0
    %2954 = vmatpush1.msra.mxu0 0.0
    %2955 = vmatprep.subr.mxu0 0.0
    %2956 = vmatpush1.msra.mxu0 0.0
    %2957 = vmatprep.subr.mxu0 0.0
    %2958 = vmatpush1.msra.mxu0 0.0
    %2959 = vmatprep.subr.mxu0 0.0
    %2960 = vmatpush1.msra.mxu0 0.0
    %2961 = vmatprep.subr.mxu0 0.0
    %2962 = vmatpush1.msra.mxu0 0.0
    %2963 = vmatprep.subr.mxu0 0.0
    %2964 = vmatpush1.msra.mxu0 0.0
    %2965 = vmatprep.subr.mxu0 0.0
    %2966 = vmatpush1.msra.mxu0 %v2857
    %2967 = vmatprep.subr.mxu0 0.0
    %2968 = vmatpush1.msra.mxu0 %v2856
    %2969 = vmatprep.subr.mxu0 0.0
    %2970 = vmatpush1.msra.mxu0 %v2855
    %2971 = vmatprep.subr.mxu0 0.0
    %2972 = vmatpush1.msra.mxu0 %v2854
    %2973 = vmatprep.subr.mxu0 0.0
    %2974 = vmatpush2.msra.mxu0 0.0
    %2975 = vmatprep.subr.mxu0 0.0
    %2976 = vmatpush2.msra.mxu0 0.0
    %2977 = vmatprep.subr.mxu0 0.0
    %2978 = vmatpush2.msra.mxu0 0.0
    %2979 = vmatprep.subr.mxu0 0.0
    %2980 = vmatpush2.msra.mxu0 0.0
    %2981 = vmatprep.subr.mxu0 0.0
    %2982 = vmatpush2.msra.mxu0 0.0
    %2983 = vmatprep.subr.mxu0 0.0
    %2984 = vmatpush2.msra.mxu0 0.0
    %2985 = vmatprep.subr.mxu0 0.0
    %2986 = vmatpush2.msra.mxu0 0.0
    %2987 = vmatprep.subr.mxu0 0.0
    %2988 = vmatpush2.msra.mxu0 0.0
    %2989 = vmatprep.subr.mxu0 0.0
    %2990 = vmatpush2.msra.mxu0 0.0
    %2991 = vmatprep.subr.mxu0 0.0
    %2992 = vmatpush2.msra.mxu0 0.0
    %2993 = vmatprep.subr.mxu0 0.0
    %2994 = vmatpush2.msra.mxu0 0.0
    %2995 = vmatprep.subr.mxu0 0.0
    %2996 = vmatpush2.msra.mxu0 0.0
    %2997 = vmatprep.subr.mxu0 0.0
    %2998 = vmatpush2.msra.mxu0 0.0
    %2999 = vmatprep.subr.mxu0 0.0
    %3000 = vmatpush2.msra.mxu0 0.0
    %3001 = vmatprep.subr.mxu0 0.0
    %3002 = vmatpush2.msra.mxu0 0.0
    %3003 = vmatprep.subr.mxu0 0.0
    %3004 = vmatpush2.msra.mxu0 0.0
    %3005 = vmatprep.mubr.f32.mxu0 0.0
    %3006 = vmatmul.mubr.f32.gmra.mxu0 %v2939
    %v3007 = vpop.f32.mrf.mxu0
    %v3008 = vadd.f32 %v2933, %v3007
    %v3009 = vpop.f32.mrf.mxu0
    %3010 = vdwg.mxu0
    %v3011 = vadd.f32 %v3008, %v57
    %v3012 = vtanh.pop %v3011
    %v3013 = vmul.f32 %v3012, %v49
    %v3014 = vadd.f32 %v3013, %v50
    %v3015 = vmul.f32 %v3014, %v2736
    %3017 = vrot.lane.b32.xlu0 %v3014, 64
    %v3018 = vpop.permute.xlu0 %3017
    %v3020 = vmul.f32 %v3014, %v3018
    %3022 = vrot.lane.b32.xlu0 %v3020, 32
    %v3023 = vpop.permute.xlu0 %3022
    %v3025 = vadd.f32 %v3015, %v3023
    %v3026 = vtanh.pop %v3025
    %3028 = vrot.lane.b32.xlu0 %v3026, 64
    %v3029 = vpop.permute.xlu0 %3028
    %v3031 = vmul.f32 %v3014, %v3029
    %3033 = vrot.lane.b32.xlu0 %v3031, 64
    %v3034 = vpop.permute.xlu0 %3033
    %3036 = vst.msk [vmem:[#allocation2 + $0x12] sm:$0x3] %vm443, %v3034
    %v3037 = vld [vmem:[%s2] sm:$0xff]
    %v3038 = vld [vmem:[%s2 + $0x8] sm:$0xff]
    %v3039 = vld [vmem:[%s2 + $0x10] sm:$0xff]
    %v3040 = vld [vmem:[%s2 + $0x18] sm:$0xff]
    %3041 = vmatprep.subr.mxu0 0.0
    %3042 = vmatpush1.msra.mxu0 0.0
    %3043 = vmatprep.subr.mxu0 0.0
    %3044 = vmatpush1.msra.mxu0 0.0
    %3045 = vmatprep.subr.mxu0 0.0
    %3046 = vmatpush1.msra.mxu0 0.0
    %3047 = vmatprep.subr.mxu0 0.0
    %3048 = vmatpush1.msra.mxu0 0.0
    %3049 = vmatprep.subr.mxu0 0.0
    %3050 = vmatpush1.msra.mxu0 0.0
    %3051 = vmatprep.subr.mxu0 0.0
    %3052 = vmatpush1.msra.mxu0 0.0
    %3053 = vmatprep.subr.mxu0 0.0
    %3054 = vmatpush1.msra.mxu0 0.0
    %3055 = vmatprep.subr.mxu0 0.0
    %3056 = vmatpush1.msra.mxu0 0.0
    %3057 = vmatprep.subr.mxu0 0.0
    %3058 = vmatpush1.msra.mxu0 0.0
    %3059 = vmatprep.subr.mxu0 0.0
    %3060 = vmatpush1.msra.mxu0 0.0
    %3061 = vmatprep.subr.mxu0 0.0
    %3062 = vmatpush1.msra.mxu0 0.0
    %3063 = vmatprep.subr.mxu0 0.0
    %3064 = vmatpush1.msra.mxu0 0.0
    %3065 = vmatprep.subr.mxu0 0.0
    %3066 = vmatpush1.msra.mxu0 %v3040
    %3067 = vmatprep.subr.mxu0 0.0
    %3068 = vmatpush1.msra.mxu0 %v3039
    %3069 = vmatprep.subr.mxu0 0.0
    %3070 = vmatpush1.msra.mxu0 %v3038
    %3071 = vmatprep.subr.mxu0 0.0
    %3072 = vmatpush1.msra.mxu0 %v3037
    %3073 = vmatprep.subr.mxu0 0.0
    %3074 = vmatpush2.msra.mxu0 0.0
    %3075 = vmatprep.subr.mxu0 0.0
    %3076 = vmatpush2.msra.mxu0 0.0
    %3077 = vmatprep.subr.mxu0 0.0
    %3078 = vmatpush2.msra.mxu0 0.0
    %3079 = vmatprep.subr.mxu0 0.0
    %3080 = vmatpush2.msra.mxu0 0.0
    %3081 = vmatprep.subr.mxu0 0.0
    %3082 = vmatpush2.msra.mxu0 0.0
    %3083 = vmatprep.subr.mxu0 0.0
    %3084 = vmatpush2.msra.mxu0 0.0
    %3085 = vmatprep.subr.mxu0 0.0
    %3086 = vmatpush2.msra.mxu0 0.0
    %3087 = vmatprep.subr.mxu0 0.0
    %3088 = vmatpush2.msra.mxu0 0.0
    %3089 = vmatprep.subr.mxu0 0.0
    %3090 = vmatpush2.msra.mxu0 0.0
    %3091 = vmatprep.subr.mxu0 0.0
    %3092 = vmatpush2.msra.mxu0 0.0
    %3093 = vmatprep.subr.mxu0 0.0
    %3094 = vmatpush2.msra.mxu0 0.0
    %3095 = vmatprep.subr.mxu0 0.0
    %3096 = vmatpush2.msra.mxu0 0.0
    %3097 = vmatprep.subr.mxu0 0.0
    %3098 = vmatpush2.msra.mxu0 0.0
    %3099 = vmatprep.subr.mxu0 0.0
    %3100 = vmatpush2.msra.mxu0 0.0
    %3101 = vmatprep.subr.mxu0 0.0
    %3102 = vmatpush2.msra.mxu0 0.0
    %3103 = vmatprep.subr.mxu0 0.0
    %3104 = vmatpush2.msra.mxu0 0.0
    %3105 = vmatprep.mubr.f32.mxu0 0.0
    %3106 = vmatmul.mubr.f32.gmra.mxu0 %v2939
    %v3107 = vpop.f32.mrf.mxu0
    %v3108 = vadd.f32 0.0, %v3107
    %v3109 = vpop.f32.mrf.mxu0
    %3110 = vdwg.mxu0
    %v3112 = vrot.slane %v3108, 4
    %v3114 = vadd.f32 %v160, %v3112
    %v3115 = vtanh.pop %v3114
    %v3116 = vmul.f32 %v3115, %v49
    %v3117 = vadd.f32 %v3116, %v50
    %v3119 = vrot.slane %v2842, 6
    %v3121 = vmul.f32 %v3117, %v3119
    %3123 = vrot.lane.b32.xlu0 %v3117, 64
    %v3124 = vpop.permute.xlu0 %3123
    %v3126 = vmul.f32 %v3117, %v3124
    %3128 = vrot.lane.b32.xlu0 %v3126, 32
    %v3129 = vpop.permute.xlu0 %3128
    %v3131 = vadd.f32 %v3121, %v3129
    %v3132 = vtanh.pop %v3131
    %3134 = vrot.lane.b32.xlu0 %v3132, 64
    %v3135 = vpop.permute.xlu0 %3134
    %v3137 = vmul.f32 %v3117, %v3135
    %3139 = vrot.lane.b32.xlu0 %v3137, 32
    %v3140 = vpop.permute.xlu0 %3139
    %3142 = vst.msk [vmem:[#allocation2 + $0x10] sm:$0x30] %vm840, %v3140
    %v3143 = vld [vmem:[%s4] sm:$0xff]
    %v3144 = vld [vmem:[%s4 + $0x8] sm:$0xff]
    %v3145 = vld [vmem:[%s4 + $0x10] sm:$0xff]
    %v3146 = vld [vmem:[%s4 + $0x18] sm:$0xff]
    %v3147 = vld [vmem:[%s5] sm:$0xff]
    %v3148 = vld [vmem:[%s5 + $0x8] sm:$0xff]
    %v3149 = vld [vmem:[%s5 + $0x10] sm:$0xff]
    %v3150 = vld [vmem:[%s5 + $0x18] sm:$0xff]
    %3151 = vrot.lane.b32.xlu0 %v3031, 32
    %v3152 = vpop.permute.xlu0 %3151
    %v3153 = vsel %vm167, %v3152, 0
    %3155 = vmatprep.subr.mxu0 0.0
    %3156 = vmatpush1.msra.mxu0 0.0
    %3157 = vmatprep.subr.mxu0 0.0
    %3158 = vmatpush1.msra.mxu0 0.0
    %3159 = vmatprep.subr.mxu0 0.0
    %3160 = vmatpush1.msra.mxu0 0.0
    %3161 = vmatprep.subr.mxu0 0.0
    %3162 = vmatpush1.msra.mxu0 0.0
    %3163 = vmatprep.subr.mxu0 0.0
    %3164 = vmatpush1.msra.mxu0 0.0
    %3165 = vmatprep.subr.mxu0 0.0
    %3166 = vmatpush1.msra.mxu0 0.0
    %3167 = vmatprep.subr.mxu0 0.0
    %3168 = vmatpush1.msra.mxu0 0.0
    %3169 = vmatprep.subr.mxu0 0.0
    %3170 = vmatpush1.msra.mxu0 0.0
    %3171 = vmatprep.subr.mxu0 0.0
    %3172 = vmatpush1.msra.mxu0 0.0
    %3173 = vmatprep.subr.mxu0 0.0
    %3174 = vmatpush1.msra.mxu0 0.0
    %3175 = vmatprep.subr.mxu0 0.0
    %3176 = vmatpush1.msra.mxu0 0.0
    %3177 = vmatprep.subr.mxu0 0.0
    %3178 = vmatpush1.msra.mxu0 0.0
    %3179 = vmatprep.subr.mxu0 0.0
    %3180 = vmatpush1.msra.mxu0 %v3150
    %3181 = vmatprep.subr.mxu0 0.0
    %3182 = vmatpush1.msra.mxu0 %v3149
    %3183 = vmatprep.subr.mxu0 0.0
    %3184 = vmatpush1.msra.mxu0 %v3148
    %3185 = vmatprep.subr.mxu0 0.0
    %3186 = vmatpush1.msra.mxu0 %v3147
    %3187 = vmatprep.subr.mxu0 0.0
    %3188 = vmatpush2.msra.mxu0 0.0
    %3189 = vmatprep.subr.mxu0 0.0
    %3190 = vmatpush2.msra.mxu0 0.0
    %3191 = vmatprep.subr.mxu0 0.0
    %3192 = vmatpush2.msra.mxu0 0.0
    %3193 = vmatprep.subr.mxu0 0.0
    %3194 = vmatpush2.msra.mxu0 0.0
    %3195 = vmatprep.subr.mxu0 0.0
    %3196 = vmatpush2.msra.mxu0 0.0
    %3197 = vmatprep.subr.mxu0 0.0
    %3198 = vmatpush2.msra.mxu0 0.0
    %3199 = vmatprep.subr.mxu0 0.0
    %3200 = vmatpush2.msra.mxu0 0.0
    %3201 = vmatprep.subr.mxu0 0.0
    %3202 = vmatpush2.msra.mxu0 0.0
    %3203 = vmatprep.subr.mxu0 0.0
    %3204 = vmatpush2.msra.mxu0 0.0
    %3205 = vmatprep.subr.mxu0 0.0
    %3206 = vmatpush2.msra.mxu0 0.0
    %3207 = vmatprep.subr.mxu0 0.0
    %3208 = vmatpush2.msra.mxu0 0.0
    %3209 = vmatprep.subr.mxu0 0.0
    %3210 = vmatpush2.msra.mxu0 0.0
    %3211 = vmatprep.subr.mxu0 0.0
    %3212 = vmatpush2.msra.mxu0 0.0
    %3213 = vmatprep.subr.mxu0 0.0
    %3214 = vmatpush2.msra.mxu0 0.0
    %3215 = vmatprep.subr.mxu0 0.0
    %3216 = vmatpush2.msra.mxu0 0.0
    %3217 = vmatprep.subr.mxu0 0.0
    %3218 = vmatpush2.msra.mxu0 0.0
    %3219 = vmatprep.mubr.f32.mxu0 0.0
    %3220 = vmatmul.mubr.f32.gmra.mxu0 %v3153
    %v3221 = vpop.f32.mrf.mxu0
    %v3222 = vadd.f32 0.0, %v3221
    %v3223 = vpop.f32.mrf.mxu0
    %3224 = vdwg.mxu0
    %v3225 = vrot.slane %v3137, 4
    %3226 = vrot.lane.b32.xlu0 %v3225, 32
    %v3227 = vpop.permute.xlu0 %3226
    %v3228 = vsel %vm167, %v3227, 0
    %3230 = vmatprep.subr.mxu0 0.0
    %3231 = vmatpush1.msra.mxu0 0.0
    %3232 = vmatprep.subr.mxu0 0.0
    %3233 = vmatpush1.msra.mxu0 0.0
    %3234 = vmatprep.subr.mxu0 0.0
    %3235 = vmatpush1.msra.mxu0 0.0
    %3236 = vmatprep.subr.mxu0 0.0
    %3237 = vmatpush1.msra.mxu0 0.0
    %3238 = vmatprep.subr.mxu0 0.0
    %3239 = vmatpush1.msra.mxu0 0.0
    %3240 = vmatprep.subr.mxu0 0.0
    %3241 = vmatpush1.msra.mxu0 0.0
    %3242 = vmatprep.subr.mxu0 0.0
    %3243 = vmatpush1.msra.mxu0 0.0
    %3244 = vmatprep.subr.mxu0 0.0
    %3245 = vmatpush1.msra.mxu0 0.0
    %3246 = vmatprep.subr.mxu0 0.0
    %3247 = vmatpush1.msra.mxu0 0.0
    %3248 = vmatprep.subr.mxu0 0.0
    %3249 = vmatpush1.msra.mxu0 0.0
    %3250 = vmatprep.subr.mxu0 0.0
    %3251 = vmatpush1.msra.mxu0 0.0
    %3252 = vmatprep.subr.mxu0 0.0
    %3253 = vmatpush1.msra.mxu0 0.0
    %3254 = vmatprep.subr.mxu0 0.0
    %3255 = vmatpush1.msra.mxu0 %v3146
    %3256 = vmatprep.subr.mxu0 0.0
    %3257 = vmatpush1.msra.mxu0 %v3145
    %3258 = vmatprep.subr.mxu0 0.0
    %3259 = vmatpush1.msra.mxu0 %v3144
    %3260 = vmatprep.subr.mxu0 0.0
    %3261 = vmatpush1.msra.mxu0 %v3143
    %3262 = vmatprep.subr.mxu0 0.0
    %3263 = vmatpush2.msra.mxu0 0.0
    %3264 = vmatprep.subr.mxu0 0.0
    %3265 = vmatpush2.msra.mxu0 0.0
    %3266 = vmatprep.subr.mxu0 0.0
    %3267 = vmatpush2.msra.mxu0 0.0
    %3268 = vmatprep.subr.mxu0 0.0
    %3269 = vmatpush2.msra.mxu0 0.0
    %3270 = vmatprep.subr.mxu0 0.0
    %3271 = vmatpush2.msra.mxu0 0.0
    %3272 = vmatprep.subr.mxu0 0.0
    %3273 = vmatpush2.msra.mxu0 0.0
    %3274 = vmatprep.subr.mxu0 0.0
    %3275 = vmatpush2.msra.mxu0 0.0
    %3276 = vmatprep.subr.mxu0 0.0
    %3277 = vmatpush2.msra.mxu0 0.0
    %3278 = vmatprep.subr.mxu0 0.0
    %3279 = vmatpush2.msra.mxu0 0.0
    %3280 = vmatprep.subr.mxu0 0.0
    %3281 = vmatpush2.msra.mxu0 0.0
    %3282 = vmatprep.subr.mxu0 0.0
    %3283 = vmatpush2.msra.mxu0 0.0
    %3284 = vmatprep.subr.mxu0 0.0
    %3285 = vmatpush2.msra.mxu0 0.0
    %3286 = vmatprep.subr.mxu0 0.0
    %3287 = vmatpush2.msra.mxu0 0.0
    %3288 = vmatprep.subr.mxu0 0.0
    %3289 = vmatpush2.msra.mxu0 0.0
    %3290 = vmatprep.subr.mxu0 0.0
    %3291 = vmatpush2.msra.mxu0 0.0
    %3292 = vmatprep.subr.mxu0 0.0
    %3293 = vmatpush2.msra.mxu0 0.0
    %3294 = vmatprep.mubr.f32.mxu0 0.0
    %3295 = vmatmul.mubr.f32.gmra.mxu0 %v3228
    %v3296 = vpop.f32.mrf.mxu0
    %v3297 = vadd.f32 %v3222, %v3296
    %v3298 = vpop.f32.mrf.mxu0
    %3299 = vdwg.mxu0
    %v3300 = vadd.f32 %v3297, %v57
    %v3301 = vtanh.pop %v3300
    %v3302 = vmul.f32 %v3301, %v49
    %v3303 = vadd.f32 %v3302, %v50
    %v3304 = vmul.f32 %v3303, %v3025
    %3306 = vrot.lane.b32.xlu0 %v3303, 64
    %v3307 = vpop.permute.xlu0 %3306
    %v3309 = vmul.f32 %v3303, %v3307
    %3311 = vrot.lane.b32.xlu0 %v3309, 32
    %v3312 = vpop.permute.xlu0 %3311
    %v3314 = vadd.f32 %v3304, %v3312
    %v3315 = vtanh.pop %v3314
    %3317 = vrot.lane.b32.xlu0 %v3315, 64
    %v3318 = vpop.permute.xlu0 %3317
    %v3320 = vmul.f32 %v3303, %v3318
    %3322 = vrot.lane.b32.xlu0 %v3320, 64
    %v3323 = vpop.permute.xlu0 %3322
    %3325 = vst.msk [vmem:[#allocation2 + $0x14] sm:$0x3] %vm443, %v3323
    %v3326 = vld [vmem:[%s2] sm:$0xff]
    %v3327 = vld [vmem:[%s2 + $0x8] sm:$0xff]
    %v3328 = vld [vmem:[%s2 + $0x10] sm:$0xff]
    %v3329 = vld [vmem:[%s2 + $0x18] sm:$0xff]
    %3330 = vmatprep.subr.mxu0 0.0
    %3331 = vmatpush1.msra.mxu0 0.0
    %3332 = vmatprep.subr.mxu0 0.0
    %3333 = vmatpush1.msra.mxu0 0.0
    %3334 = vmatprep.subr.mxu0 0.0
    %3335 = vmatpush1.msra.mxu0 0.0
    %3336 = vmatprep.subr.mxu0 0.0
    %3337 = vmatpush1.msra.mxu0 0.0
    %3338 = vmatprep.subr.mxu0 0.0
    %3339 = vmatpush1.msra.mxu0 0.0
    %3340 = vmatprep.subr.mxu0 0.0
    %3341 = vmatpush1.msra.mxu0 0.0
    %3342 = vmatprep.subr.mxu0 0.0
    %3343 = vmatpush1.msra.mxu0 0.0
    %3344 = vmatprep.subr.mxu0 0.0
    %3345 = vmatpush1.msra.mxu0 0.0
    %3346 = vmatprep.subr.mxu0 0.0
    %3347 = vmatpush1.msra.mxu0 0.0
    %3348 = vmatprep.subr.mxu0 0.0
    %3349 = vmatpush1.msra.mxu0 0.0
    %3350 = vmatprep.subr.mxu0 0.0
    %3351 = vmatpush1.msra.mxu0 0.0
    %3352 = vmatprep.subr.mxu0 0.0
    %3353 = vmatpush1.msra.mxu0 0.0
    %3354 = vmatprep.subr.mxu0 0.0
    %3355 = vmatpush1.msra.mxu0 %v3329
    %3356 = vmatprep.subr.mxu0 0.0
    %3357 = vmatpush1.msra.mxu0 %v3328
    %3358 = vmatprep.subr.mxu0 0.0
    %3359 = vmatpush1.msra.mxu0 %v3327
    %3360 = vmatprep.subr.mxu0 0.0
    %3361 = vmatpush1.msra.mxu0 %v3326
    %3362 = vmatprep.subr.mxu0 0.0
    %3363 = vmatpush2.msra.mxu0 0.0
    %3364 = vmatprep.subr.mxu0 0.0
    %3365 = vmatpush2.msra.mxu0 0.0
    %3366 = vmatprep.subr.mxu0 0.0
    %3367 = vmatpush2.msra.mxu0 0.0
    %3368 = vmatprep.subr.mxu0 0.0
    %3369 = vmatpush2.msra.mxu0 0.0
    %3370 = vmatprep.subr.mxu0 0.0
    %3371 = vmatpush2.msra.mxu0 0.0
    %3372 = vmatprep.subr.mxu0 0.0
    %3373 = vmatpush2.msra.mxu0 0.0
    %3374 = vmatprep.subr.mxu0 0.0
    %3375 = vmatpush2.msra.mxu0 0.0
    %3376 = vmatprep.subr.mxu0 0.0
    %3377 = vmatpush2.msra.mxu0 0.0
    %3378 = vmatprep.subr.mxu0 0.0
    %3379 = vmatpush2.msra.mxu0 0.0
    %3380 = vmatprep.subr.mxu0 0.0
    %3381 = vmatpush2.msra.mxu0 0.0
    %3382 = vmatprep.subr.mxu0 0.0
    %3383 = vmatpush2.msra.mxu0 0.0
    %3384 = vmatprep.subr.mxu0 0.0
    %3385 = vmatpush2.msra.mxu0 0.0
    %3386 = vmatprep.subr.mxu0 0.0
    %3387 = vmatpush2.msra.mxu0 0.0
    %3388 = vmatprep.subr.mxu0 0.0
    %3389 = vmatpush2.msra.mxu0 0.0
    %3390 = vmatprep.subr.mxu0 0.0
    %3391 = vmatpush2.msra.mxu0 0.0
    %3392 = vmatprep.subr.mxu0 0.0
    %3393 = vmatpush2.msra.mxu0 0.0
    %3394 = vmatprep.mubr.f32.mxu0 0.0
    %3395 = vmatmul.mubr.f32.gmra.mxu0 %v3228
    %v3396 = vpop.f32.mrf.mxu0
    %v3397 = vadd.f32 0.0, %v3396
    %v3398 = vpop.f32.mrf.mxu0
    %3399 = vdwg.mxu0
    %v3401 = vrot.slane %v3397, 2
    %v3403 = vadd.f32 %v160, %v3401
    %v3404 = vtanh.pop %v3403
    %v3405 = vmul.f32 %v3404, %v49
    %v3406 = vadd.f32 %v3405, %v50
    %v3408 = vrot.slane %v3131, 6
    %v3410 = vmul.f32 %v3406, %v3408
    %3412 = vrot.lane.b32.xlu0 %v3406, 64
    %v3413 = vpop.permute.xlu0 %3412
    %v3415 = vmul.f32 %v3406, %v3413
    %3417 = vrot.lane.b32.xlu0 %v3415, 32
    %v3418 = vpop.permute.xlu0 %3417
    %v3420 = vadd.f32 %v3410, %v3418
    %v3421 = vtanh.pop %v3420
    %3423 = vrot.lane.b32.xlu0 %v3421, 64
    %v3424 = vpop.permute.xlu0 %3423
    %v3426 = vmul.f32 %v3406, %v3424
    %3428 = vrot.lane.b32.xlu0 %v3426, 32
    %v3429 = vpop.permute.xlu0 %3428
    %3431 = vst.msk [vmem:[#allocation2 + $0x10] sm:$0xc0] %vm1130, %v3429
    %v3432 = vld [vmem:[%s4] sm:$0xff]
    %v3433 = vld [vmem:[%s4 + $0x8] sm:$0xff]
    %v3434 = vld [vmem:[%s4 + $0x10] sm:$0xff]
    %v3435 = vld [vmem:[%s4 + $0x18] sm:$0xff]
    %v3436 = vld [vmem:[%s5] sm:$0xff]
    %v3437 = vld [vmem:[%s5 + $0x8] sm:$0xff]
    %v3438 = vld [vmem:[%s5 + $0x10] sm:$0xff]
    %v3439 = vld [vmem:[%s5 + $0x18] sm:$0xff]
    %3440 = vrot.lane.b32.xlu0 %v3320, 32
    %v3441 = vpop.permute.xlu0 %3440
    %v3442 = vsel %vm167, %v3441, 0
    %3444 = vmatprep.subr.mxu0 0.0
    %3445 = vmatpush1.msra.mxu0 0.0
    %3446 = vmatprep.subr.mxu0 0.0
    %3447 = vmatpush1.msra.mxu0 0.0
    %3448 = vmatprep.subr.mxu0 0.0
    %3449 = vmatpush1.msra.mxu0 0.0
    %3450 = vmatprep.subr.mxu0 0.0
    %3451 = vmatpush1.msra.mxu0 0.0
    %3452 = vmatprep.subr.mxu0 0.0
    %3453 = vmatpush1.msra.mxu0 0.0
    %3454 = vmatprep.subr.mxu0 0.0
    %3455 = vmatpush1.msra.mxu0 0.0
    %3456 = vmatprep.subr.mxu0 0.0
    %3457 = vmatpush1.msra.mxu0 0.0
    %3458 = vmatprep.subr.mxu0 0.0
    %3459 = vmatpush1.msra.mxu0 0.0
    %3460 = vmatprep.subr.mxu0 0.0
    %3461 = vmatpush1.msra.mxu0 0.0
    %3462 = vmatprep.subr.mxu0 0.0
    %3463 = vmatpush1.msra.mxu0 0.0
    %3464 = vmatprep.subr.mxu0 0.0
    %3465 = vmatpush1.msra.mxu0 0.0
    %3466 = vmatprep.subr.mxu0 0.0
    %3467 = vmatpush1.msra.mxu0 0.0
    %3468 = vmatprep.subr.mxu0 0.0
    %3469 = vmatpush1.msra.mxu0 %v3439
    %3470 = vmatprep.subr.mxu0 0.0
    %3471 = vmatpush1.msra.mxu0 %v3438
    %3472 = vmatprep.subr.mxu0 0.0
    %3473 = vmatpush1.msra.mxu0 %v3437
    %3474 = vmatprep.subr.mxu0 0.0
    %3475 = vmatpush1.msra.mxu0 %v3436
    %3476 = vmatprep.subr.mxu0 0.0
    %3477 = vmatpush2.msra.mxu0 0.0
    %3478 = vmatprep.subr.mxu0 0.0
    %3479 = vmatpush2.msra.mxu0 0.0
    %3480 = vmatprep.subr.mxu0 0.0
    %3481 = vmatpush2.msra.mxu0 0.0
    %3482 = vmatprep.subr.mxu0 0.0
    %3483 = vmatpush2.msra.mxu0 0.0
    %3484 = vmatprep.subr.mxu0 0.0
    %3485 = vmatpush2.msra.mxu0 0.0
    %3486 = vmatprep.subr.mxu0 0.0
    %3487 = vmatpush2.msra.mxu0 0.0
    %3488 = vmatprep.subr.mxu0 0.0
    %3489 = vmatpush2.msra.mxu0 0.0
    %3490 = vmatprep.subr.mxu0 0.0
    %3491 = vmatpush2.msra.mxu0 0.0
    %3492 = vmatprep.subr.mxu0 0.0
    %3493 = vmatpush2.msra.mxu0 0.0
    %3494 = vmatprep.subr.mxu0 0.0
    %3495 = vmatpush2.msra.mxu0 0.0
    %3496 = vmatprep.subr.mxu0 0.0
    %3497 = vmatpush2.msra.mxu0 0.0
    %3498 = vmatprep.subr.mxu0 0.0
    %3499 = vmatpush2.msra.mxu0 0.0
    %3500 = vmatprep.subr.mxu0 0.0
    %3501 = vmatpush2.msra.mxu0 0.0
    %3502 = vmatprep.subr.mxu0 0.0
    %3503 = vmatpush2.msra.mxu0 0.0
    %3504 = vmatprep.subr.mxu0 0.0
    %3505 = vmatpush2.msra.mxu0 0.0
    %3506 = vmatprep.subr.mxu0 0.0
    %3507 = vmatpush2.msra.mxu0 0.0
    %3508 = vmatprep.mubr.f32.mxu0 0.0
    %3509 = vmatmul.mubr.f32.gmra.mxu0 %v3442
    %v3510 = vpop.f32.mrf.mxu0
    %v3511 = vadd.f32 0.0, %v3510
    %v3512 = vpop.f32.mrf.mxu0
    %3513 = vdwg.mxu0
    %v3514 = vrot.slane %v3426, 6
    %3515 = vrot.lane.b32.xlu0 %v3514, 32
    %v3516 = vpop.permute.xlu0 %3515
    %v3517 = vsel %vm167, %v3516, 0
    %3519 = vmatprep.subr.mxu0 0.0
    %3520 = vmatpush1.msra.mxu0 0.0
    %3521 = vmatprep.subr.mxu0 0.0
    %3522 = vmatpush1.msra.mxu0 0.0
    %3523 = vmatprep.subr.mxu0 0.0
    %3524 = vmatpush1.msra.mxu0 0.0
    %3525 = vmatprep.subr.mxu0 0.0
    %3526 = vmatpush1.msra.mxu0 0.0
    %3527 = vmatprep.subr.mxu0 0.0
    %3528 = vmatpush1.msra.mxu0 0.0
    %3529 = vmatprep.subr.mxu0 0.0
    %3530 = vmatpush1.msra.mxu0 0.0
    %3531 = vmatprep.subr.mxu0 0.0
    %3532 = vmatpush1.msra.mxu0 0.0
    %3533 = vmatprep.subr.mxu0 0.0
    %3534 = vmatpush1.msra.mxu0 0.0
    %3535 = vmatprep.subr.mxu0 0.0
    %3536 = vmatpush1.msra.mxu0 0.0
    %3537 = vmatprep.subr.mxu0 0.0
    %3538 = vmatpush1.msra.mxu0 0.0
    %3539 = vmatprep.subr.mxu0 0.0
    %3540 = vmatpush1.msra.mxu0 0.0
    %3541 = vmatprep.subr.mxu0 0.0
    %3542 = vmatpush1.msra.mxu0 0.0
    %3543 = vmatprep.subr.mxu0 0.0
    %3544 = vmatpush1.msra.mxu0 %v3435
    %3545 = vmatprep.subr.mxu0 0.0
    %3546 = vmatpush1.msra.mxu0 %v3434
    %3547 = vmatprep.subr.mxu0 0.0
    %3548 = vmatpush1.msra.mxu0 %v3433
    %3549 = vmatprep.subr.mxu0 0.0
    %3550 = vmatpush1.msra.mxu0 %v3432
    %3551 = vmatprep.subr.mxu0 0.0
    %3552 = vmatpush2.msra.mxu0 0.0
    %3553 = vmatprep.subr.mxu0 0.0
    %3554 = vmatpush2.msra.mxu0 0.0
    %3555 = vmatprep.subr.mxu0 0.0
    %3556 = vmatpush2.msra.mxu0 0.0
    %3557 = vmatprep.subr.mxu0 0.0
    %3558 = vmatpush2.msra.mxu0 0.0
    %3559 = vmatprep.subr.mxu0 0.0
    %3560 = vmatpush2.msra.mxu0 0.0
    %3561 = vmatprep.subr.mxu0 0.0
    %3562 = vmatpush2.msra.mxu0 0.0
    %3563 = vmatprep.subr.mxu0 0.0
    %3564 = vmatpush2.msra.mxu0 0.0
    %3565 = vmatprep.subr.mxu0 0.0
    %3566 = vmatpush2.msra.mxu0 0.0
    %3567 = vmatprep.subr.mxu0 0.0
    %3568 = vmatpush2.msra.mxu0 0.0
    %3569 = vmatprep.subr.mxu0 0.0
    %3570 = vmatpush2.msra.mxu0 0.0
    %3571 = vmatprep.subr.mxu0 0.0
    %3572 = vmatpush2.msra.mxu0 0.0
    %3573 = vmatprep.subr.mxu0 0.0
    %3574 = vmatpush2.msra.mxu0 0.0
    %3575 = vmatprep.subr.mxu0 0.0
    %3576 = vmatpush2.msra.mxu0 0.0
    %3577 = vmatprep.subr.mxu0 0.0
    %3578 = vmatpush2.msra.mxu0 0.0
    %3579 = vmatprep.subr.mxu0 0.0
    %3580 = vmatpush2.msra.mxu0 0.0
    %3581 = vmatprep.subr.mxu0 0.0
    %3582 = vmatpush2.msra.mxu0 0.0
    %3583 = vmatprep.mubr.f32.mxu0 0.0
    %3584 = vmatmul.mubr.f32.gmra.mxu0 %v3517
    %v3585 = vpop.f32.mrf.mxu0
    %v3586 = vadd.f32 %v3511, %v3585
    %v3587 = vpop.f32.mrf.mxu0
    %3588 = vdwg.mxu0
    %v3589 = vadd.f32 %v3586, %v57
    %v3590 = vtanh.pop %v3589
    %v3591 = vmul.f32 %v3590, %v49
    %v3592 = vadd.f32 %v3591, %v50
    %v3593 = vmul.f32 %v3592, %v3314
    %3595 = vrot.lane.b32.xlu0 %v3592, 64
    %v3596 = vpop.permute.xlu0 %3595
    %v3598 = vmul.f32 %v3592, %v3596
    %3600 = vrot.lane.b32.xlu0 %v3598, 32
    %v3601 = vpop.permute.xlu0 %3600
    %v3603 = vadd.f32 %v3593, %v3601
    %v3604 = vtanh.pop %v3603
    %3606 = vrot.lane.b32.xlu0 %v3604, 64
    %v3607 = vpop.permute.xlu0 %3606
    %v3609 = vmul.f32 %v3592, %v3607
    %3611 = vrot.lane.b32.xlu0 %v3609, 64
    %v3612 = vpop.permute.xlu0 %3611
    %3614 = vst.msk [vmem:[#allocation2 + $0x16] sm:$0x3] %vm443, %v3612
    %v3615 = vld [vmem:[#allocation2] sm:$0xff]
    %v3616 = vld [vmem:[#allocation2 + $0x8] sm:$0xff]
    %v3617 = vld [vmem:[#allocation2 + $0x10] sm:$0xff]
    %v3618 = vld [vmem:[%s7] sm:$0xff]
    %v3619 = vld [vmem:[%s7 + $0x8] sm:$0xff]
    %v3620 = vld [vmem:[%s7 + $0x10] sm:$0xff]
    %v3621 = vld [vmem:[%s7 + $0x18] sm:$0xff]
    %v3622 = vld [vmem:[%s7 + $0x20] sm:$0xff]
    %v3623 = vld [vmem:[%s7 + $0x28] sm:$0xff]
    %v3624 = vld [vmem:[%s7 + $0x30] sm:$0xff]
    %v3625 = vld [vmem:[%s7 + $0x38] sm:$0xff]
    %v3626 = vld [vmem:[%s8] sm:$0x1]
    %v3628 = vlaneseq
    %v3629 = vshrl.u32 %v3628, 7
    %v3630 = vsub.s32 0, %v3629
    %v3631 = vrot.slane %v3626, %v3630
    %vm3633 = vcmask 523264
    %v3635 = vsel %vm3633, %v3615, 0
    %v3638 = vsel %vm3633, %v3616, 0
    %v3641 = vsel %vm3633, %v3617, 0
    %3643 = vmatprep.subr.mxu0 0.0
    %3644 = vmatpush1.msra.mxu0 0.0
    %3645 = vmatprep.subr.mxu0 0.0
    %3646 = vmatpush1.msra.mxu0 0.0
    %3647 = vmatprep.subr.mxu0 0.0
    %3648 = vmatpush1.msra.mxu0 0.0
    %3649 = vmatprep.subr.mxu0 0.0
    %3650 = vmatpush1.msra.mxu0 0.0
    %3651 = vmatprep.subr.mxu0 0.0
    %3652 = vmatpush1.msra.mxu0 0.0
    %3653 = vmatprep.subr.mxu0 0.0
    %3654 = vmatpush1.msra.mxu0 0.0
    %3655 = vmatprep.subr.mxu0 0.0
    %3656 = vmatpush1.msra.mxu0 0.0
    %3657 = vmatprep.subr.mxu0 0.0
    %3658 = vmatpush1.msra.mxu0 0.0
    %3659 = vmatprep.subr.mxu0 0.0
    %3660 = vmatpush1.msra.mxu0 %v3625
    %3661 = vmatprep.subr.mxu0 0.0
    %3662 = vmatpush1.msra.mxu0 %v3624
    %3663 = vmatprep.subr.mxu0 0.0
    %3664 = vmatpush1.msra.mxu0 %v3623
    %3665 = vmatprep.subr.mxu0 0.0
    %3666 = vmatpush1.msra.mxu0 %v3622
    %3667 = vmatprep.subr.mxu0 0.0
    %3668 = vmatpush1.msra.mxu0 %v3621
    %3669 = vmatprep.subr.mxu0 0.0
    %3670 = vmatpush1.msra.mxu0 %v3620
    %3671 = vmatprep.subr.mxu0 0.0
    %3672 = vmatpush1.msra.mxu0 %v3619
    %3673 = vmatprep.subr.mxu0 0.0
    %3674 = vmatpush1.msra.mxu0 %v3618
    %3675 = vmatprep.subr.mxu0 0.0
    %3676 = vmatpush2.msra.mxu0 0.0
    %3677 = vmatprep.subr.mxu0 0.0
    %3678 = vmatpush2.msra.mxu0 0.0
    %3679 = vmatprep.subr.mxu0 0.0
    %3680 = vmatpush2.msra.mxu0 0.0
    %3681 = vmatprep.subr.mxu0 0.0
    %3682 = vmatpush2.msra.mxu0 0.0
    %3683 = vmatprep.subr.mxu0 0.0
    %3684 = vmatpush2.msra.mxu0 0.0
    %3685 = vmatprep.subr.mxu0 0.0
    %3686 = vmatpush2.msra.mxu0 0.0
    %3687 = vmatprep.subr.mxu0 0.0
    %3688 = vmatpush2.msra.mxu0 0.0
    %3689 = vmatprep.subr.mxu0 0.0
    %3690 = vmatpush2.msra.mxu0 0.0
    %3691 = vmatprep.subr.mxu0 0.0
    %3692 = vmatpush2.msra.mxu0 0.0
    %3693 = vmatprep.subr.mxu0 0.0
    %3694 = vmatpush2.msra.mxu0 0.0
    %3695 = vmatprep.subr.mxu0 0.0
    %3696 = vmatpush2.msra.mxu0 0.0
    %3697 = vmatprep.subr.mxu0 0.0
    %3698 = vmatpush2.msra.mxu0 0.0
    %3699 = vmatprep.subr.mxu0 0.0
    %3700 = vmatpush2.msra.mxu0 0.0
    %3701 = vmatprep.subr.mxu0 0.0
    %3702 = vmatpush2.msra.mxu0 0.0
    %3703 = vmatprep.subr.mxu0 0.0
    %3704 = vmatpush2.msra.mxu0 0.0
    %3705 = vmatprep.subr.mxu0 0.0
    %3706 = vmatpush2.msra.mxu0 0.0
    %3707 = vmatprep.mubr.f32.mxu0 0.0
    %3708 = vmatmul.mubr.f32.gmra.mxu0 %v3635
    %v3709 = vpop.f32.mrf.mxu0
    %v3710 = vadd.f32 %v3631, %v3709
    %v3711 = vpop.f32.mrf.mxu0
    %3712 = vmatprep.mubr.f32.mxu0 0.0
    %3713 = vmatmul.mubr.f32.gmra.mxu0 %v3638
    %v3714 = vpop.f32.mrf.mxu0
    %v3715 = vadd.f32 %v3631, %v3714
    %v3716 = vpop.f32.mrf.mxu0
    %3717 = vmatprep.mubr.f32.mxu0 0.0
    %3718 = vmatmul.mubr.f32.gmra.mxu0 %v3641
    %v3719 = vpop.f32.mrf.mxu0
    %v3720 = vadd.f32 %v3631, %v3719
    %v3721 = vpop.f32.mrf.mxu0
    %3722 = vdwg.mxu0
    %vm3723 = vcmask 31744
    %3724 = vst.msk [vmem:[%s9] sm:$0xff] %vm3723, %v3710
    %3725 = vst.msk [vmem:[%s9 + $0x8] sm:$0xff] %vm3723, %v3715
    %3726 = vst.msk [vmem:[%s9 + $0x10] sm:$0xff] %vm3723, %v3720
    // Predicated region
    $region42: #{tpu_custom_call.1} parent=1 // pred_check
      _
    $region43: #{tpu_custom_call.1} parent=1 // pred_check_branch
      %3728 = sbr.rel (0) target = $region45
    $region44: #{tpu_custom_call.1} parent=1 // pred_region
      _
    $region45: #{tpu_custom_call.1} parent=1 // pred_fallthru
      _
    // Predicated region
    $region46: #{tpu_custom_call.1} parent=1 // pred_check
      _
    $region47: #{tpu_custom_call.1} parent=1 // pred_check_branch
      %3730 = sbr.rel (0) target = $region49
    $region48: #{tpu_custom_call.1} parent=1 // pred_region
      _
    $region49: #{tpu_custom_call.1} parent=1 // pred_fallthru
      _
    %3731 = vsyncpa [#allocation4], 1

</llo_original>
